<compile_context>
chip_gen: v5e
topology: v5e:2x2
jax: 0.10.0
libtpu: 0.0.40
codegen_flags: <defaults>
</compile_context>

<pallas_src>
import functools

import jax
import jax.numpy as jnp
from jax.experimental import pallas as pl
from jax.experimental.pallas import tpu as pltpu

LANE = 128                       # pad every channel-like dim to this
MAX_TM = 512                     # row-tile cap (VMEM-safe on v5e/v6e/v7x)
VMEM_LIMIT = 32 * 1024 * 1024    # explicit scoped-VMEM cap (v7x-safe)


def _round_up(x, m):
    return (x + m - 1) // m * m


def _pad_last(x, new_last):
    pad = new_last - x.shape[-1]
    if pad == 0:
        return x
    cfg = [(0, 0)] * (x.ndim - 1) + [(0, pad)]
    return jnp.pad(x, cfg)


# ----------------------------------------------------------------------------
# Pallas kernels
# ----------------------------------------------------------------------------
def _conv_tap_kernel(taps_ref, w_ref, scale_ref, bias_ref, *rest, relu, has_res):
    """Per-tap (rows,Cin)@(Cin,Cout) accumulate; fused BN/residual/ReLU epilogue."""
    if has_res:
        res_ref, out_ref, acc_ref = rest
    else:
        out_ref, acc_ref = rest
    t = pl.program_id(1)

    @pl.when(t == 0)
    def _init():
        acc_ref[...] = jnp.zeros_like(acc_ref)

    acc_ref[...] += jnp.dot(taps_ref[0], w_ref[0],
                            preferred_element_type=jnp.float32)

    @pl.when(t == pl.num_programs(1) - 1)
    def _epilogue():
        y = acc_ref[...] * scale_ref[...] + bias_ref[...]
        if has_res:
            y = y + res_ref[...].astype(jnp.float32)
        if relu:
            y = jnp.maximum(y, 0.0)
        out_ref[...] = y.astype(out_ref.dtype)


def _maxpool_kernel(taps_ref, out_ref):
    """9-way max over the leading tap axis (epilogue math kept in f32)."""
    acc = taps_ref[0].astype(jnp.float32)
    for t in range(1, taps_ref.shape[0]):
        acc = jnp.maximum(acc, taps_ref[t].astype(jnp.float32))
    out_ref[...] = acc.astype(out_ref.dtype)


def _avgpool_fc_kernel(x_ref, w_ref, b_ref, out_ref, *, inv_hw):
    """Global average pool fused with the final FC matmul."""
    pooled = jnp.sum(x_ref[...].astype(jnp.float32), axis=1) * inv_hw   # (N, C)
    y = jnp.dot(pooled.astype(jnp.bfloat16), w_ref[...],
                preferred_element_type=jnp.float32)
    out_ref[...] = y + b_ref[...]


# ----------------------------------------------------------------------------
# Wrappers (BlockSpecs / grids)
# ----------------------------------------------------------------------------
def _shifted_taps(x, kh, kw, stride, pad, pad_value=0.0):
    """x: (N,H,W,C) -> (kh*kw, N*Ho*Wo, C) lane-dense per-tap slabs."""
    N, H, W, C = x.shape
    xp = jnp.pad(x, ((0, 0), (pad, pad), (pad, pad), (0, 0)),
                 constant_values=pad_value)
    Ho = (H + 2 * pad - kh) // stride + 1
    Wo = (W + 2 * pad - kw) // stride + 1
    taps = []
    for i in range(kh):
        for j in range(kw):
            taps.append(
                xp[:, i:i + (Ho - 1) * stride + 1:stride,
                      j:j + (Wo - 1) * stride + 1:stride, :]
                .reshape(N * Ho * Wo, C))
    return jnp.stack(taps, axis=0), Ho, Wo


def conv_bn_act(x, w_hwio, scale, bias, *, stride, pad, relu, residual=None):
    """x: (N,H,W,Cp) bf16 -> (N,Ho,Wo,Cop) bf16.  Conv + BN (+res) (+ReLU)."""
    N = x.shape[0]
    kh, kw, cin, cout = w_hwio.shape
    taps, Ho, Wo = _shifted_taps(x, kh, kw, stride, pad)
    taps = taps.astype(jnp.bfloat16)                       # (T, M, Cin)
    w_taps = w_hwio.reshape(kh * kw, cin, cout).astype(jnp.bfloat16)
    M = N * Ho * Wo
    tm = M if M <= MAX_TM else MAX_TM                      # mult of 8 or == M
    scale2 = scale.reshape(1, cout).astype(jnp.float32)
    bias2 = bias.reshape(1, cout).astype(jnp.float32)

    args = [taps, w_taps, scale2, bias2]
    in_specs = [
        pl.BlockSpec((1, tm, cin), lambda m, t: (t, m, 0)),
        pl.BlockSpec((1, cin, cout), lambda m, t: (t, 0, 0)),
        pl.BlockSpec((1, cout), lambda m, t: (0, 0)),
        pl.BlockSpec((1, cout), lambda m, t: (0, 0)),
    ]
    if residual is not None:
        args.append(residual.reshape(M, cout).astype(jnp.bfloat16))
        in_specs.append(pl.BlockSpec((tm, cout), lambda m, t: (m, 0)))

    kernel = functools.partial(_conv_tap_kernel, relu=relu,
                               has_res=residual is not None)
    out = pl.pallas_call(
        kernel,
        grid=(pl.cdiv(M, tm), kh * kw),
        in_specs=in_specs,
        out_specs=pl.BlockSpec((tm, cout), lambda m, t: (m, 0)),
        out_shape=jax.ShapeDtypeStruct((M, cout), jnp.bfloat16),
        scratch_shapes=[pltpu.VMEM((tm, cout), jnp.float32)],
        compiler_params=pltpu.CompilerParams(
            dimension_semantics=("parallel", "arbitrary"),
            vmem_limit_bytes=VMEM_LIMIT),
    )(*args)
    return out.reshape(N, Ho, Wo, cout)


def maxpool_3x3_s2_p1(x):
    N, H, W, C = x.shape
    neg = float(jnp.finfo(jnp.bfloat16).min)   # finite pad value (not -inf)
    taps, Ho, Wo = _shifted_taps(x, 3, 3, 2, 1, pad_value=neg)
    taps = taps.astype(jnp.bfloat16)           # (9, M, C)
    M = N * Ho * Wo
    tm = M if M <= MAX_TM else MAX_TM
    out = pl.pallas_call(
        _maxpool_kernel,
        grid=(pl.cdiv(M, tm),),
        in_specs=[pl.BlockSpec((9, tm, C), lambda m: (0, m, 0))],
        out_specs=pl.BlockSpec((tm, C), lambda m: (m, 0)),
        out_shape=jax.ShapeDtypeStruct((M, C), jnp.bfloat16),
        compiler_params=pltpu.CompilerParams(
            dimension_semantics=("parallel",),
            vmem_limit_bytes=VMEM_LIMIT),
    )(taps)
    return out.reshape(N, Ho, Wo, C)


def avgpool_fc(x, fc_w, fc_b):
    """x: (N,H,W,Cp) bf16 -> (N, num_classes_padded) f32 logits."""
    N, H, W, C = x.shape
    ncp = fc_w.shape[1]
    x3 = x.reshape(N, H * W, C)
    kernel = functools.partial(_avgpool_fc_kernel, inv_hw=1.0 / (H * W))
    return pl.pallas_call(
        kernel,
        grid=(1,),
        in_specs=[
            pl.BlockSpec((N, H * W, C), lambda i: (0, 0, 0)),
            pl.BlockSpec((C, ncp), lambda i: (0, 0)),
            pl.BlockSpec((1, ncp), lambda i: (0, 0)),
        ],
        out_specs=pl.BlockSpec((N, ncp), lambda i: (0, 0)),
        out_shape=jax.ShapeDtypeStruct((N, ncp), jnp.float32),
        compiler_params=pltpu.CompilerParams(vmem_limit_bytes=VMEM_LIMIT),
    )(x3, fc_w.astype(jnp.bfloat16), fc_b.reshape(1, ncp).astype(jnp.float32))


# ----------------------------------------------------------------------------
# Parameters (deterministic synthetic init, channel dims padded to LANE)
# ----------------------------------------------------------------------------
def _conv_weight(key, kh, kw, cin, cout, cin_pad, cout_pad):
    fan_in = kh * kw * cin          # kaiming_normal_ fan_in (builder default)
    std = (2.0 / fan_in) ** 0.5
    w = std * jax.random.normal(key, (kh, kw, cin, cout), jnp.float32)
    return jnp.pad(w, ((0, 0), (0, 0), (0, cin_pad - cin), (0, cout_pad - cout)))


def _bn_affine(cout, cout_pad, eps=1e-5):
    gamma = jnp.ones((cout,), jnp.float32)
    beta = jnp.zeros((cout,), jnp.float32)
    running_mean = jnp.zeros((cout,), jnp.float32)
    running_var = jnp.ones((cout,), jnp.float32)
    scale = gamma / jnp.sqrt(running_var + eps)
    shift = beta - running_mean * scale
    pad = (0, cout_pad - cout)
    return jnp.pad(scale, pad), jnp.pad(shift, pad)


def init_resnet_params(key, arch):
    keys = iter(jax.random.split(key, 128))
    cp = lambda c: _round_up(c, LANE)
    params = {}
    sw = arch["stem_width"]
    params["stem_w"] = _conv_weight(next(keys), 7, 7, 3, sw, cp(3), cp(sw))
    params["stem_bn"] = _bn_affine(sw, cp(sw))

    inplanes = sw
    layers = []
    for i, (w, nblocks) in enumerate(zip(arch["widths"], arch["layers"])):
        stride = 1 if i == 0 else 2
        blocks = []
        for b in range(nblocks):
            s = stride if b == 0 else 1
            out_c = w * arch["expansion"]
            blk = {}
            blk["w1"] = _conv_weight(next(keys), 3, 3, inplanes, w,
                                     cp(inplanes), cp(w))
            blk["bn1"] = _bn_affine(w, cp(w))
            blk["w2"] = _conv_weight(next(keys), 3, 3, w, out_c, cp(w), cp(out_c))
            blk["bn2"] = _bn_affine(out_c, cp(out_c))
            if b == 0 and (s != 1 or inplanes != out_c):
                blk["wd"] = _conv_weight(next(keys), 1, 1, inplanes, out_c,
                                         cp(inplanes), cp(out_c))
                blk["bnd"] = _bn_affine(out_c, cp(out_c))
            blocks.append(blk)
            inplanes = out_c
        layers.append(blocks)
    params["layers"] = layers

    feat = arch["widths"][-1] * arch["expansion"]
    nc = arch["num_classes"]
    bound = 1.0 / (feat ** 0.5)
    fc_w = jax.random.uniform(next(keys), (feat, nc), jnp.float32, -bound, bound)
    fc_b = jax.random.uniform(next(keys), (nc,), jnp.float32, -bound, bound)
    params["fc_w"] = jnp.pad(fc_w, ((0, cp(feat) - feat), (0, cp(nc) - nc)))
    params["fc_b"] = jnp.pad(fc_b, (0, cp(nc) - nc))
    return params


# ----------------------------------------------------------------------------
# Forward pass (matches ResNet.forward: stem -> layers -> classifier)
# ----------------------------------------------------------------------------
def basic_block(x, blk, stride):
    s1, b1 = blk["bn1"]
    s2, b2 = blk["bn2"]
    out = conv_bn_act(x, blk["w1"], s1, b1, stride=stride, pad=1, relu=True)
    if "wd" in blk:
        sd, bd = blk["bnd"]
        residual = conv_bn_act(x, blk["wd"], sd, bd, stride=stride, pad=0,
                               relu=False)
    else:
        residual = x
    # conv2 + bn2 + residual add + relu fused into one kernel epilogue
    return conv_bn_act(out, blk["w2"], s2, b2, stride=1, pad=1, relu=True,
                       residual=residual)


def make_resnet_forward(arch):
    strides = []
    for i, nblocks in enumerate(arch["layers"]):
        s0 = 1 if i == 0 else 2
        strides.append(tuple(s0 if b == 0 else 1 for b in range(nblocks)))

    def forward(params, x_nchw):
        x = jnp.transpose(x_nchw, (0, 2, 3, 1)).astype(jnp.float32)  # NHWC
        x = _pad_last(x, _round_up(x.shape[-1], LANE)).astype(jnp.bfloat16)

        # stem: conv7x7 s2 + bn + relu (fused) + maxpool 3x3 s2 p1
        s, b = params["stem_bn"]
        x = conv_bn_act(x, params["stem_w"], s, b, stride=2, pad=3, relu=True)
        x = maxpool_3x3_s2_p1(x)
        # TODO(synk): maxpool stays a separate kernel; folding it into the stem
        # conv epilogue needs cross-tile halo handling.

        # residual stages
        for li, blocks in enumerate(params["layers"]):
            for bi, blk in enumerate(blocks):
                x = basic_block(x, blk, strides[li][bi])

        # classifier: global avg pool fused with FC
        logits_padded = avgpool_fc(x, params["fc_w"], params["fc_b"])
        return logits_padded[:, :arch["num_classes"]]

    return jax.jit(forward)


# ----------------------------------------------------------------------------
if __name__ == "__main__":
    arch = dict(
        stem_width=4,
        widths=[4, 8],
        layers=[1, 1],
        expansion=1,
        num_classes=10,
    )
    key = jax.random.PRNGKey(0)
    k_params, k_x = jax.random.split(key)
    params = init_resnet_params(k_params, arch)

    # PyTorch-style NCHW input: batch=2, channels=3, spatial=16
    x = jax.random.normal(k_x, (2, 3, 16, 16), jnp.float32)

    forward = make_resnet_forward(arch)
    logits = forward(params, x)
    logits = jax.block_until_ready(logits)

    assert logits.shape == (2, arch["num_classes"])
    assert bool(jnp.all(jnp.isfinite(logits)))
    print("KERNEL_OK")
</pallas_src>

<mosaic_0001>
module attributes {stable_mosaic.version = 11 : i64} {
  func.func @_conv_tap_kernel(%arg0: i32, %arg1: i32, %arg2: memref<1x128x128xbf16, #tpu.memory_space<vmem>>, %arg3: memref<1x128x128xbf16, #tpu.memory_space<vmem>>, %arg4: memref<1x128xf32, #tpu.memory_space<vmem>>, %arg5: memref<1x128xf32, #tpu.memory_space<vmem>>, %arg6: memref<128x128xbf16, #tpu.memory_space<vmem>>, %arg7: memref<128x128xf32, #tpu.memory_space<vmem>>) attributes {dimension_semantics = [#tpu.dimension_semantics<parallel>, #tpu.dimension_semantics<arbitrary>], iteration_bounds = array<i64: 1, 49>, scalar_prefetch = 0 : i64, scratch_operands = 1 : i64, tpu.core_type = #tpu.core_type<tc>, window_params = [{transform_indices = @transform_0, window_bounds = array<i64: 1, 128, 128>}, {transform_indices = @transform_1, window_bounds = array<i64: 1, 128, 128>}, {pipeline_mode = #tpu.pipeline_mode<synchronous>, transform_indices = @transform_2, window_bounds = array<i64: 1, 128>}, {pipeline_mode = #tpu.pipeline_mode<synchronous>, transform_indices = @transform_3, window_bounds = array<i64: 1, 128>}, {transform_indices = @transform_4, window_bounds = array<i64: 128, 128>}]} {
    %c0_i32 = arith.constant 0 : i32
    %0 = arith.cmpi eq, %arg1, %c0_i32 : i32
    %1 = arith.extui %0 : i1 to i32
    %c0_i32_0 = arith.constant 0 : i32
    %2 = arith.cmpi ne, %1, %c0_i32_0 : i32
    scf.if %2 {
      %cst_11 = arith.constant 0.000000e+00 : f32
      %14 = vector.broadcast %cst_11 : f32 to vector<128x128xf32>
      %c0_12 = arith.constant 0 : index
      %c0_13 = arith.constant 0 : index
      %15 = vector.load %arg7[%c0_12, %c0_13] : memref<128x128xf32, #tpu.memory_space<vmem>>, vector<128x128xf32>
      tpu.vector_store %arg7[%c0_12, %c0_13], %14 {strides = array<i32>} : memref<128x128xf32, #tpu.memory_space<vmem>>, vector<128x128xf32>,
    } else {
    }
    %c0 = arith.constant 0 : index
    %c0_1 = arith.constant 0 : index
    %3 = vector.load %arg7[%c0, %c0_1] : memref<128x128xf32, #tpu.memory_space<vmem>>, vector<128x128xf32>
    %c0_2 = arith.constant 0 : index
    %c0_3 = arith.constant 0 : index
    %c0_4 = arith.constant 0 : index
    %4 = vector.load %arg2[%c0_2, %c0_3, %c0_4] : memref<1x128x128xbf16, #tpu.memory_space<vmem>>, vector<1x128x128xbf16>
    %5 = vector.shape_cast %4 : vector<1x128x128xbf16> to vector<128x128xbf16>
    %c0_5 = arith.constant 0 : index
    %c0_6 = arith.constant 0 : index
    %c0_7 = arith.constant 0 : index
    %6 = vector.load %arg3[%c0_5, %c0_6, %c0_7] : memref<1x128x128xbf16, #tpu.memory_space<vmem>>, vector<1x128x128xbf16>
    %7 = vector.shape_cast %6 : vector<1x128x128xbf16> to vector<128x128xbf16>
    %cst = arith.constant dense<0.000000e+00> : vector<128x128xf32>
    %8 = tpu.matmul %5, %7, %cst {dimension_numbers = #tpu.dot_dimension_numbers<[1], [0], [0], [1], [0, 0, 1, 1], [], []>} : vector<128x128xbf16>, vector<128x128xbf16>, vector<128x128xf32> -> vector<128x128xf32>
    %9 = arith.addf %3, %8 : vector<128x128xf32>
    %c0_8 = arith.constant 0 : index
    %c0_9 = arith.constant 0 : index
    %10 = vector.load %arg7[%c0_8, %c0_9] : memref<128x128xf32, #tpu.memory_space<vmem>>, vector<128x128xf32>
    tpu.vector_store %arg7[%c0_8, %c0_9], %9 {strides = array<i32>} : memref<128x128xf32, #tpu.memory_space<vmem>>, vector<128x128xf32>,
    %c48_i32 = arith.constant 48 : i32
    %11 = arith.cmpi eq, %arg1, %c48_i32 : i32
    %12 = arith.extui %11 : i1 to i32
    %c0_i32_10 = arith.constant 0 : i32
    %13 = arith.cmpi ne, %12, %c0_i32_10 : i32
    scf.if %13 {
      %c0_11 = arith.constant 0 : index
      %c0_12 = arith.constant 0 : index
      %14 = vector.load %arg7[%c0_11, %c0_12] : memref<128x128xf32, #tpu.memory_space<vmem>>, vector<128x128xf32>
      %c0_13 = arith.constant 0 : index
      %c0_14 = arith.constant 0 : index
      %15 = vector.load %arg4[%c0_13, %c0_14] : memref<1x128xf32, #tpu.memory_space<vmem>>, vector<1x128xf32>
      %16 = vector.broadcast %15 : vector<1x128xf32> to vector<128x128xf32>
      %17 = arith.mulf %14, %16 : vector<128x128xf32>
      %c0_15 = arith.constant 0 : index
      %c0_16 = arith.constant 0 : index
      %18 = vector.load %arg5[%c0_15, %c0_16] : memref<1x128xf32, #tpu.memory_space<vmem>>, vector<1x128xf32>
      %19 = vector.broadcast %18 : vector<1x128xf32> to vector<128x128xf32>
      %20 = arith.addf %17, %19 : vector<128x128xf32>
      %cst_17 = arith.constant 0.000000e+00 : f32
      %21 = vector.broadcast %cst_17 : f32 to vector<128x128xf32>
      %22 = arith.maximumf %20, %21 : vector<128x128xf32>
      %23 = arith.truncf %22 : vector<128x128xf32> to vector<128x128xbf16>
      %c0_18 = arith.constant 0 : index
      %c0_19 = arith.constant 0 : index
      %24 = vector.load %arg6[%c0_18, %c0_19] : memref<128x128xbf16, #tpu.memory_space<vmem>>, vector<128x128xbf16>
      tpu.vector_store %arg6[%c0_18, %c0_19], %23 {strides = array<i32>} : memref<128x128xbf16, #tpu.memory_space<vmem>>, vector<128x128xbf16>,
    } else {
    }
    return
  }
  func.func @transform_0(%arg0: i32, %arg1: i32) -> (i32, i32, i32) {
    %c0_i32 = arith.constant 0 : i32
    %c0_i32_0 = arith.constant 0 : i32
    return %arg1, %arg0, %c0_i32 : i32, i32, i32
  }
  func.func @transform_1(%arg0: i32, %arg1: i32) -> (i32, i32, i32) {
    %c0_i32 = arith.constant 0 : i32
    %c0_i32_0 = arith.constant 0 : i32
    %c0_i32_1 = arith.constant 0 : i32
    return %arg1, %c0_i32, %c0_i32_0 : i32, i32, i32
  }
  func.func @transform_2(%arg0: i32, %arg1: i32) -> (i32, i32) {
    %c0_i32 = arith.constant 0 : i32
    %c0_i32_0 = arith.constant 0 : i32
    %c0_i32_1 = arith.constant 0 : i32
    return %c0_i32, %c0_i32_0 : i32, i32
  }
  func.func @transform_3(%arg0: i32, %arg1: i32) -> (i32, i32) {
    %c0_i32 = arith.constant 0 : i32
    %c0_i32_0 = arith.constant 0 : i32
    %c0_i32_1 = arith.constant 0 : i32
    return %c0_i32, %c0_i32_0 : i32, i32
  }
  func.func @transform_4(%arg0: i32, %arg1: i32) -> (i32, i32) {
    %c0_i32 = arith.constant 0 : i32
    %c0_i32_0 = arith.constant 0 : i32
    return %arg0, %c0_i32 : i32, i32
  }
}

module attributes {stable_mosaic.version = 11 : i64} {
  func.func @_maxpool_kernel(%arg0: i32, %arg1: memref<9x32x128xbf16, #tpu.memory_space<vmem>>, %arg2: memref<32x128xbf16, #tpu.memory_space<vmem>>) attributes {dimension_semantics = [#tpu.dimension_semantics<parallel>], iteration_bounds = array<i64: 1>, scalar_prefetch = 0 : i64, scratch_operands = 0 : i64, tpu.core_type = #tpu.core_type<tc>, window_params = [{transform_indices = @transform_0, window_bounds = array<i64: 9, 32, 128>}, {transform_indices = @transform_1, window_bounds = array<i64: 32, 128>}]} {
    %c0 = arith.constant 0 : index
    %c0_0 = arith.constant 0 : index
    %c0_1 = arith.constant 0 : index
    %0 = vector.load %arg1[%c0, %c0_0, %c0_1] : memref<9x32x128xbf16, #tpu.memory_space<vmem>>, vector<1x32x128xbf16>
    %1 = vector.shape_cast %0 : vector<1x32x128xbf16> to vector<32x128xbf16>
    %2 = arith.extf %1 : vector<32x128xbf16> to vector<32x128xf32>
    %c1 = arith.constant 1 : index
    %c0_2 = arith.constant 0 : index
    %c0_3 = arith.constant 0 : index
    %3 = vector.load %arg1[%c1, %c0_2, %c0_3] : memref<9x32x128xbf16, #tpu.memory_space<vmem>>, vector<1x32x128xbf16>
    %4 = vector.shape_cast %3 : vector<1x32x128xbf16> to vector<32x128xbf16>
    %5 = arith.extf %4 : vector<32x128xbf16> to vector<32x128xf32>
    %6 = arith.maximumf %2, %5 : vector<32x128xf32>
    %c2 = arith.constant 2 : index
    %c0_4 = arith.constant 0 : index
    %c0_5 = arith.constant 0 : index
    %7 = vector.load %arg1[%c2, %c0_4, %c0_5] : memref<9x32x128xbf16, #tpu.memory_space<vmem>>, vector<1x32x128xbf16>
    %8 = vector.shape_cast %7 : vector<1x32x128xbf16> to vector<32x128xbf16>
    %9 = arith.extf %8 : vector<32x128xbf16> to vector<32x128xf32>
    %10 = arith.maximumf %6, %9 : vector<32x128xf32>
    %c3 = arith.constant 3 : index
    %c0_6 = arith.constant 0 : index
    %c0_7 = arith.constant 0 : index
    %11 = vector.load %arg1[%c3, %c0_6, %c0_7] : memref<9x32x128xbf16, #tpu.memory_space<vmem>>, vector<1x32x128xbf16>
    %12 = vector.shape_cast %11 : vector<1x32x128xbf16> to vector<32x128xbf16>
    %13 = arith.extf %12 : vector<32x128xbf16> to vector<32x128xf32>
    %14 = arith.maximumf %10, %13 : vector<32x128xf32>
    %c4 = arith.constant 4 : index
    %c0_8 = arith.constant 0 : index
    %c0_9 = arith.constant 0 : index
    %15 = vector.load %arg1[%c4, %c0_8, %c0_9] : memref<9x32x128xbf16, #tpu.memory_space<vmem>>, vector<1x32x128xbf16>
    %16 = vector.shape_cast %15 : vector<1x32x128xbf16> to vector<32x128xbf16>
    %17 = arith.extf %16 : vector<32x128xbf16> to vector<32x128xf32>
    %18 = arith.maximumf %14, %17 : vector<32x128xf32>
    %c5 = arith.constant 5 : index
    %c0_10 = arith.constant 0 : index
    %c0_11 = arith.constant 0 : index
    %19 = vector.load %arg1[%c5, %c0_10, %c0_11] : memref<9x32x128xbf16, #tpu.memory_space<vmem>>, vector<1x32x128xbf16>
    %20 = vector.shape_cast %19 : vector<1x32x128xbf16> to vector<32x128xbf16>
    %21 = arith.extf %20 : vector<32x128xbf16> to vector<32x128xf32>
    %22 = arith.maximumf %18, %21 : vector<32x128xf32>
    %c6 = arith.constant 6 : index
    %c0_12 = arith.constant 0 : index
    %c0_13 = arith.constant 0 : index
    %23 = vector.load %arg1[%c6, %c0_12, %c0_13] : memref<9x32x128xbf16, #tpu.memory_space<vmem>>, vector<1x32x128xbf16>
    %24 = vector.shape_cast %23 : vector<1x32x128xbf16> to vector<32x128xbf16>
    %25 = arith.extf %24 : vector<32x128xbf16> to vector<32x128xf32>
    %26 = arith.maximumf %22, %25 : vector<32x128xf32>
    %c7 = arith.constant 7 : index
    %c0_14 = arith.constant 0 : index
    %c0_15 = arith.constant 0 : index
    %27 = vector.load %arg1[%c7, %c0_14, %c0_15] : memref<9x32x128xbf16, #tpu.memory_space<vmem>>, vector<1x32x128xbf16>
    %28 = vector.shape_cast %27 : vector<1x32x128xbf16> to vector<32x128xbf16>
    %29 = arith.extf %28 : vector<32x128xbf16> to vector<32x128xf32>
    %30 = arith.maximumf %26, %29 : vector<32x128xf32>
    %c8 = arith.constant 8 : index
    %c0_16 = arith.constant 0 : index
    %c0_17 = arith.constant 0 : index
    %31 = vector.load %arg1[%c8, %c0_16, %c0_17] : memref<9x32x128xbf16, #tpu.memory_space<vmem>>, vector<1x32x128xbf16>
    %32 = vector.shape_cast %31 : vector<1x32x128xbf16> to vector<32x128xbf16>
    %33 = arith.extf %32 : vector<32x128xbf16> to vector<32x128xf32>
    %34 = arith.maximumf %30, %33 : vector<32x128xf32>
    %35 = arith.truncf %34 : vector<32x128xf32> to vector<32x128xbf16>
    %c0_18 = arith.constant 0 : index
    %c0_19 = arith.constant 0 : index
    %36 = vector.load %arg2[%c0_18, %c0_19] : memref<32x128xbf16, #tpu.memory_space<vmem>>, vector<32x128xbf16>
    tpu.vector_store %arg2[%c0_18, %c0_19], %35 {strides = array<i32>} : memref<32x128xbf16, #tpu.memory_space<vmem>>, vector<32x128xbf16>,
    return
  }
  func.func @transform_0(%arg0: i32) -> (i32, i32, i32) {
    %c0_i32 = arith.constant 0 : i32
    %c0_i32_0 = arith.constant 0 : i32
    %c0_i32_1 = arith.constant 0 : i32
    return %c0_i32, %arg0, %c0_i32_0 : i32, i32, i32
  }
  func.func @transform_1(%arg0: i32) -> (i32, i32) {
    %c0_i32 = arith.constant 0 : i32
    %c0_i32_0 = arith.constant 0 : i32
    return %arg0, %c0_i32 : i32, i32
  }
}

module attributes {stable_mosaic.version = 11 : i64} {
  func.func @_conv_tap_kernel(%arg0: i32, %arg1: i32, %arg2: memref<1x32x128xbf16, #tpu.memory_space<vmem>>, %arg3: memref<1x128x128xbf16, #tpu.memory_space<vmem>>, %arg4: memref<1x128xf32, #tpu.memory_space<vmem>>, %arg5: memref<1x128xf32, #tpu.memory_space<vmem>>, %arg6: memref<32x128xbf16, #tpu.memory_space<vmem>>, %arg7: memref<32x128xf32, #tpu.memory_space<vmem>>) attributes {dimension_semantics = [#tpu.dimension_semantics<parallel>, #tpu.dimension_semantics<arbitrary>], iteration_bounds = array<i64: 1, 9>, scalar_prefetch = 0 : i64, scratch_operands = 1 : i64, tpu.core_type = #tpu.core_type<tc>, window_params = [{transform_indices = @transform_0, window_bounds = array<i64: 1, 32, 128>}, {transform_indices = @transform_1, window_bounds = array<i64: 1, 128, 128>}, {pipeline_mode = #tpu.pipeline_mode<synchronous>, transform_indices = @transform_2, window_bounds = array<i64: 1, 128>}, {pipeline_mode = #tpu.pipeline_mode<synchronous>, transform_indices = @transform_3, window_bounds = array<i64: 1, 128>}, {transform_indices = @transform_4, window_bounds = array<i64: 32, 128>}]} {
    %c0_i32 = arith.constant 0 : i32
    %0 = arith.cmpi eq, %arg1, %c0_i32 : i32
    %1 = arith.extui %0 : i1 to i32
    %c0_i32_0 = arith.constant 0 : i32
    %2 = arith.cmpi ne, %1, %c0_i32_0 : i32
    scf.if %2 {
      %cst_11 = arith.constant 0.000000e+00 : f32
      %14 = vector.broadcast %cst_11 : f32 to vector<32x128xf32>
      %c0_12 = arith.constant 0 : index
      %c0_13 = arith.constant 0 : index
      %15 = vector.load %arg7[%c0_12, %c0_13] : memref<32x128xf32, #tpu.memory_space<vmem>>, vector<32x128xf32>
      tpu.vector_store %arg7[%c0_12, %c0_13], %14 {strides = array<i32>} : memref<32x128xf32, #tpu.memory_space<vmem>>, vector<32x128xf32>,
    } else {
    }
    %c0 = arith.constant 0 : index
    %c0_1 = arith.constant 0 : index
    %3 = vector.load %arg7[%c0, %c0_1] : memref<32x128xf32, #tpu.memory_space<vmem>>, vector<32x128xf32>
    %c0_2 = arith.constant 0 : index
    %c0_3 = arith.constant 0 : index
    %c0_4 = arith.constant 0 : index
    %4 = vector.load %arg2[%c0_2, %c0_3, %c0_4] : memref<1x32x128xbf16, #tpu.memory_space<vmem>>, vector<1x32x128xbf16>
    %5 = vector.shape_cast %4 : vector<1x32x128xbf16> to vector<32x128xbf16>
    %c0_5 = arith.constant 0 : index
    %c0_6 = arith.constant 0 : index
    %c0_7 = arith.constant 0 : index
    %6 = vector.load %arg3[%c0_5, %c0_6, %c0_7] : memref<1x128x128xbf16, #tpu.memory_space<vmem>>, vector<1x128x128xbf16>
    %7 = vector.shape_cast %6 : vector<1x128x128xbf16> to vector<128x128xbf16>
    %cst = arith.constant dense<0.000000e+00> : vector<32x128xf32>
    %8 = tpu.matmul %5, %7, %cst {dimension_numbers = #tpu.dot_dimension_numbers<[1], [0], [0], [1], [0, 0, 1, 1], [], []>} : vector<32x128xbf16>, vector<128x128xbf16>, vector<32x128xf32> -> vector<32x128xf32>
    %9 = arith.addf %3, %8 : vector<32x128xf32>
    %c0_8 = arith.constant 0 : index
    %c0_9 = arith.constant 0 : index
    %10 = vector.load %arg7[%c0_8, %c0_9] : memref<32x128xf32, #tpu.memory_space<vmem>>, vector<32x128xf32>
    tpu.vector_store %arg7[%c0_8, %c0_9], %9 {strides = array<i32>} : memref<32x128xf32, #tpu.memory_space<vmem>>, vector<32x128xf32>,
    %c8_i32 = arith.constant 8 : i32
    %11 = arith.cmpi eq, %arg1, %c8_i32 : i32
    %12 = arith.extui %11 : i1 to i32
    %c0_i32_10 = arith.constant 0 : i32
    %13 = arith.cmpi ne, %12, %c0_i32_10 : i32
    scf.if %13 {
      %c0_11 = arith.constant 0 : index
      %c0_12 = arith.constant 0 : index
      %14 = vector.load %arg7[%c0_11, %c0_12] : memref<32x128xf32, #tpu.memory_space<vmem>>, vector<32x128xf32>
      %c0_13 = arith.constant 0 : index
      %c0_14 = arith.constant 0 : index
      %15 = vector.load %arg4[%c0_13, %c0_14] : memref<1x128xf32, #tpu.memory_space<vmem>>, vector<1x128xf32>
      %16 = vector.broadcast %15 : vector<1x128xf32> to vector<32x128xf32>
      %17 = arith.mulf %14, %16 : vector<32x128xf32>
      %c0_15 = arith.constant 0 : index
      %c0_16 = arith.constant 0 : index
      %18 = vector.load %arg5[%c0_15, %c0_16] : memref<1x128xf32, #tpu.memory_space<vmem>>, vector<1x128xf32>
      %19 = vector.broadcast %18 : vector<1x128xf32> to vector<32x128xf32>
      %20 = arith.addf %17, %19 : vector<32x128xf32>
      %cst_17 = arith.constant 0.000000e+00 : f32
      %21 = vector.broadcast %cst_17 : f32 to vector<32x128xf32>
      %22 = arith.maximumf %20, %21 : vector<32x128xf32>
      %23 = arith.truncf %22 : vector<32x128xf32> to vector<32x128xbf16>
      %c0_18 = arith.constant 0 : index
      %c0_19 = arith.constant 0 : index
      %24 = vector.load %arg6[%c0_18, %c0_19] : memref<32x128xbf16, #tpu.memory_space<vmem>>, vector<32x128xbf16>
      tpu.vector_store %arg6[%c0_18, %c0_19], %23 {strides = array<i32>} : memref<32x128xbf16, #tpu.memory_space<vmem>>, vector<32x128xbf16>,
    } else {
    }
    return
  }
  func.func @transform_0(%arg0: i32, %arg1: i32) -> (i32, i32, i32) {
    %c0_i32 = arith.constant 0 : i32
    %c0_i32_0 = arith.constant 0 : i32
    return %arg1, %arg0, %c0_i32 : i32, i32, i32
  }
  func.func @transform_1(%arg0: i32, %arg1: i32) -> (i32, i32, i32) {
    %c0_i32 = arith.constant 0 : i32
    %c0_i32_0 = arith.constant 0 : i32
    %c0_i32_1 = arith.constant 0 : i32
    return %arg1, %c0_i32, %c0_i32_0 : i32, i32, i32
  }
  func.func @transform_2(%arg0: i32, %arg1: i32) -> (i32, i32) {
    %c0_i32 = arith.constant 0 : i32
    %c0_i32_0 = arith.constant 0 : i32
    %c0_i32_1 = arith.constant 0 : i32
    return %c0_i32, %c0_i32_0 : i32, i32
  }
  func.func @transform_3(%arg0: i32, %arg1: i32) -> (i32, i32) {
    %c0_i32 = arith.constant 0 : i32
    %c0_i32_0 = arith.constant 0 : i32
    %c0_i32_1 = arith.constant 0 : i32
    return %c0_i32, %c0_i32_0 : i32, i32
  }
  func.func @transform_4(%arg0: i32, %arg1: i32) -> (i32, i32) {
    %c0_i32 = arith.constant 0 : i32
    %c0_i32_0 = arith.constant 0 : i32
    return %arg0, %c0_i32 : i32, i32
  }
}

module attributes {stable_mosaic.version = 11 : i64} {
  func.func @_conv_tap_kernel(%arg0: i32, %arg1: i32, %arg2: memref<1x32x128xbf16, #tpu.memory_space<vmem>>, %arg3: memref<1x128x128xbf16, #tpu.memory_space<vmem>>, %arg4: memref<1x128xf32, #tpu.memory_space<vmem>>, %arg5: memref<1x128xf32, #tpu.memory_space<vmem>>, %arg6: memref<32x128xbf16, #tpu.memory_space<vmem>>, %arg7: memref<32x128xbf16, #tpu.memory_space<vmem>>, %arg8: memref<32x128xf32, #tpu.memory_space<vmem>>) attributes {dimension_semantics = [#tpu.dimension_semantics<parallel>, #tpu.dimension_semantics<arbitrary>], iteration_bounds = array<i64: 1, 9>, scalar_prefetch = 0 : i64, scratch_operands = 1 : i64, tpu.core_type = #tpu.core_type<tc>, window_params = [{transform_indices = @transform_0, window_bounds = array<i64: 1, 32, 128>}, {transform_indices = @transform_1, window_bounds = array<i64: 1, 128, 128>}, {pipeline_mode = #tpu.pipeline_mode<synchronous>, transform_indices = @transform_2, window_bounds = array<i64: 1, 128>}, {pipeline_mode = #tpu.pipeline_mode<synchronous>, transform_indices = @transform_3, window_bounds = array<i64: 1, 128>}, {transform_indices = @transform_4, window_bounds = array<i64: 32, 128>}, {transform_indices = @transform_5, window_bounds = array<i64: 32, 128>}]} {
    %c0_i32 = arith.constant 0 : i32
    %0 = arith.cmpi eq, %arg1, %c0_i32 : i32
    %1 = arith.extui %0 : i1 to i32
    %c0_i32_0 = arith.constant 0 : i32
    %2 = arith.cmpi ne, %1, %c0_i32_0 : i32
    scf.if %2 {
      %cst_11 = arith.constant 0.000000e+00 : f32
      %14 = vector.broadcast %cst_11 : f32 to vector<32x128xf32>
      %c0_12 = arith.constant 0 : index
      %c0_13 = arith.constant 0 : index
      %15 = vector.load %arg8[%c0_12, %c0_13] : memref<32x128xf32, #tpu.memory_space<vmem>>, vector<32x128xf32>
      tpu.vector_store %arg8[%c0_12, %c0_13], %14 {strides = array<i32>} : memref<32x128xf32, #tpu.memory_space<vmem>>, vector<32x128xf32>,
    } else {
    }
    %c0 = arith.constant 0 : index
    %c0_1 = arith.constant 0 : index
    %3 = vector.load %arg8[%c0, %c0_1] : memref<32x128xf32, #tpu.memory_space<vmem>>, vector<32x128xf32>
    %c0_2 = arith.constant 0 : index
    %c0_3 = arith.constant 0 : index
    %c0_4 = arith.constant 0 : index
    %4 = vector.load %arg2[%c0_2, %c0_3, %c0_4] : memref<1x32x128xbf16, #tpu.memory_space<vmem>>, vector<1x32x128xbf16>
    %5 = vector.shape_cast %4 : vector<1x32x128xbf16> to vector<32x128xbf16>
    %c0_5 = arith.constant 0 : index
    %c0_6 = arith.constant 0 : index
    %c0_7 = arith.constant 0 : index
    %6 = vector.load %arg3[%c0_5, %c0_6, %c0_7] : memref<1x128x128xbf16, #tpu.memory_space<vmem>>, vector<1x128x128xbf16>
    %7 = vector.shape_cast %6 : vector<1x128x128xbf16> to vector<128x128xbf16>
    %cst = arith.constant dense<0.000000e+00> : vector<32x128xf32>
    %8 = tpu.matmul %5, %7, %cst {dimension_numbers = #tpu.dot_dimension_numbers<[1], [0], [0], [1], [0, 0, 1, 1], [], []>} : vector<32x128xbf16>, vector<128x128xbf16>, vector<32x128xf32> -> vector<32x128xf32>
    %9 = arith.addf %3, %8 : vector<32x128xf32>
    %c0_8 = arith.constant 0 : index
    %c0_9 = arith.constant 0 : index
    %10 = vector.load %arg8[%c0_8, %c0_9] : memref<32x128xf32, #tpu.memory_space<vmem>>, vector<32x128xf32>
    tpu.vector_store %arg8[%c0_8, %c0_9], %9 {strides = array<i32>} : memref<32x128xf32, #tpu.memory_space<vmem>>, vector<32x128xf32>,
    %c8_i32 = arith.constant 8 : i32
    %11 = arith.cmpi eq, %arg1, %c8_i32 : i32
    %12 = arith.extui %11 : i1 to i32
    %c0_i32_10 = arith.constant 0 : i32
    %13 = arith.cmpi ne, %12, %c0_i32_10 : i32
    scf.if %13 {
      %c0_11 = arith.constant 0 : index
      %c0_12 = arith.constant 0 : index
      %14 = vector.load %arg8[%c0_11, %c0_12] : memref<32x128xf32, #tpu.memory_space<vmem>>, vector<32x128xf32>
      %c0_13 = arith.constant 0 : index
      %c0_14 = arith.constant 0 : index
      %15 = vector.load %arg4[%c0_13, %c0_14] : memref<1x128xf32, #tpu.memory_space<vmem>>, vector<1x128xf32>
      %16 = vector.broadcast %15 : vector<1x128xf32> to vector<32x128xf32>
      %17 = arith.mulf %14, %16 : vector<32x128xf32>
      %c0_15 = arith.constant 0 : index
      %c0_16 = arith.constant 0 : index
      %18 = vector.load %arg5[%c0_15, %c0_16] : memref<1x128xf32, #tpu.memory_space<vmem>>, vector<1x128xf32>
      %19 = vector.broadcast %18 : vector<1x128xf32> to vector<32x128xf32>
      %20 = arith.addf %17, %19 : vector<32x128xf32>
      %c0_17 = arith.constant 0 : index
      %c0_18 = arith.constant 0 : index
      %21 = vector.load %arg6[%c0_17, %c0_18] : memref<32x128xbf16, #tpu.memory_space<vmem>>, vector<32x128xbf16>
      %22 = arith.extf %21 : vector<32x128xbf16> to vector<32x128xf32>
      %23 = arith.addf %20, %22 : vector<32x128xf32>
      %cst_19 = arith.constant 0.000000e+00 : f32
      %24 = vector.broadcast %cst_19 : f32 to vector<32x128xf32>
      %25 = arith.maximumf %23, %24 : vector<32x128xf32>
      %26 = arith.truncf %25 : vector<32x128xf32> to vector<32x128xbf16>
      %c0_20 = arith.constant 0 : index
      %c0_21 = arith.constant 0 : index
      %27 = vector.load %arg7[%c0_20, %c0_21] : memref<32x128xbf16, #tpu.memory_space<vmem>>, vector<32x128xbf16>
      tpu.vector_store %arg7[%c0_20, %c0_21], %26 {strides = array<i32>} : memref<32x128xbf16, #tpu.memory_space<vmem>>, vector<32x128xbf16>,
    } else {
    }
    return
  }
  func.func @transform_0(%arg0: i32, %arg1: i32) -> (i32, i32, i32) {
    %c0_i32 = arith.constant 0 : i32
    %c0_i32_0 = arith.constant 0 : i32
    return %arg1, %arg0, %c0_i32 : i32, i32, i32
  }
  func.func @transform_1(%arg0: i32, %arg1: i32) -> (i32, i32, i32) {
    %c0_i32 = arith.constant 0 : i32
    %c0_i32_0 = arith.constant 0 : i32
    %c0_i32_1 = arith.constant 0 : i32
    return %arg1, %c0_i32, %c0_i32_0 : i32, i32, i32
  }
  func.func @transform_2(%arg0: i32, %arg1: i32) -> (i32, i32) {
    %c0_i32 = arith.constant 0 : i32
    %c0_i32_0 = arith.constant 0 : i32
    %c0_i32_1 = arith.constant 0 : i32
    return %c0_i32, %c0_i32_0 : i32, i32
  }
  func.func @transform_3(%arg0: i32, %arg1: i32) -> (i32, i32) {
    %c0_i32 = arith.constant 0 : i32
    %c0_i32_0 = arith.constant 0 : i32
    %c0_i32_1 = arith.constant 0 : i32
    return %c0_i32, %c0_i32_0 : i32, i32
  }
  func.func @transform_4(%arg0: i32, %arg1: i32) -> (i32, i32) {
    %c0_i32 = arith.constant 0 : i32
    %c0_i32_0 = arith.constant 0 : i32
    return %arg0, %c0_i32 : i32, i32
  }
  func.func @transform_5(%arg0: i32, %arg1: i32) -> (i32, i32) {
    %c0_i32 = arith.constant 0 : i32
    %c0_i32_0 = arith.constant 0 : i32
    return %arg0, %c0_i32 : i32, i32
  }
}

module attributes {stable_mosaic.version = 11 : i64} {
  func.func @_conv_tap_kernel(%arg0: i32, %arg1: i32, %arg2: memref<1x8x128xbf16, #tpu.memory_space<vmem>>, %arg3: memref<1x128x128xbf16, #tpu.memory_space<vmem>>, %arg4: memref<1x128xf32, #tpu.memory_space<vmem>>, %arg5: memref<1x128xf32, #tpu.memory_space<vmem>>, %arg6: memref<8x128xbf16, #tpu.memory_space<vmem>>, %arg7: memref<8x128xf32, #tpu.memory_space<vmem>>) attributes {dimension_semantics = [#tpu.dimension_semantics<parallel>, #tpu.dimension_semantics<arbitrary>], iteration_bounds = array<i64: 1, 1>, scalar_prefetch = 0 : i64, scratch_operands = 1 : i64, tpu.core_type = #tpu.core_type<tc>, window_params = [{transform_indices = @transform_0, window_bounds = array<i64: 1, 8, 128>}, {transform_indices = @transform_1, window_bounds = array<i64: 1, 128, 128>}, {pipeline_mode = #tpu.pipeline_mode<synchronous>, transform_indices = @transform_2, window_bounds = array<i64: 1, 128>}, {pipeline_mode = #tpu.pipeline_mode<synchronous>, transform_indices = @transform_3, window_bounds = array<i64: 1, 128>}, {transform_indices = @transform_4, window_bounds = array<i64: 8, 128>}]} {
    %c0_i32 = arith.constant 0 : i32
    %0 = arith.cmpi eq, %arg1, %c0_i32 : i32
    %1 = arith.extui %0 : i1 to i32
    %c0_i32_0 = arith.constant 0 : i32
    %2 = arith.cmpi ne, %1, %c0_i32_0 : i32
    scf.if %2 {
      %cst_12 = arith.constant 0.000000e+00 : f32
      %14 = vector.broadcast %cst_12 : f32 to vector<8x128xf32>
      %c0_13 = arith.constant 0 : index
      %c0_14 = arith.constant 0 : index
      %15 = vector.load %arg7[%c0_13, %c0_14] : memref<8x128xf32, #tpu.memory_space<vmem>>, vector<8x128xf32>
      tpu.vector_store %arg7[%c0_13, %c0_14], %14 {strides = array<i32>} : memref<8x128xf32, #tpu.memory_space<vmem>>, vector<8x128xf32>,
    } else {
    }
    %c0 = arith.constant 0 : index
    %c0_1 = arith.constant 0 : index
    %3 = vector.load %arg7[%c0, %c0_1] : memref<8x128xf32, #tpu.memory_space<vmem>>, vector<8x128xf32>
    %c0_2 = arith.constant 0 : index
    %c0_3 = arith.constant 0 : index
    %c0_4 = arith.constant 0 : index
    %4 = vector.load %arg2[%c0_2, %c0_3, %c0_4] : memref<1x8x128xbf16, #tpu.memory_space<vmem>>, vector<1x8x128xbf16>
    %5 = vector.shape_cast %4 : vector<1x8x128xbf16> to vector<8x128xbf16>
    %c0_5 = arith.constant 0 : index
    %c0_6 = arith.constant 0 : index
    %c0_7 = arith.constant 0 : index
    %6 = vector.load %arg3[%c0_5, %c0_6, %c0_7] : memref<1x128x128xbf16, #tpu.memory_space<vmem>>, vector<1x128x128xbf16>
    %7 = vector.shape_cast %6 : vector<1x128x128xbf16> to vector<128x128xbf16>
    %cst = arith.constant dense<0.000000e+00> : vector<8x128xf32>
    %8 = tpu.matmul %5, %7, %cst {dimension_numbers = #tpu.dot_dimension_numbers<[1], [0], [0], [1], [0, 0, 1, 1], [], []>} : vector<8x128xbf16>, vector<128x128xbf16>, vector<8x128xf32> -> vector<8x128xf32>
    %9 = arith.addf %3, %8 : vector<8x128xf32>
    %c0_8 = arith.constant 0 : index
    %c0_9 = arith.constant 0 : index
    %10 = vector.load %arg7[%c0_8, %c0_9] : memref<8x128xf32, #tpu.memory_space<vmem>>, vector<8x128xf32>
    tpu.vector_store %arg7[%c0_8, %c0_9], %9 {strides = array<i32>} : memref<8x128xf32, #tpu.memory_space<vmem>>, vector<8x128xf32>,
    %c0_i32_10 = arith.constant 0 : i32
    %11 = arith.cmpi eq, %arg1, %c0_i32_10 : i32
    %12 = arith.extui %11 : i1 to i32
    %c0_i32_11 = arith.constant 0 : i32
    %13 = arith.cmpi ne, %12, %c0_i32_11 : i32
    scf.if %13 {
      %c0_12 = arith.constant 0 : index
      %c0_13 = arith.constant 0 : index
      %14 = vector.load %arg7[%c0_12, %c0_13] : memref<8x128xf32, #tpu.memory_space<vmem>>, vector<8x128xf32>
      %c0_14 = arith.constant 0 : index
      %c0_15 = arith.constant 0 : index
      %15 = vector.load %arg4[%c0_14, %c0_15] : memref<1x128xf32, #tpu.memory_space<vmem>>, vector<1x128xf32>
      %16 = vector.broadcast %15 : vector<1x128xf32> to vector<8x128xf32>
      %17 = arith.mulf %14, %16 : vector<8x128xf32>
      %c0_16 = arith.constant 0 : index
      %c0_17 = arith.constant 0 : index
      %18 = vector.load %arg5[%c0_16, %c0_17] : memref<1x128xf32, #tpu.memory_space<vmem>>, vector<1x128xf32>
      %19 = vector.broadcast %18 : vector<1x128xf32> to vector<8x128xf32>
      %20 = arith.addf %17, %19 : vector<8x128xf32>
      %21 = arith.truncf %20 : vector<8x128xf32> to vector<8x128xbf16>
      %c0_18 = arith.constant 0 : index
      %c0_19 = arith.constant 0 : index
      %22 = vector.load %arg6[%c0_18, %c0_19] : memref<8x128xbf16, #tpu.memory_space<vmem>>, vector<8x128xbf16>
      tpu.vector_store %arg6[%c0_18, %c0_19], %21 {strides = array<i32>} : memref<8x128xbf16, #tpu.memory_space<vmem>>, vector<8x128xbf16>,
    } else {
    }
    return
  }
  func.func @transform_0(%arg0: i32, %arg1: i32) -> (i32, i32, i32) {
    %c0_i32 = arith.constant 0 : i32
    %c0_i32_0 = arith.constant 0 : i32
    return %arg1, %arg0, %c0_i32 : i32, i32, i32
  }
  func.func @transform_1(%arg0: i32, %arg1: i32) -> (i32, i32, i32) {
    %c0_i32 = arith.constant 0 : i32
    %c0_i32_0 = arith.constant 0 : i32
    %c0_i32_1 = arith.constant 0 : i32
    return %arg1, %c0_i32, %c0_i32_0 : i32, i32, i32
  }
  func.func @transform_2(%arg0: i32, %arg1: i32) -> (i32, i32) {
    %c0_i32 = arith.constant 0 : i32
    %c0_i32_0 = arith.constant 0 : i32
    %c0_i32_1 = arith.constant 0 : i32
    return %c0_i32, %c0_i32_0 : i32, i32
  }
  func.func @transform_3(%arg0: i32, %arg1: i32) -> (i32, i32) {
    %c0_i32 = arith.constant 0 : i32
    %c0_i32_0 = arith.constant 0 : i32
    %c0_i32_1 = arith.constant 0 : i32
    return %c0_i32, %c0_i32_0 : i32, i32
  }
  func.func @transform_4(%arg0: i32, %arg1: i32) -> (i32, i32) {
    %c0_i32 = arith.constant 0 : i32
    %c0_i32_0 = arith.constant 0 : i32
    return %arg0, %c0_i32 : i32, i32
  }
}

module attributes {stable_mosaic.version = 11 : i64} {
  func.func @_conv_tap_kernel(%arg0: i32, %arg1: i32, %arg2: memref<1x8x128xbf16, #tpu.memory_space<vmem>>, %arg3: memref<1x128x128xbf16, #tpu.memory_space<vmem>>, %arg4: memref<1x128xf32, #tpu.memory_space<vmem>>, %arg5: memref<1x128xf32, #tpu.memory_space<vmem>>, %arg6: memref<8x128xbf16, #tpu.memory_space<vmem>>, %arg7: memref<8x128xf32, #tpu.memory_space<vmem>>) attributes {dimension_semantics = [#tpu.dimension_semantics<parallel>, #tpu.dimension_semantics<arbitrary>], iteration_bounds = array<i64: 1, 9>, scalar_prefetch = 0 : i64, scratch_operands = 1 : i64, tpu.core_type = #tpu.core_type<tc>, window_params = [{transform_indices = @transform_0, window_bounds = array<i64: 1, 8, 128>}, {transform_indices = @transform_1, window_bounds = array<i64: 1, 128, 128>}, {pipeline_mode = #tpu.pipeline_mode<synchronous>, transform_indices = @transform_2, window_bounds = array<i64: 1, 128>}, {pipeline_mode = #tpu.pipeline_mode<synchronous>, transform_indices = @transform_3, window_bounds = array<i64: 1, 128>}, {transform_indices = @transform_4, window_bounds = array<i64: 8, 128>}]} {
    %c0_i32 = arith.constant 0 : i32
    %0 = arith.cmpi eq, %arg1, %c0_i32 : i32
    %1 = arith.extui %0 : i1 to i32
    %c0_i32_0 = arith.constant 0 : i32
    %2 = arith.cmpi ne, %1, %c0_i32_0 : i32
    scf.if %2 {
      %cst_11 = arith.constant 0.000000e+00 : f32
      %14 = vector.broadcast %cst_11 : f32 to vector<8x128xf32>
      %c0_12 = arith.constant 0 : index
      %c0_13 = arith.constant 0 : index
      %15 = vector.load %arg7[%c0_12, %c0_13] : memref<8x128xf32, #tpu.memory_space<vmem>>, vector<8x128xf32>
      tpu.vector_store %arg7[%c0_12, %c0_13], %14 {strides = array<i32>} : memref<8x128xf32, #tpu.memory_space<vmem>>, vector<8x128xf32>,
    } else {
    }
    %c0 = arith.constant 0 : index
    %c0_1 = arith.constant 0 : index
    %3 = vector.load %arg7[%c0, %c0_1] : memref<8x128xf32, #tpu.memory_space<vmem>>, vector<8x128xf32>
    %c0_2 = arith.constant 0 : index
    %c0_3 = arith.constant 0 : index
    %c0_4 = arith.constant 0 : index
    %4 = vector.load %arg2[%c0_2, %c0_3, %c0_4] : memref<1x8x128xbf16, #tpu.memory_space<vmem>>, vector<1x8x128xbf16>
    %5 = vector.shape_cast %4 : vector<1x8x128xbf16> to vector<8x128xbf16>
    %c0_5 = arith.constant 0 : index
    %c0_6 = arith.constant 0 : index
    %c0_7 = arith.constant 0 : index
    %6 = vector.load %arg3[%c0_5, %c0_6, %c0_7] : memref<1x128x128xbf16, #tpu.memory_space<vmem>>, vector<1x128x128xbf16>
    %7 = vector.shape_cast %6 : vector<1x128x128xbf16> to vector<128x128xbf16>
    %cst = arith.constant dense<0.000000e+00> : vector<8x128xf32>
    %8 = tpu.matmul %5, %7, %cst {dimension_numbers = #tpu.dot_dimension_numbers<[1], [0], [0], [1], [0, 0, 1, 1], [], []>} : vector<8x128xbf16>, vector<128x128xbf16>, vector<8x128xf32> -> vector<8x128xf32>
    %9 = arith.addf %3, %8 : vector<8x128xf32>
    %c0_8 = arith.constant 0 : index
    %c0_9 = arith.constant 0 : index
    %10 = vector.load %arg7[%c0_8, %c0_9] : memref<8x128xf32, #tpu.memory_space<vmem>>, vector<8x128xf32>
    tpu.vector_store %arg7[%c0_8, %c0_9], %9 {strides = array<i32>} : memref<8x128xf32, #tpu.memory_space<vmem>>, vector<8x128xf32>,
    %c8_i32 = arith.constant 8 : i32
    %11 = arith.cmpi eq, %arg1, %c8_i32 : i32
    %12 = arith.extui %11 : i1 to i32
    %c0_i32_10 = arith.constant 0 : i32
    %13 = arith.cmpi ne, %12, %c0_i32_10 : i32
    scf.if %13 {
      %c0_11 = arith.constant 0 : index
      %c0_12 = arith.constant 0 : index
      %14 = vector.load %arg7[%c0_11, %c0_12] : memref<8x128xf32, #tpu.memory_space<vmem>>, vector<8x128xf32>
      %c0_13 = arith.constant 0 : index
      %c0_14 = arith.constant 0 : index
      %15 = vector.load %arg4[%c0_13, %c0_14] : memref<1x128xf32, #tpu.memory_space<vmem>>, vector<1x128xf32>
      %16 = vector.broadcast %15 : vector<1x128xf32> to vector<8x128xf32>
      %17 = arith.mulf %14, %16 : vector<8x128xf32>
      %c0_15 = arith.constant 0 : index
      %c0_16 = arith.constant 0 : index
      %18 = vector.load %arg5[%c0_15, %c0_16] : memref<1x128xf32, #tpu.memory_space<vmem>>, vector<1x128xf32>
      %19 = vector.broadcast %18 : vector<1x128xf32> to vector<8x128xf32>
      %20 = arith.addf %17, %19 : vector<8x128xf32>
      %cst_17 = arith.constant 0.000000e+00 : f32
      %21 = vector.broadcast %cst_17 : f32 to vector<8x128xf32>
      %22 = arith.maximumf %20, %21 : vector<8x128xf32>
      %23 = arith.truncf %22 : vector<8x128xf32> to vector<8x128xbf16>
      %c0_18 = arith.constant 0 : index
      %c0_19 = arith.constant 0 : index
      %24 = vector.load %arg6[%c0_18, %c0_19] : memref<8x128xbf16, #tpu.memory_space<vmem>>, vector<8x128xbf16>
      tpu.vector_store %arg6[%c0_18, %c0_19], %23 {strides = array<i32>} : memref<8x128xbf16, #tpu.memory_space<vmem>>, vector<8x128xbf16>,
    } else {
    }
    return
  }
  func.func @transform_0(%arg0: i32, %arg1: i32) -> (i32, i32, i32) {
    %c0_i32 = arith.constant 0 : i32
    %c0_i32_0 = arith.constant 0 : i32
    return %arg1, %arg0, %c0_i32 : i32, i32, i32
  }
  func.func @transform_1(%arg0: i32, %arg1: i32) -> (i32, i32, i32) {
    %c0_i32 = arith.constant 0 : i32
    %c0_i32_0 = arith.constant 0 : i32
    %c0_i32_1 = arith.constant 0 : i32
    return %arg1, %c0_i32, %c0_i32_0 : i32, i32, i32
  }
  func.func @transform_2(%arg0: i32, %arg1: i32) -> (i32, i32) {
    %c0_i32 = arith.constant 0 : i32
    %c0_i32_0 = arith.constant 0 : i32
    %c0_i32_1 = arith.constant 0 : i32
    return %c0_i32, %c0_i32_0 : i32, i32
  }
  func.func @transform_3(%arg0: i32, %arg1: i32) -> (i32, i32) {
    %c0_i32 = arith.constant 0 : i32
    %c0_i32_0 = arith.constant 0 : i32
    %c0_i32_1 = arith.constant 0 : i32
    return %c0_i32, %c0_i32_0 : i32, i32
  }
  func.func @transform_4(%arg0: i32, %arg1: i32) -> (i32, i32) {
    %c0_i32 = arith.constant 0 : i32
    %c0_i32_0 = arith.constant 0 : i32
    return %arg0, %c0_i32 : i32, i32
  }
}

module attributes {stable_mosaic.version = 11 : i64} {
  func.func @_conv_tap_kernel(%arg0: i32, %arg1: i32, %arg2: memref<1x8x128xbf16, #tpu.memory_space<vmem>>, %arg3: memref<1x128x128xbf16, #tpu.memory_space<vmem>>, %arg4: memref<1x128xf32, #tpu.memory_space<vmem>>, %arg5: memref<1x128xf32, #tpu.memory_space<vmem>>, %arg6: memref<8x128xbf16, #tpu.memory_space<vmem>>, %arg7: memref<8x128xbf16, #tpu.memory_space<vmem>>, %arg8: memref<8x128xf32, #tpu.memory_space<vmem>>) attributes {dimension_semantics = [#tpu.dimension_semantics<parallel>, #tpu.dimension_semantics<arbitrary>], iteration_bounds = array<i64: 1, 9>, scalar_prefetch = 0 : i64, scratch_operands = 1 : i64, tpu.core_type = #tpu.core_type<tc>, window_params = [{transform_indices = @transform_0, window_bounds = array<i64: 1, 8, 128>}, {transform_indices = @transform_1, window_bounds = array<i64: 1, 128, 128>}, {pipeline_mode = #tpu.pipeline_mode<synchronous>, transform_indices = @transform_2, window_bounds = array<i64: 1, 128>}, {pipeline_mode = #tpu.pipeline_mode<synchronous>, transform_indices = @transform_3, window_bounds = array<i64: 1, 128>}, {transform_indices = @transform_4, window_bounds = array<i64: 8, 128>}, {transform_indices = @transform_5, window_bounds = array<i64: 8, 128>}]} {
    %c0_i32 = arith.constant 0 : i32
    %0 = arith.cmpi eq, %arg1, %c0_i32 : i32
    %1 = arith.extui %0 : i1 to i32
    %c0_i32_0 = arith.constant 0 : i32
    %2 = arith.cmpi ne, %1, %c0_i32_0 : i32
    scf.if %2 {
      %cst_11 = arith.constant 0.000000e+00 : f32
      %14 = vector.broadcast %cst_11 : f32 to vector<8x128xf32>
      %c0_12 = arith.constant 0 : index
      %c0_13 = arith.constant 0 : index
      %15 = vector.load %arg8[%c0_12, %c0_13] : memref<8x128xf32, #tpu.memory_space<vmem>>, vector<8x128xf32>
      tpu.vector_store %arg8[%c0_12, %c0_13], %14 {strides = array<i32>} : memref<8x128xf32, #tpu.memory_space<vmem>>, vector<8x128xf32>,
    } else {
    }
    %c0 = arith.constant 0 : index
    %c0_1 = arith.constant 0 : index
    %3 = vector.load %arg8[%c0, %c0_1] : memref<8x128xf32, #tpu.memory_space<vmem>>, vector<8x128xf32>
    %c0_2 = arith.constant 0 : index
    %c0_3 = arith.constant 0 : index
    %c0_4 = arith.constant 0 : index
    %4 = vector.load %arg2[%c0_2, %c0_3, %c0_4] : memref<1x8x128xbf16, #tpu.memory_space<vmem>>, vector<1x8x128xbf16>
    %5 = vector.shape_cast %4 : vector<1x8x128xbf16> to vector<8x128xbf16>
    %c0_5 = arith.constant 0 : index
    %c0_6 = arith.constant 0 : index
    %c0_7 = arith.constant 0 : index
    %6 = vector.load %arg3[%c0_5, %c0_6, %c0_7] : memref<1x128x128xbf16, #tpu.memory_space<vmem>>, vector<1x128x128xbf16>
    %7 = vector.shape_cast %6 : vector<1x128x128xbf16> to vector<128x128xbf16>
    %cst = arith.constant dense<0.000000e+00> : vector<8x128xf32>
    %8 = tpu.matmul %5, %7, %cst {dimension_numbers = #tpu.dot_dimension_numbers<[1], [0], [0], [1], [0, 0, 1, 1], [], []>} : vector<8x128xbf16>, vector<128x128xbf16>, vector<8x128xf32> -> vector<8x128xf32>
    %9 = arith.addf %3, %8 : vector<8x128xf32>
    %c0_8 = arith.constant 0 : index
    %c0_9 = arith.constant 0 : index
    %10 = vector.load %arg8[%c0_8, %c0_9] : memref<8x128xf32, #tpu.memory_space<vmem>>, vector<8x128xf32>
    tpu.vector_store %arg8[%c0_8, %c0_9], %9 {strides = array<i32>} : memref<8x128xf32, #tpu.memory_space<vmem>>, vector<8x128xf32>,
    %c8_i32 = arith.constant 8 : i32
    %11 = arith.cmpi eq, %arg1, %c8_i32 : i32
    %12 = arith.extui %11 : i1 to i32
    %c0_i32_10 = arith.constant 0 : i32
    %13 = arith.cmpi ne, %12, %c0_i32_10 : i32
    scf.if %13 {
      %c0_11 = arith.constant 0 : index
      %c0_12 = arith.constant 0 : index
      %14 = vector.load %arg8[%c0_11, %c0_12] : memref<8x128xf32, #tpu.memory_space<vmem>>, vector<8x128xf32>
      %c0_13 = arith.constant 0 : index
      %c0_14 = arith.constant 0 : index
      %15 = vector.load %arg4[%c0_13, %c0_14] : memref<1x128xf32, #tpu.memory_space<vmem>>, vector<1x128xf32>
      %16 = vector.broadcast %15 : vector<1x128xf32> to vector<8x128xf32>
      %17 = arith.mulf %14, %16 : vector<8x128xf32>
      %c0_15 = arith.constant 0 : index
      %c0_16 = arith.constant 0 : index
      %18 = vector.load %arg5[%c0_15, %c0_16] : memref<1x128xf32, #tpu.memory_space<vmem>>, vector<1x128xf32>
      %19 = vector.broadcast %18 : vector<1x128xf32> to vector<8x128xf32>
      %20 = arith.addf %17, %19 : vector<8x128xf32>
      %c0_17 = arith.constant 0 : index
      %c0_18 = arith.constant 0 : index
      %21 = vector.load %arg6[%c0_17, %c0_18] : memref<8x128xbf16, #tpu.memory_space<vmem>>, vector<8x128xbf16>
      %22 = arith.extf %21 : vector<8x128xbf16> to vector<8x128xf32>
      %23 = arith.addf %20, %22 : vector<8x128xf32>
      %cst_19 = arith.constant 0.000000e+00 : f32
      %24 = vector.broadcast %cst_19 : f32 to vector<8x128xf32>
      %25 = arith.maximumf %23, %24 : vector<8x128xf32>
      %26 = arith.truncf %25 : vector<8x128xf32> to vector<8x128xbf16>
      %c0_20 = arith.constant 0 : index
      %c0_21 = arith.constant 0 : index
      %27 = vector.load %arg7[%c0_20, %c0_21] : memref<8x128xbf16, #tpu.memory_space<vmem>>, vector<8x128xbf16>
      tpu.vector_store %arg7[%c0_20, %c0_21], %26 {strides = array<i32>} : memref<8x128xbf16, #tpu.memory_space<vmem>>, vector<8x128xbf16>,
    } else {
    }
    return
  }
  func.func @transform_0(%arg0: i32, %arg1: i32) -> (i32, i32, i32) {
    %c0_i32 = arith.constant 0 : i32
    %c0_i32_0 = arith.constant 0 : i32
    return %arg1, %arg0, %c0_i32 : i32, i32, i32
  }
  func.func @transform_1(%arg0: i32, %arg1: i32) -> (i32, i32, i32) {
    %c0_i32 = arith.constant 0 : i32
    %c0_i32_0 = arith.constant 0 : i32
    %c0_i32_1 = arith.constant 0 : i32
    return %arg1, %c0_i32, %c0_i32_0 : i32, i32, i32
  }
  func.func @transform_2(%arg0: i32, %arg1: i32) -> (i32, i32) {
    %c0_i32 = arith.constant 0 : i32
    %c0_i32_0 = arith.constant 0 : i32
    %c0_i32_1 = arith.constant 0 : i32
    return %c0_i32, %c0_i32_0 : i32, i32
  }
  func.func @transform_3(%arg0: i32, %arg1: i32) -> (i32, i32) {
    %c0_i32 = arith.constant 0 : i32
    %c0_i32_0 = arith.constant 0 : i32
    %c0_i32_1 = arith.constant 0 : i32
    return %c0_i32, %c0_i32_0 : i32, i32
  }
  func.func @transform_4(%arg0: i32, %arg1: i32) -> (i32, i32) {
    %c0_i32 = arith.constant 0 : i32
    %c0_i32_0 = arith.constant 0 : i32
    return %arg0, %c0_i32 : i32, i32
  }
  func.func @transform_5(%arg0: i32, %arg1: i32) -> (i32, i32) {
    %c0_i32 = arith.constant 0 : i32
    %c0_i32_0 = arith.constant 0 : i32
    return %arg0, %c0_i32 : i32, i32
  }
}

module attributes {stable_mosaic.version = 11 : i64} {
  func.func @_avgpool_fc_kernel(%arg0: i32, %arg1: memref<2x4x128xbf16, #tpu.memory_space<vmem>>, %arg2: memref<128x128xbf16, #tpu.memory_space<vmem>>, %arg3: memref<1x128xf32, #tpu.memory_space<vmem>>, %arg4: memref<2x128xf32, #tpu.memory_space<vmem>>) attributes {dimension_semantics = [#tpu.dimension_semantics<arbitrary>], iteration_bounds = array<i64: 1>, scalar_prefetch = 0 : i64, scratch_operands = 0 : i64, tpu.core_type = #tpu.core_type<tc>, window_params = [{pipeline_mode = #tpu.pipeline_mode<synchronous>, transform_indices = @transform_0, window_bounds = array<i64: 2, 4, 128>}, {pipeline_mode = #tpu.pipeline_mode<synchronous>, transform_indices = @transform_1, window_bounds = array<i64: 128, 128>}, {pipeline_mode = #tpu.pipeline_mode<synchronous>, transform_indices = @transform_2, window_bounds = array<i64: 1, 128>}, {pipeline_mode = #tpu.pipeline_mode<synchronous>, transform_indices = @transform_3, window_bounds = array<i64: 2, 128>}]} {
    %c0 = arith.constant 0 : index
    %c0_0 = arith.constant 0 : index
    %c0_1 = arith.constant 0 : index
    %0 = vector.load %arg1[%c0, %c0_0, %c0_1] : memref<2x4x128xbf16, #tpu.memory_space<vmem>>, vector<2x4x128xbf16>
    %1 = arith.extf %0 : vector<2x4x128xbf16> to vector<2x4x128xf32>
    %cst = arith.constant dense<0.000000e+00> : vector<2x128xf32>
    %2 = vector.multi_reduction <add>, %1, %cst [1] : vector<2x4x128xf32> to vector<2x128xf32>
    %cst_2 = arith.constant 2.500000e-01 : f32
    %3 = vector.broadcast %cst_2 : f32 to vector<2x128xf32>
    %4 = arith.mulf %2, %3 : vector<2x128xf32>
    %5 = arith.truncf %4 : vector<2x128xf32> to vector<2x128xbf16>
    %c0_3 = arith.constant 0 : index
    %c0_4 = arith.constant 0 : index
    %6 = vector.load %arg2[%c0_3, %c0_4] : memref<128x128xbf16, #tpu.memory_space<vmem>>, vector<128x128xbf16>
    %cst_5 = arith.constant dense<0.000000e+00> : vector<2x128xf32>
    %7 = tpu.matmul %5, %6, %cst_5 {dimension_numbers = #tpu.dot_dimension_numbers<[1], [0], [0], [1], [0, 0, 1, 1], [], []>} : vector<2x128xbf16>, vector<128x128xbf16>, vector<2x128xf32> -> vector<2x128xf32>
    %c0_6 = arith.constant 0 : index
    %c0_7 = arith.constant 0 : index
    %8 = vector.load %arg3[%c0_6, %c0_7] : memref<1x128xf32, #tpu.memory_space<vmem>>, vector<1x128xf32>
    %9 = vector.broadcast %8 : vector<1x128xf32> to vector<2x128xf32>
    %10 = arith.addf %7, %9 : vector<2x128xf32>
    %c0_8 = arith.constant 0 : index
    %c0_9 = arith.constant 0 : index
    %11 = vector.load %arg4[%c0_8, %c0_9] : memref<2x128xf32, #tpu.memory_space<vmem>>, vector<2x128xf32>
    tpu.vector_store %arg4[%c0_8, %c0_9], %10 {strides = array<i32>} : memref<2x128xf32, #tpu.memory_space<vmem>>, vector<2x128xf32>,
    return
  }
  func.func @transform_0(%arg0: i32) -> (i32, i32, i32) {
    %c0_i32 = arith.constant 0 : i32
    %c0_i32_0 = arith.constant 0 : i32
    %c0_i32_1 = arith.constant 0 : i32
    %c0_i32_2 = arith.constant 0 : i32
    return %c0_i32, %c0_i32_0, %c0_i32_1 : i32, i32, i32
  }
  func.func @transform_1(%arg0: i32) -> (i32, i32) {
    %c0_i32 = arith.constant 0 : i32
    %c0_i32_0 = arith.constant 0 : i32
    %c0_i32_1 = arith.constant 0 : i32
    return %c0_i32, %c0_i32_0 : i32, i32
  }
  func.func @transform_2(%arg0: i32) -> (i32, i32) {
    %c0_i32 = arith.constant 0 : i32
    %c0_i32_0 = arith.constant 0 : i32
    %c0_i32_1 = arith.constant 0 : i32
    return %c0_i32, %c0_i32_0 : i32, i32
  }
  func.func @transform_3(%arg0: i32) -> (i32, i32) {
    %c0_i32 = arith.constant 0 : i32
    %c0_i32_0 = arith.constant 0 : i32
    %c0_i32_1 = arith.constant 0 : i32
    return %c0_i32, %c0_i32_0 : i32, i32
  }
}

</mosaic_0001>

<llo_original>
// kernel: forward.8
$region0: #{forward.8}
  #allocation0 [shape = 'u32[]', space=smem, size = 0x4, offset = 0x4, fixed_abs, tag = 'smem constant byte address 0x4 - core index']
  #allocation1 [shape = 'u32[72,128]{1,0:T(1,128)}', space=vmem, size = 0x9000, scoped, tag = 'internal scratch']
  #allocation2 [shape = 'f32[128,128]{1,0:T(8,128)}', space=vmem, size = 0x10000, scoped, tag = 'scratch operand']
  %s0 = inlined_call_operand.vmem [shape: bf16[49,128,128], index: 0, kind: input, shape index: {}]
  %s1 = inlined_call_operand.vmem [shape: bf16[49,128,128], index: 1, kind: input, shape index: {}]
  %s2 = inlined_call_operand.vmem [shape: f32[1,128], index: 2, kind: input, shape index: {}]
  %s3 = inlined_call_operand.vmem [shape: f32[1,128], index: 3, kind: input, shape index: {}]
  %s4 = inlined_call_operand.vmem [shape: bf16[128,128], index: 4, kind: output, shape index: {}]
  %s5 = sld [smem:[#allocation0]]
  $region57: #{forward.8} parent=0
    _
  %s7 = ssub.s32 1, %s5
  %s8 = scalar_select 0, %s7, %s5
  loop: start=0, step=1, limit=51
  $region2: #{forward.8} parent=0 // loop_pre_header
    _
  $region3: #{forward.8} parent=0 // loop_header
    %s10 = sphi 0, %s14
    %p11 = scmp.ge.s32.totalorder %s10, 51
    %s17 = sphi 0, %s29
    %s18 = sphi 0, %s25
    %s19 = sphi 0, %s17
    %s20 = sphi 0, %s18
    %s21 = sphi 0, %s19
    %s22 = sphi 0, %s20
    %s34 = sphi 0, %s36
    %s37 = sphi 0, %s34
    %s38 = sphi 0, %s37
    %s54 = sphi 0, %s38
    %s60 = sphi 0, %s62
    %s63 = sphi 0, %s60
    %s64 = sphi 0, %s63
    %s80 = sphi 0, %s64
    %s84 = sphi 0, %s84
    %s86 = sphi 0, %s84
    %s87 = sphi 0, %s86
    %s101 = sphi 0, %s87
    %s105 = sphi 0, %s105
    %s107 = sphi 0, %s105
    %s108 = sphi 0, %s107
    %s122 = sphi 0, %s108
    %s128 = sphi 0, %s130
    %s131 = sphi 0, %s128
    %s132 = sphi 0, %s131
    %s148 = sphi 0, %s132
  $region4: #{forward.8} parent=0 // loop_header_branch
    %13 = sbr.rel (%p11) target = $region8
  $region5: #{forward.8} parent=0 // loop_body
    %s15 = ssub.s32 %s10, 1
    %s16 = ssub.s32 %s10, 2
    %s23 = sadd.s32 1, %s18
    %p24 = scmp.ge.s32.totalorder %s23, 49
    %s25 = scalar_select %p24, 0, %s23
    %s26 = sadd.s32 1, %s17
    %s27 = scalar_select %p24, %s26, %s17
    %p28 = scmp.ge.s32.totalorder %s27, 1
    %s29 = scalar_select %p28, 0, %s27
    %s30 = ssub.s32 %s18, %s25
    %s31 = ssub.s32 %s17, %s29
    %s32 = sor.u32 %s30, %s31
    %p33 = scmp.eq.s32.totalorder %s32, 0
    %s35 = sadd.s32 %s34, 1
    %s36 = scalar_select %p33, %s34, %s35
    %p39 = pneg %p33
    %p40 = scmp.eq.s32.totalorder %s10, 48
    %p41 = por %p39, %p40
    %p42 = scmp.ne.s32.totalorder %s34, %s37
    %p43 = scmp.eq.s32.totalorder %s10, 0
    %p44 = por %p42, %p43
    %p45 = scmp.ne.s32.totalorder %s34, %s37
    %p46 = scmp.eq.s32.totalorder %s15, 48
    %p47 = por %p45, %p46
    %p48 = scmp.ne.s32.totalorder %s37, %s38
    %p49 = scmp.eq.s32.totalorder %s15, 0
    %p50 = por %p48, %p49
    %p51 = scmp.ne.s32.totalorder %s37, %s38
    %p52 = scmp.eq.s32.totalorder %s16, 48
    %p53 = por %p51, %p52
    %p55 = scmp.ne.s32.totalorder %s38, %s54
    %p56 = scmp.eq.s32.totalorder %s16, 0
    %p57 = por %p55, %p56
    %s58 = ssub.s32 %s18, %s25
    %p59 = scmp.eq.s32.totalorder %s58, 0
    %s61 = sadd.s32 %s60, 1
    %s62 = scalar_select %p59, %s60, %s61
    %p65 = pneg %p59
    %p66 = scmp.eq.s32.totalorder %s10, 48
    %p67 = por %p65, %p66
    %p68 = scmp.ne.s32.totalorder %s60, %s63
    %p69 = scmp.eq.s32.totalorder %s10, 0
    %p70 = por %p68, %p69
    %p71 = scmp.ne.s32.totalorder %s60, %s63
    %p72 = scmp.eq.s32.totalorder %s15, 48
    %p73 = por %p71, %p72
    %p74 = scmp.ne.s32.totalorder %s63, %s64
    %p75 = scmp.eq.s32.totalorder %s15, 0
    %p76 = por %p74, %p75
    %p77 = scmp.ne.s32.totalorder %s63, %s64
    %p78 = scmp.eq.s32.totalorder %s16, 48
    %p79 = por %p77, %p78
    %p81 = scmp.ne.s32.totalorder %s64, %s80
    %p82 = scmp.eq.s32.totalorder %s16, 0
    %p83 = por %p81, %p82
    %s85 = sadd.s32 %s84, 1
    %p88 = scmp.eq.s32.totalorder %s10, 48
    %p89 = scmp.ne.s32.totalorder %s84, %s86
    %p90 = scmp.eq.s32.totalorder %s10, 0
    %p91 = por %p89, %p90
    %p92 = scmp.ne.s32.totalorder %s84, %s86
    %p93 = scmp.eq.s32.totalorder %s15, 48
    %p94 = por %p92, %p93
    %p95 = scmp.ne.s32.totalorder %s86, %s87
    %p96 = scmp.eq.s32.totalorder %s15, 0
    %p97 = por %p95, %p96
    %p98 = scmp.ne.s32.totalorder %s86, %s87
    %p99 = scmp.eq.s32.totalorder %s16, 48
    %p100 = por %p98, %p99
    %p102 = scmp.ne.s32.totalorder %s87, %s101
    %p103 = scmp.eq.s32.totalorder %s16, 0
    %p104 = por %p102, %p103
    %s106 = sadd.s32 %s105, 1
    %p109 = scmp.eq.s32.totalorder %s10, 48
    %p110 = scmp.ne.s32.totalorder %s105, %s107
    %p111 = scmp.eq.s32.totalorder %s10, 0
    %p112 = por %p110, %p111
    %p113 = scmp.ne.s32.totalorder %s105, %s107
    %p114 = scmp.eq.s32.totalorder %s15, 48
    %p115 = por %p113, %p114
    %p116 = scmp.ne.s32.totalorder %s107, %s108
    %p117 = scmp.eq.s32.totalorder %s15, 0
    %p118 = por %p116, %p117
    %p119 = scmp.ne.s32.totalorder %s107, %s108
    %p120 = scmp.eq.s32.totalorder %s16, 48
    %p121 = por %p119, %p120
    %p123 = scmp.ne.s32.totalorder %s108, %s122
    %p124 = scmp.eq.s32.totalorder %s16, 0
    %p125 = por %p123, %p124
    %s126 = ssub.s32 %s17, %s29
    %p127 = scmp.eq.s32.totalorder %s126, 0
    %s129 = sadd.s32 %s128, 1
    %s130 = scalar_select %p127, %s128, %s129
    %p133 = pneg %p127
    %p134 = scmp.eq.s32.totalorder %s10, 48
    %p135 = por %p133, %p134
    %p136 = scmp.ne.s32.totalorder %s128, %s131
    %p137 = scmp.eq.s32.totalorder %s10, 0
    %p138 = por %p136, %p137
    %p139 = scmp.ne.s32.totalorder %s128, %s131
    %p140 = scmp.eq.s32.totalorder %s15, 48
    %p141 = por %p139, %p140
    %p142 = scmp.ne.s32.totalorder %s131, %s132
    %p143 = scmp.eq.s32.totalorder %s15, 0
    %p144 = por %p142, %p143
    %p145 = scmp.ne.s32.totalorder %s131, %s132
    %p146 = scmp.eq.s32.totalorder %s16, 48
    %p147 = por %p145, %p146
    %p149 = scmp.ne.s32.totalorder %s132, %s148
    %p150 = scmp.eq.s32.totalorder %s16, 0
    %p151 = por %p149, %p150
    %p152 = scmp.le.s32.totalorder 1, %s10
    %p153 = scmp.lt.s32.totalorder %s10, 50
    %p154 = pnand %p152, %p153
    %p155 = pneg %p154
    // Predicated region
    $region9: #{forward.8} parent=5 // pred_check
      _
    $region10: #{forward.8} parent=5 // pred_check_branch
      %157 = sbr.rel (%p154) target = $region12
    $region11: #{forward.8} parent=5 // pred_region
      %s158 = ssub.s32 %s10, 1
      // Predicated region
      $region13: #{forward.8} parent=11 // pred_check
        %p159 = pneg %p97
      $region14: #{forward.8} parent=11 // pred_check_branch
        %161 = sbr.rel (%p159) target = $region16
      $region15: #{forward.8} parent=11 // pred_region
        _
      $region16: #{forward.8} parent=11 // pred_fallthru
        _
      // Predicated region
      $region17: #{forward.8} parent=11 // pred_check
        %p162 = pneg %p118
      $region18: #{forward.8} parent=11 // pred_check_branch
        %164 = sbr.rel (%p162) target = $region20
      $region19: #{forward.8} parent=11 // pred_region
        _
      $region20: #{forward.8} parent=11 // pred_fallthru
        _
    $region12: #{forward.8} parent=5 // pred_fallthru
      _
    %p165 = scmp.lt.s32.totalorder %s10, 49
    // Predicated region
    $region21: #{forward.8} parent=5 // pred_check
      %p166 = pneg %p165
    $region22: #{forward.8} parent=5 // pred_check_branch
      %168 = sbr.rel (%p166) target = $region24
    $region23: #{forward.8} parent=5 // pred_region
      // Predicated region
      $region25: #{forward.8} parent=23 // pred_check
        %p169 = pneg %p44
      $region26: #{forward.8} parent=23 // pred_check_branch
        %171 = sbr.rel (%p169) target = $region28
      $region27: #{forward.8} parent=23 // pred_region
        %s172 = smul.u32 16, %s17
        %p173 = scmp.lt.s32.totalorder %s18, 48
        %s174 = scalar_select %p173, %s18, 48
        %p175 = scmp.lt.s32.totalorder %s172, 15
        %s176 = scalar_select %p175, %s172, 15
        %s177 = smul.addr %s174, 16
        %s178 = sadd.s32 %s176, %s177
        %s179 = smul.addr %s178, 4
        %s180 = scalar_lea.vmem %s0, %s179
        %s181 = smul.u32 16, %s17
      $region28: #{forward.8} parent=23 // pred_fallthru
        _
      // Predicated region
      $region29: #{forward.8} parent=23 // pred_check
        %p182 = pneg %p70
      $region30: #{forward.8} parent=23 // pred_check_branch
        %184 = sbr.rel (%p182) target = $region32
      $region31: #{forward.8} parent=23 // pred_region
        %p185 = scmp.lt.s32.totalorder %s18, 48
        %s186 = scalar_select %p185, %s18, 48
        %s187 = smul.addr %s186, 16
        %s188 = smul.addr %s187, 4
        %s189 = scalar_lea.vmem %s1, %s188
      $region32: #{forward.8} parent=23 // pred_fallthru
        _
    $region24: #{forward.8} parent=5 // pred_fallthru
      _
    %p190 = scmp.le.s32.totalorder 1, %s10
    %p191 = scmp.lt.s32.totalorder %s10, 50
    %p192 = pnand %p190, %p191
    %p193 = pneg %p192
    // Predicated region
    $region33: #{forward.8} parent=5 // pred_check
      _
    $region34: #{forward.8} parent=5 // pred_check_branch
      %195 = sbr.rel (%p192) target = $region36
    $region35: #{forward.8} parent=5 // pred_region
      %s196 = ssub.s32 %s10, 1
      %s197 = smul.u32 16, %s19
      %p198 = scmp.lt.s32.totalorder %s20, 48
      %s199 = scalar_select %p198, %s20, 48
      %p200 = scmp.lt.s32.totalorder %s197, 15
      %s201 = scalar_select %p200, %s197, 15
      %s202 = smul.addr %s199, 16
      %s203 = sadd.s32 %s201, %s202
      %s204 = smul.addr %s203, 4
      %s205 = scalar_lea.vmem %s0, %s204
      %p206 = pneg %p50
      %p207 = pneg %p47
      %p208 = scmp.lt.s32.totalorder %s20, 48
      %s209 = scalar_select %p208, %s20, 48
      %s210 = smul.addr %s209, 16
      %s211 = smul.addr %s210, 4
      %s212 = scalar_lea.vmem %s1, %s211
      %p213 = pneg %p76
      %p214 = pneg %p73
      %p215 = pneg %p97
      %p216 = pneg %p94
      %p217 = pneg %p118
      %p218 = pneg %p115
      %p219 = pneg %p144
      %p220 = pneg %p141
      %s221 = smul.u32 16, %s19
      %p222 = scmp.lt.s32.totalorder %s221, 15
      %s223 = scalar_select %p222, %s221, 15
      %s224 = smul.addr %s223, 4
      %s225 = scalar_lea.vmem %s4, %s224
      %s226 = smul.u32 16, %s19
      %p227 = scmp.lt.s32.totalorder %s20, 48
      %s228 = scalar_select %p227, %s20, 48
      %p229 = scmp.lt.s32.totalorder %s226, 15
      %s230 = scalar_select %p229, %s226, 15
      %s231 = smul.addr %s228, 16
      %s232 = sadd.s32 %s230, %s231
      %s233 = smul.addr %s232, 4
      %s234 = scalar_lea.vmem %s0, %s233
      %s235 = smul.u32 16, %s19
      %p236 = scmp.lt.s32.totalorder %s20, 48
      %s237 = scalar_select %p236, %s20, 48
      %s238 = smul.addr %s237, 16
      %s239 = smul.addr %s238, 4
      %s240 = scalar_lea.vmem %s1, %s239
      %s241 = smul.u32 16, %s19
      %p242 = scmp.lt.s32.totalorder %s241, 15
      %s243 = scalar_select %p242, %s241, 15
      %s244 = smul.addr %s243, 4
      %s245 = scalar_lea.vmem %s4, %s244
      %s246 = smul.u32 16, %s19
      %p247 = scmp.eq.s32.totalorder %s20, 0
      // Predicated region
      $region37: #{forward.8} parent=35 // pred_check
        %p248 = pneg %p247
      $region38: #{forward.8} parent=35 // pred_check_branch
        %250 = sbr.rel (%p248) target = $region40
      $region39: #{forward.8} parent=35 // pred_region
        %251 = vst [vmem:[#allocation2] sm:$0xff] 0.0
        %252 = vst [vmem:[#allocation2 + $0x8] sm:$0xff] 0.0
        %253 = vst [vmem:[#allocation2 + $0x10] sm:$0xff] 0.0
        %254 = vst [vmem:[#allocation2 + $0x18] sm:$0xff] 0.0
        %255 = vst [vmem:[#allocation2 + $0x20] sm:$0xff] 0.0
        %256 = vst [vmem:[#allocation2 + $0x28] sm:$0xff] 0.0
        %257 = vst [vmem:[#allocation2 + $0x30] sm:$0xff] 0.0
        %258 = vst [vmem:[#allocation2 + $0x38] sm:$0xff] 0.0
        %259 = vst [vmem:[#allocation2 + $0x40] sm:$0xff] 0.0
        %260 = vst [vmem:[#allocation2 + $0x48] sm:$0xff] 0.0
        %261 = vst [vmem:[#allocation2 + $0x50] sm:$0xff] 0.0
        %262 = vst [vmem:[#allocation2 + $0x58] sm:$0xff] 0.0
        %263 = vst [vmem:[#allocation2 + $0x60] sm:$0xff] 0.0
        %264 = vst [vmem:[#allocation2 + $0x68] sm:$0xff] 0.0
        %265 = vst [vmem:[#allocation2 + $0x70] sm:$0xff] 0.0
        %266 = vst [vmem:[#allocation2 + $0x78] sm:$0xff] 0.0
      $region40: #{forward.8} parent=35 // pred_fallthru
        _
      %v267 = vld [vmem:[#allocation2] sm:$0xff]
      %v268 = vld [vmem:[#allocation2 + $0x8] sm:$0xff]
      %v269 = vld [vmem:[#allocation2 + $0x10] sm:$0xff]
      %v270 = vld [vmem:[#allocation2 + $0x18] sm:$0xff]
      %v271 = vld [vmem:[#allocation2 + $0x20] sm:$0xff]
      %v272 = vld [vmem:[#allocation2 + $0x28] sm:$0xff]
      %v273 = vld [vmem:[#allocation2 + $0x30] sm:$0xff]
      %v274 = vld [vmem:[#allocation2 + $0x38] sm:$0xff]
      %v275 = vld [vmem:[#allocation2 + $0x40] sm:$0xff]
      %v276 = vld [vmem:[#allocation2 + $0x48] sm:$0xff]
      %v277 = vld [vmem:[#allocation2 + $0x50] sm:$0xff]
      %v278 = vld [vmem:[#allocation2 + $0x58] sm:$0xff]
      %v279 = vld [vmem:[#allocation2 + $0x60] sm:$0xff]
      %v280 = vld [vmem:[#allocation2 + $0x68] sm:$0xff]
      %v281 = vld [vmem:[#allocation2 + $0x70] sm:$0xff]
      %v282 = vld [vmem:[#allocation2 + $0x78] sm:$0xff]
      %v283 = vld [vmem:[%s234] sm:$0xf]
      %v284 = vld [vmem:[%s234 + $0x4] sm:$0xf]
      %v285 = vld [vmem:[%s234 + $0x8] sm:$0xf]
      %v286 = vld [vmem:[%s234 + $0xc] sm:$0xf]
      %v287 = vld [vmem:[%s234 + $0x10] sm:$0xf]
      %v288 = vld [vmem:[%s234 + $0x14] sm:$0xf]
      %v289 = vld [vmem:[%s234 + $0x18] sm:$0xf]
      %v290 = vld [vmem:[%s234 + $0x1c] sm:$0xf]
      %v291 = vld [vmem:[%s234 + $0x20] sm:$0xf]
      %v292 = vld [vmem:[%s234 + $0x24] sm:$0xf]
      %v293 = vld [vmem:[%s234 + $0x28] sm:$0xf]
      %v294 = vld [vmem:[%s234 + $0x2c] sm:$0xf]
      %v295 = vld [vmem:[%s234 + $0x30] sm:$0xf]
      %v296 = vld [vmem:[%s234 + $0x34] sm:$0xf]
      %v297 = vld [vmem:[%s234 + $0x38] sm:$0xf]
      %v298 = vld [vmem:[%s234 + $0x3c] sm:$0xf]
      %v299 = vld [vmem:[%s240] sm:$0xf]
      %v300 = vld [vmem:[%s240 + $0x4] sm:$0xf]
      %v301 = vld [vmem:[%s240 + $0x8] sm:$0xf]
      %v302 = vld [vmem:[%s240 + $0xc] sm:$0xf]
      %v303 = vld [vmem:[%s240 + $0x10] sm:$0xf]
      %v304 = vld [vmem:[%s240 + $0x14] sm:$0xf]
      %v305 = vld [vmem:[%s240 + $0x18] sm:$0xf]
      %v306 = vld [vmem:[%s240 + $0x1c] sm:$0xf]
      %v307 = vld [vmem:[%s240 + $0x20] sm:$0xf]
      %v308 = vld [vmem:[%s240 + $0x24] sm:$0xf]
      %v309 = vld [vmem:[%s240 + $0x28] sm:$0xf]
      %v310 = vld [vmem:[%s240 + $0x2c] sm:$0xf]
      %v311 = vld [vmem:[%s240 + $0x30] sm:$0xf]
      %v312 = vld [vmem:[%s240 + $0x34] sm:$0xf]
      %v313 = vld [vmem:[%s240 + $0x38] sm:$0xf]
      %v314 = vld [vmem:[%s240 + $0x3c] sm:$0xf]
      %v331 = vunpack.c.l.b16 %v283
      %v332 = vunpack.c.l.b16 %v284
      %v333 = vunpack.c.l.b16 %v285
      %v334 = vunpack.c.l.b16 %v286
      %v335 = vunpack.c.l.b16 %v287
      %v336 = vunpack.c.l.b16 %v288
      %v337 = vunpack.c.l.b16 %v289
      %v338 = vunpack.c.l.b16 %v290
      %v339 = vunpack.c.l.b16 %v291
      %v340 = vunpack.c.l.b16 %v292
      %v341 = vunpack.c.l.b16 %v293
      %v342 = vunpack.c.l.b16 %v294
      %v343 = vunpack.c.l.b16 %v295
      %v344 = vunpack.c.l.b16 %v296
      %v345 = vunpack.c.l.b16 %v297
      %v346 = vunpack.c.l.b16 %v298
      %v347 = vpack.c.b16 %v332, %v331
      %v348 = vpack.c.b16 %v334, %v333
      %v349 = vpack.c.b16 %v336, %v335
      %v350 = vpack.c.b16 %v338, %v337
      %v351 = vpack.c.b16 %v340, %v339
      %v352 = vpack.c.b16 %v342, %v341
      %v353 = vpack.c.b16 %v344, %v343
      %v354 = vpack.c.b16 %v346, %v345
      %v379 = vunpack.c.l.b16 %v299
      %v380 = vunpack.c.l.b16 %v300
      %v381 = vunpack.c.l.b16 %v301
      %v382 = vunpack.c.l.b16 %v302
      %v383 = vunpack.c.l.b16 %v303
      %v384 = vunpack.c.l.b16 %v304
      %v385 = vunpack.c.l.b16 %v305
      %v386 = vunpack.c.l.b16 %v306
      %v387 = vunpack.c.l.b16 %v307
      %v388 = vunpack.c.l.b16 %v308
      %v389 = vunpack.c.l.b16 %v309
      %v390 = vunpack.c.l.b16 %v310
      %v391 = vunpack.c.l.b16 %v311
      %v392 = vunpack.c.l.b16 %v312
      %v393 = vunpack.c.l.b16 %v313
      %v394 = vunpack.c.l.b16 %v314
      %v395 = vpack.c.b16 %v380, %v379
      %v396 = vpack.c.b16 %v382, %v381
      %v397 = vpack.c.b16 %v384, %v383
      %v398 = vpack.c.b16 %v386, %v385
      %v399 = vpack.c.b16 %v388, %v387
      %v400 = vpack.c.b16 %v390, %v389
      %v401 = vpack.c.b16 %v392, %v391
      %v402 = vpack.c.b16 %v394, %v393
      %411 = vmatpush.bf16.msra.mxu0 %v402
      %412 = vmatpush.bf16.msra.mxu0 %v401
      %413 = vmatpush.bf16.msra.mxu0 %v400
      %414 = vmatpush.bf16.msra.mxu0 %v399
      %415 = vmatpush.bf16.msra.mxu0 %v398
      %416 = vmatpush.bf16.msra.mxu0 %v397
      %417 = vmatpush.bf16.msra.mxu0 %v396
      %418 = vmatpush.bf16.msra.mxu0 %v395
      %419 = vmatmul.bf16.gmra.mxu0 %v347
      %v420 = vpop.f32.mrf.mxu0
      %v421 = vadd.f32 0.0, %v420
      %v422 = vpop.f32.mrf.mxu0
      %v423 = vadd.f32 0.0, %v422
      %424 = vmatmul.bf16.gmra.mxu0 %v348
      %v425 = vpop.f32.mrf.mxu0
      %v426 = vadd.f32 0.0, %v425
      %v427 = vpop.f32.mrf.mxu0
      %v428 = vadd.f32 0.0, %v427
      %429 = vmatmul.bf16.gmra.mxu0 %v349
      %v430 = vpop.f32.mrf.mxu0
      %v431 = vadd.f32 0.0, %v430
      %v432 = vpop.f32.mrf.mxu0
      %v433 = vadd.f32 0.0, %v432
      %434 = vmatmul.bf16.gmra.mxu0 %v350
      %v435 = vpop.f32.mrf.mxu0
      %v436 = vadd.f32 0.0, %v435
      %v437 = vpop.f32.mrf.mxu0
      %v438 = vadd.f32 0.0, %v437
      %439 = vmatmul.bf16.gmra.mxu0 %v351
      %v440 = vpop.f32.mrf.mxu0
      %v441 = vadd.f32 0.0, %v440
      %v442 = vpop.f32.mrf.mxu0
      %v443 = vadd.f32 0.0, %v442
      %444 = vmatmul.bf16.gmra.mxu0 %v352
      %v445 = vpop.f32.mrf.mxu0
      %v446 = vadd.f32 0.0, %v445
      %v447 = vpop.f32.mrf.mxu0
      %v448 = vadd.f32 0.0, %v447
      %449 = vmatmul.bf16.gmra.mxu0 %v353
      %v450 = vpop.f32.mrf.mxu0
      %v451 = vadd.f32 0.0, %v450
      %v452 = vpop.f32.mrf.mxu0
      %v453 = vadd.f32 0.0, %v452
      %454 = vmatmul.bf16.gmra.mxu0 %v354
      %v455 = vpop.f32.mrf.mxu0
      %v456 = vadd.f32 0.0, %v455
      %v457 = vpop.f32.mrf.mxu0
      %v458 = vadd.f32 0.0, %v457
      %459 = vdwg.mxu0
      %v460 = vadd.f32 %v267, %v421
      %v461 = vadd.f32 %v268, %v423
      %v462 = vadd.f32 %v269, %v426
      %v463 = vadd.f32 %v270, %v428
      %v464 = vadd.f32 %v271, %v431
      %v465 = vadd.f32 %v272, %v433
      %v466 = vadd.f32 %v273, %v436
      %v467 = vadd.f32 %v274, %v438
      %v468 = vadd.f32 %v275, %v441
      %v469 = vadd.f32 %v276, %v443
      %v470 = vadd.f32 %v277, %v446
      %v471 = vadd.f32 %v278, %v448
      %v472 = vadd.f32 %v279, %v451
      %v473 = vadd.f32 %v280, %v453
      %v474 = vadd.f32 %v281, %v456
      %v475 = vadd.f32 %v282, %v458
      %476 = vst [vmem:[#allocation2] sm:$0xff] %v460
      %477 = vst [vmem:[#allocation2 + $0x8] sm:$0xff] %v461
      %478 = vst [vmem:[#allocation2 + $0x10] sm:$0xff] %v462
      %479 = vst [vmem:[#allocation2 + $0x18] sm:$0xff] %v463
      %480 = vst [vmem:[#allocation2 + $0x20] sm:$0xff] %v464
      %481 = vst [vmem:[#allocation2 + $0x28] sm:$0xff] %v465
      %482 = vst [vmem:[#allocation2 + $0x30] sm:$0xff] %v466
      %483 = vst [vmem:[#allocation2 + $0x38] sm:$0xff] %v467
      %484 = vst [vmem:[#allocation2 + $0x40] sm:$0xff] %v468
      %485 = vst [vmem:[#allocation2 + $0x48] sm:$0xff] %v469
      %486 = vst [vmem:[#allocation2 + $0x50] sm:$0xff] %v470
      %487 = vst [vmem:[#allocation2 + $0x58] sm:$0xff] %v471
      %488 = vst [vmem:[#allocation2 + $0x60] sm:$0xff] %v472
      %489 = vst [vmem:[#allocation2 + $0x68] sm:$0xff] %v473
      %490 = vst [vmem:[#allocation2 + $0x70] sm:$0xff] %v474
      %491 = vst [vmem:[#allocation2 + $0x78] sm:$0xff] %v475
      %p492 = scmp.eq.s32.totalorder %s20, 48
      // Predicated region
      $region41: #{forward.8} parent=35 // pred_check
        %p493 = pneg %p492
      $region42: #{forward.8} parent=35 // pred_check_branch
        %495 = sbr.rel (%p493) target = $region44
      $region43: #{forward.8} parent=35 // pred_region
        %v496 = vld [vmem:[#allocation2] sm:$0xff]
        %v497 = vld [vmem:[#allocation2 + $0x8] sm:$0xff]
        %v498 = vld [vmem:[#allocation2 + $0x10] sm:$0xff]
        %v499 = vld [vmem:[#allocation2 + $0x18] sm:$0xff]
        %v500 = vld [vmem:[#allocation2 + $0x20] sm:$0xff]
        %v501 = vld [vmem:[#allocation2 + $0x28] sm:$0xff]
        %v502 = vld [vmem:[#allocation2 + $0x30] sm:$0xff]
        %v503 = vld [vmem:[#allocation2 + $0x38] sm:$0xff]
        %v504 = vld [vmem:[#allocation2 + $0x40] sm:$0xff]
        %v505 = vld [vmem:[#allocation2 + $0x48] sm:$0xff]
        %v506 = vld [vmem:[#allocation2 + $0x50] sm:$0xff]
        %v507 = vld [vmem:[#allocation2 + $0x58] sm:$0xff]
        %v508 = vld [vmem:[#allocation2 + $0x60] sm:$0xff]
        %v509 = vld [vmem:[#allocation2 + $0x68] sm:$0xff]
        %v510 = vld [vmem:[#allocation2 + $0x70] sm:$0xff]
        %v511 = vld [vmem:[#allocation2 + $0x78] sm:$0xff]
        %v512 = vld [vmem:[%s2] sm:$0x1]
        %v514 = vperm.slane %v512, 0
        %v516 = vmul.f32 %v496, %v514
        %v517 = vmul.f32 %v497, %v514
        %v518 = vmul.f32 %v498, %v514
        %v519 = vmul.f32 %v499, %v514
        %v520 = vmul.f32 %v500, %v514
        %v521 = vmul.f32 %v501, %v514
        %v522 = vmul.f32 %v502, %v514
        %v523 = vmul.f32 %v503, %v514
        %v524 = vmul.f32 %v504, %v514
        %v525 = vmul.f32 %v505, %v514
        %v526 = vmul.f32 %v506, %v514
        %v527 = vmul.f32 %v507, %v514
        %v528 = vmul.f32 %v508, %v514
        %v529 = vmul.f32 %v509, %v514
        %v530 = vmul.f32 %v510, %v514
        %v531 = vmul.f32 %v511, %v514
        %v532 = vld [vmem:[%s3] sm:$0x1]
        %v534 = vperm.slane %v532, 0
        %v536 = vadd.f32 %v516, %v534
        %v537 = vadd.f32 %v517, %v534
        %v538 = vadd.f32 %v518, %v534
        %v539 = vadd.f32 %v519, %v534
        %v540 = vadd.f32 %v520, %v534
        %v541 = vadd.f32 %v521, %v534
        %v542 = vadd.f32 %v522, %v534
        %v543 = vadd.f32 %v523, %v534
        %v544 = vadd.f32 %v524, %v534
        %v545 = vadd.f32 %v525, %v534
        %v546 = vadd.f32 %v526, %v534
        %v547 = vadd.f32 %v527, %v534
        %v548 = vadd.f32 %v528, %v534
        %v549 = vadd.f32 %v529, %v534
        %v550 = vadd.f32 %v530, %v534
        %v551 = vadd.f32 %v531, %v534
        %v552 = vmax.f32 %v536, 0.0
        %v553 = vmax.f32 %v537, 0.0
        %v554 = vmax.f32 %v538, 0.0
        %v555 = vmax.f32 %v539, 0.0
        %v556 = vmax.f32 %v540, 0.0
        %v557 = vmax.f32 %v541, 0.0
        %v558 = vmax.f32 %v542, 0.0
        %v559 = vmax.f32 %v543, 0.0
        %v560 = vmax.f32 %v544, 0.0
        %v561 = vmax.f32 %v545, 0.0
        %v562 = vmax.f32 %v546, 0.0
        %v563 = vmax.f32 %v547, 0.0
        %v564 = vmax.f32 %v548, 0.0
        %v565 = vmax.f32 %v549, 0.0
        %v566 = vmax.f32 %v550, 0.0
        %v567 = vmax.f32 %v551, 0.0
        %v568 = vpack.c.bf16 %v552, %v552
        %v569 = vpack.c.bf16 %v553, %v553
        %v570 = vpack.c.bf16 %v554, %v554
        %v571 = vpack.c.bf16 %v555, %v555
        %v572 = vpack.c.bf16 %v556, %v556
        %v573 = vpack.c.bf16 %v557, %v557
        %v574 = vpack.c.bf16 %v558, %v558
        %v575 = vpack.c.bf16 %v559, %v559
        %v576 = vpack.c.bf16 %v560, %v560
        %v577 = vpack.c.bf16 %v561, %v561
        %v578 = vpack.c.bf16 %v562, %v562
        %v579 = vpack.c.bf16 %v563, %v563
        %v580 = vpack.c.bf16 %v564, %v564
        %v581 = vpack.c.bf16 %v565, %v565
        %v582 = vpack.c.bf16 %v566, %v566
        %v583 = vpack.c.bf16 %v567, %v567
        %584 = vst [vmem:[%s245] sm:$0xf] %v568
        %585 = vst [vmem:[%s245 + $0x4] sm:$0xf] %v569
        %586 = vst [vmem:[%s245 + $0x8] sm:$0xf] %v570
        %587 = vst [vmem:[%s245 + $0xc] sm:$0xf] %v571
        %588 = vst [vmem:[%s245 + $0x10] sm:$0xf] %v572
        %589 = vst [vmem:[%s245 + $0x14] sm:$0xf] %v573
        %590 = vst [vmem:[%s245 + $0x18] sm:$0xf] %v574
        %591 = vst [vmem:[%s245 + $0x1c] sm:$0xf] %v575
        %592 = vst [vmem:[%s245 + $0x20] sm:$0xf] %v576
        %593 = vst [vmem:[%s245 + $0x24] sm:$0xf] %v577
        %594 = vst [vmem:[%s245 + $0x28] sm:$0xf] %v578
        %595 = vst [vmem:[%s245 + $0x2c] sm:$0xf] %v579
        %596 = vst [vmem:[%s245 + $0x30] sm:$0xf] %v580
        %597 = vst [vmem:[%s245 + $0x34] sm:$0xf] %v581
        %598 = vst [vmem:[%s245 + $0x38] sm:$0xf] %v582
        %599 = vst [vmem:[%s245 + $0x3c] sm:$0xf] %v583
      $region44: #{forward.8} parent=35 // pred_fallthru
        _
      %s600 = smul.u32 16, %s19
      %p601 = scmp.lt.s32.totalorder %s600, 15
      %s602 = scalar_select %p601, %s600, 15
      %s603 = smul.addr %s602, 4
      %s604 = scalar_lea.vmem %s4, %s603
      // Predicated region
      $region45: #{forward.8} parent=35 // pred_check
        %p605 = pneg %p141
      $region46: #{forward.8} parent=35 // pred_check_branch
        %607 = sbr.rel (%p605) target = $region48
      $region47: #{forward.8} parent=35 // pred_region
        %s608 = smul.u32 16, %s19
      $region48: #{forward.8} parent=35 // pred_fallthru
        _
      // Predicated region
      $region49: #{forward.8} parent=35 // pred_check
        %p609 = pneg %p141
      $region50: #{forward.8} parent=35 // pred_check_branch
        %611 = sbr.rel (%p609) target = $region52
      $region51: #{forward.8} parent=35 // pred_region
        %s612 = smul.u32 16, %s19
        %p613 = scmp.lt.s32.totalorder %s612, 15
        %s614 = scalar_select %p613, %s612, 15
        %s615 = smul.addr %s614, 4
        %s616 = scalar_lea.vmem %s4, %s615
      $region52: #{forward.8} parent=35 // pred_fallthru
        _
    $region36: #{forward.8} parent=5 // pred_fallthru
      _
    %p617 = scmp.le.s32.totalorder 2, %s10
    // Predicated region
    $region53: #{forward.8} parent=5 // pred_check
      %p618 = pneg %p617
    $region54: #{forward.8} parent=5 // pred_check_branch
      %620 = sbr.rel (%p618) target = $region56
    $region55: #{forward.8} parent=5 // pred_region
      %s621 = ssub.s32 %s10, 2
    $region56: #{forward.8} parent=5 // pred_fallthru
      _
  $region6: #{forward.8} parent=0 // loop_footer
    %s14 = sadd.s32 1, %s10
  $region7: #{forward.8} parent=0 // loop_footer_branch
    %9 = sbr.rel target = $region3
  $region8: #{forward.8} parent=0 // loop_exit
    _

// kernel: forward.9
$region0: #{forward.9}
  #allocation0 [shape = 'u32[]', space=smem, size = 0x4, offset = 0x4, fixed_abs, tag = 'smem constant byte address 0x4 - core index']
  #allocation1 [shape = 'u32[72,128]{1,0:T(1,128)}', space=vmem, size = 0x9000, scoped, tag = 'internal scratch']
  %s0 = inlined_call_operand.vmem [shape: bf16[9,32,128], index: 0, kind: input, shape index: {}]
  %s1 = inlined_call_operand.vmem [shape: bf16[32,128], index: 1, kind: output, shape index: {}]
  %s2 = sld [smem:[#allocation0]]
  $region14: #{forward.9} parent=0
    _
  %s4 = ssub.s32 1, %s2
  %s5 = scalar_select 0, %s4, %s2
  // Predicated region
  $region2: #{forward.9} parent=0 // pred_check
    _
  $region3: #{forward.9} parent=0 // pred_check_branch
    %7 = sbr.rel (0) target = $region5
  $region4: #{forward.9} parent=0 // pred_region
    _
  $region5: #{forward.9} parent=0 // pred_fallthru
    _
  %v8 = vld [vmem:[%s0] sm:$0xf]
  %v9 = vld [vmem:[%s0 + $0x4] sm:$0xf]
  %v10 = vld [vmem:[%s0 + $0x8] sm:$0xf]
  %v11 = vld [vmem:[%s0 + $0xc] sm:$0xf]
  %v12 = vunpack.c.l.bf16 %v8
  %v13 = vunpack.c.l.bf16 %v9
  %v14 = vunpack.c.l.bf16 %v10
  %v15 = vunpack.c.l.bf16 %v11
  %s16 = scalar_lea.vmem %s0, 16
  %v17 = vld [vmem:[%s16] sm:$0xf]
  %v18 = vld [vmem:[%s16 + $0x4] sm:$0xf]
  %v19 = vld [vmem:[%s16 + $0x8] sm:$0xf]
  %v20 = vld [vmem:[%s16 + $0xc] sm:$0xf]
  %v21 = vunpack.c.l.bf16 %v17
  %v22 = vunpack.c.l.bf16 %v18
  %v23 = vunpack.c.l.bf16 %v19
  %v24 = vunpack.c.l.bf16 %v20
  %v25 = vmax.f32 %v12, %v21
  %v26 = vmax.f32 %v13, %v22
  %v27 = vmax.f32 %v14, %v23
  %v28 = vmax.f32 %v15, %v24
  %s29 = scalar_lea.vmem %s0, 32
  %v30 = vld [vmem:[%s29] sm:$0xf]
  %v31 = vld [vmem:[%s29 + $0x4] sm:$0xf]
  %v32 = vld [vmem:[%s29 + $0x8] sm:$0xf]
  %v33 = vld [vmem:[%s29 + $0xc] sm:$0xf]
  %v34 = vunpack.c.l.bf16 %v30
  %v35 = vunpack.c.l.bf16 %v31
  %v36 = vunpack.c.l.bf16 %v32
  %v37 = vunpack.c.l.bf16 %v33
  %v38 = vmax.f32 %v25, %v34
  %v39 = vmax.f32 %v26, %v35
  %v40 = vmax.f32 %v27, %v36
  %v41 = vmax.f32 %v28, %v37
  %s42 = scalar_lea.vmem %s0, 48
  %v43 = vld [vmem:[%s42] sm:$0xf]
  %v44 = vld [vmem:[%s42 + $0x4] sm:$0xf]
  %v45 = vld [vmem:[%s42 + $0x8] sm:$0xf]
  %v46 = vld [vmem:[%s42 + $0xc] sm:$0xf]
  %v47 = vunpack.c.l.bf16 %v43
  %v48 = vunpack.c.l.bf16 %v44
  %v49 = vunpack.c.l.bf16 %v45
  %v50 = vunpack.c.l.bf16 %v46
  %v51 = vmax.f32 %v38, %v47
  %v52 = vmax.f32 %v39, %v48
  %v53 = vmax.f32 %v40, %v49
  %v54 = vmax.f32 %v41, %v50
  %s55 = scalar_lea.vmem %s0, 64
  %v56 = vld [vmem:[%s55] sm:$0xf]
  %v57 = vld [vmem:[%s55 + $0x4] sm:$0xf]
  %v58 = vld [vmem:[%s55 + $0x8] sm:$0xf]
  %v59 = vld [vmem:[%s55 + $0xc] sm:$0xf]
  %v60 = vunpack.c.l.bf16 %v56
  %v61 = vunpack.c.l.bf16 %v57
  %v62 = vunpack.c.l.bf16 %v58
  %v63 = vunpack.c.l.bf16 %v59
  %v64 = vmax.f32 %v51, %v60
  %v65 = vmax.f32 %v52, %v61
  %v66 = vmax.f32 %v53, %v62
  %v67 = vmax.f32 %v54, %v63
  %s68 = scalar_lea.vmem %s0, 80
  %v69 = vld [vmem:[%s68] sm:$0xf]
  %v70 = vld [vmem:[%s68 + $0x4] sm:$0xf]
  %v71 = vld [vmem:[%s68 + $0x8] sm:$0xf]
  %v72 = vld [vmem:[%s68 + $0xc] sm:$0xf]
  %v73 = vunpack.c.l.bf16 %v69
  %v74 = vunpack.c.l.bf16 %v70
  %v75 = vunpack.c.l.bf16 %v71
  %v76 = vunpack.c.l.bf16 %v72
  %v77 = vmax.f32 %v64, %v73
  %v78 = vmax.f32 %v65, %v74
  %v79 = vmax.f32 %v66, %v75
  %v80 = vmax.f32 %v67, %v76
  %s81 = scalar_lea.vmem %s0, 96
  %v82 = vld [vmem:[%s81] sm:$0xf]
  %v83 = vld [vmem:[%s81 + $0x4] sm:$0xf]
  %v84 = vld [vmem:[%s81 + $0x8] sm:$0xf]
  %v85 = vld [vmem:[%s81 + $0xc] sm:$0xf]
  %v86 = vunpack.c.l.bf16 %v82
  %v87 = vunpack.c.l.bf16 %v83
  %v88 = vunpack.c.l.bf16 %v84
  %v89 = vunpack.c.l.bf16 %v85
  %v90 = vmax.f32 %v77, %v86
  %v91 = vmax.f32 %v78, %v87
  %v92 = vmax.f32 %v79, %v88
  %v93 = vmax.f32 %v80, %v89
  %s94 = scalar_lea.vmem %s0, 112
  %v95 = vld [vmem:[%s94] sm:$0xf]
  %v96 = vld [vmem:[%s94 + $0x4] sm:$0xf]
  %v97 = vld [vmem:[%s94 + $0x8] sm:$0xf]
  %v98 = vld [vmem:[%s94 + $0xc] sm:$0xf]
  %v99 = vunpack.c.l.bf16 %v95
  %v100 = vunpack.c.l.bf16 %v96
  %v101 = vunpack.c.l.bf16 %v97
  %v102 = vunpack.c.l.bf16 %v98
  %v103 = vmax.f32 %v90, %v99
  %v104 = vmax.f32 %v91, %v100
  %v105 = vmax.f32 %v92, %v101
  %v106 = vmax.f32 %v93, %v102
  %s107 = scalar_lea.vmem %s0, 128
  %v108 = vld [vmem:[%s107] sm:$0xf]
  %v109 = vld [vmem:[%s107 + $0x4] sm:$0xf]
  %v110 = vld [vmem:[%s107 + $0x8] sm:$0xf]
  %v111 = vld [vmem:[%s107 + $0xc] sm:$0xf]
  %v112 = vunpack.c.l.bf16 %v108
  %v113 = vunpack.c.l.bf16 %v109
  %v114 = vunpack.c.l.bf16 %v110
  %v115 = vunpack.c.l.bf16 %v111
  %v116 = vmax.f32 %v103, %v112
  %v117 = vmax.f32 %v104, %v113
  %v118 = vmax.f32 %v105, %v114
  %v119 = vmax.f32 %v106, %v115
  %v120 = vpack.c.bf16 %v116, %v116
  %v121 = vpack.c.bf16 %v117, %v117
  %v122 = vpack.c.bf16 %v118, %v118
  %v123 = vpack.c.bf16 %v119, %v119
  %124 = vst [vmem:[%s1] sm:$0xf] %v120
  %125 = vst [vmem:[%s1 + $0x4] sm:$0xf] %v121
  %126 = vst [vmem:[%s1 + $0x8] sm:$0xf] %v122
  %127 = vst [vmem:[%s1 + $0xc] sm:$0xf] %v123
  // Predicated region
  $region6: #{forward.9} parent=0 // pred_check
    _
  $region7: #{forward.9} parent=0 // pred_check_branch
    %129 = sbr.rel (0) target = $region9
  $region8: #{forward.9} parent=0 // pred_region
    _
  $region9: #{forward.9} parent=0 // pred_fallthru
    _
  // Predicated region
  $region10: #{forward.9} parent=0 // pred_check
    _
  $region11: #{forward.9} parent=0 // pred_check_branch
    %131 = sbr.rel (0) target = $region13
  $region12: #{forward.9} parent=0 // pred_region
    _
  $region13: #{forward.9} parent=0 // pred_fallthru
    _

// kernel: forward.10
$region0: #{forward.10}
  #allocation0 [shape = 'u32[]', space=smem, size = 0x4, offset = 0x4, fixed_abs, tag = 'smem constant byte address 0x4 - core index']
  #allocation1 [shape = 'u32[72,128]{1,0:T(1,128)}', space=vmem, size = 0x9000, scoped, tag = 'internal scratch']
  #allocation2 [shape = 'f32[32,128]{1,0:T(8,128)}', space=vmem, size = 0x4000, scoped, tag = 'scratch operand']
  %s0 = inlined_call_operand.vmem [shape: bf16[9,32,128], index: 0, kind: input, shape index: {}]
  %s1 = inlined_call_operand.vmem [shape: bf16[9,128,128], index: 1, kind: input, shape index: {}]
  %s2 = inlined_call_operand.vmem [shape: f32[1,128], index: 2, kind: input, shape index: {}]
  %s3 = inlined_call_operand.vmem [shape: f32[1,128], index: 3, kind: input, shape index: {}]
  %s4 = inlined_call_operand.vmem [shape: bf16[32,128], index: 4, kind: output, shape index: {}]
  %s5 = sld [smem:[#allocation0]]
  $region57: #{forward.10} parent=0
    _
  %s7 = ssub.s32 1, %s5
  %s8 = scalar_select 0, %s7, %s5
  loop: start=0, step=1, limit=11
  $region2: #{forward.10} parent=0 // loop_pre_header
    _
  $region3: #{forward.10} parent=0 // loop_header
    %s10 = sphi 0, %s14
    %p11 = scmp.ge.s32.totalorder %s10, 11
    %s17 = sphi 0, %s29
    %s18 = sphi 0, %s25
    %s19 = sphi 0, %s17
    %s20 = sphi 0, %s18
    %s21 = sphi 0, %s19
    %s22 = sphi 0, %s20
    %s34 = sphi 0, %s36
    %s37 = sphi 0, %s34
    %s38 = sphi 0, %s37
    %s54 = sphi 0, %s38
    %s60 = sphi 0, %s62
    %s63 = sphi 0, %s60
    %s64 = sphi 0, %s63
    %s80 = sphi 0, %s64
    %s84 = sphi 0, %s84
    %s86 = sphi 0, %s84
    %s87 = sphi 0, %s86
    %s101 = sphi 0, %s87
    %s105 = sphi 0, %s105
    %s107 = sphi 0, %s105
    %s108 = sphi 0, %s107
    %s122 = sphi 0, %s108
    %s128 = sphi 0, %s130
    %s131 = sphi 0, %s128
    %s132 = sphi 0, %s131
    %s148 = sphi 0, %s132
  $region4: #{forward.10} parent=0 // loop_header_branch
    %13 = sbr.rel (%p11) target = $region8
  $region5: #{forward.10} parent=0 // loop_body
    %s15 = ssub.s32 %s10, 1
    %s16 = ssub.s32 %s10, 2
    %s23 = sadd.s32 1, %s18
    %p24 = scmp.ge.s32.totalorder %s23, 9
    %s25 = scalar_select %p24, 0, %s23
    %s26 = sadd.s32 1, %s17
    %s27 = scalar_select %p24, %s26, %s17
    %p28 = scmp.ge.s32.totalorder %s27, 1
    %s29 = scalar_select %p28, 0, %s27
    %s30 = ssub.s32 %s18, %s25
    %s31 = ssub.s32 %s17, %s29
    %s32 = sor.u32 %s30, %s31
    %p33 = scmp.eq.s32.totalorder %s32, 0
    %s35 = sadd.s32 %s34, 1
    %s36 = scalar_select %p33, %s34, %s35
    %p39 = pneg %p33
    %p40 = scmp.eq.s32.totalorder %s10, 8
    %p41 = por %p39, %p40
    %p42 = scmp.ne.s32.totalorder %s34, %s37
    %p43 = scmp.eq.s32.totalorder %s10, 0
    %p44 = por %p42, %p43
    %p45 = scmp.ne.s32.totalorder %s34, %s37
    %p46 = scmp.eq.s32.totalorder %s15, 8
    %p47 = por %p45, %p46
    %p48 = scmp.ne.s32.totalorder %s37, %s38
    %p49 = scmp.eq.s32.totalorder %s15, 0
    %p50 = por %p48, %p49
    %p51 = scmp.ne.s32.totalorder %s37, %s38
    %p52 = scmp.eq.s32.totalorder %s16, 8
    %p53 = por %p51, %p52
    %p55 = scmp.ne.s32.totalorder %s38, %s54
    %p56 = scmp.eq.s32.totalorder %s16, 0
    %p57 = por %p55, %p56
    %s58 = ssub.s32 %s18, %s25
    %p59 = scmp.eq.s32.totalorder %s58, 0
    %s61 = sadd.s32 %s60, 1
    %s62 = scalar_select %p59, %s60, %s61
    %p65 = pneg %p59
    %p66 = scmp.eq.s32.totalorder %s10, 8
    %p67 = por %p65, %p66
    %p68 = scmp.ne.s32.totalorder %s60, %s63
    %p69 = scmp.eq.s32.totalorder %s10, 0
    %p70 = por %p68, %p69
    %p71 = scmp.ne.s32.totalorder %s60, %s63
    %p72 = scmp.eq.s32.totalorder %s15, 8
    %p73 = por %p71, %p72
    %p74 = scmp.ne.s32.totalorder %s63, %s64
    %p75 = scmp.eq.s32.totalorder %s15, 0
    %p76 = por %p74, %p75
    %p77 = scmp.ne.s32.totalorder %s63, %s64
    %p78 = scmp.eq.s32.totalorder %s16, 8
    %p79 = por %p77, %p78
    %p81 = scmp.ne.s32.totalorder %s64, %s80
    %p82 = scmp.eq.s32.totalorder %s16, 0
    %p83 = por %p81, %p82
    %s85 = sadd.s32 %s84, 1
    %p88 = scmp.eq.s32.totalorder %s10, 8
    %p89 = scmp.ne.s32.totalorder %s84, %s86
    %p90 = scmp.eq.s32.totalorder %s10, 0
    %p91 = por %p89, %p90
    %p92 = scmp.ne.s32.totalorder %s84, %s86
    %p93 = scmp.eq.s32.totalorder %s15, 8
    %p94 = por %p92, %p93
    %p95 = scmp.ne.s32.totalorder %s86, %s87
    %p96 = scmp.eq.s32.totalorder %s15, 0
    %p97 = por %p95, %p96
    %p98 = scmp.ne.s32.totalorder %s86, %s87
    %p99 = scmp.eq.s32.totalorder %s16, 8
    %p100 = por %p98, %p99
    %p102 = scmp.ne.s32.totalorder %s87, %s101
    %p103 = scmp.eq.s32.totalorder %s16, 0
    %p104 = por %p102, %p103
    %s106 = sadd.s32 %s105, 1
    %p109 = scmp.eq.s32.totalorder %s10, 8
    %p110 = scmp.ne.s32.totalorder %s105, %s107
    %p111 = scmp.eq.s32.totalorder %s10, 0
    %p112 = por %p110, %p111
    %p113 = scmp.ne.s32.totalorder %s105, %s107
    %p114 = scmp.eq.s32.totalorder %s15, 8
    %p115 = por %p113, %p114
    %p116 = scmp.ne.s32.totalorder %s107, %s108
    %p117 = scmp.eq.s32.totalorder %s15, 0
    %p118 = por %p116, %p117
    %p119 = scmp.ne.s32.totalorder %s107, %s108
    %p120 = scmp.eq.s32.totalorder %s16, 8
    %p121 = por %p119, %p120
    %p123 = scmp.ne.s32.totalorder %s108, %s122
    %p124 = scmp.eq.s32.totalorder %s16, 0
    %p125 = por %p123, %p124
    %s126 = ssub.s32 %s17, %s29
    %p127 = scmp.eq.s32.totalorder %s126, 0
    %s129 = sadd.s32 %s128, 1
    %s130 = scalar_select %p127, %s128, %s129
    %p133 = pneg %p127
    %p134 = scmp.eq.s32.totalorder %s10, 8
    %p135 = por %p133, %p134
    %p136 = scmp.ne.s32.totalorder %s128, %s131
    %p137 = scmp.eq.s32.totalorder %s10, 0
    %p138 = por %p136, %p137
    %p139 = scmp.ne.s32.totalorder %s128, %s131
    %p140 = scmp.eq.s32.totalorder %s15, 8
    %p141 = por %p139, %p140
    %p142 = scmp.ne.s32.totalorder %s131, %s132
    %p143 = scmp.eq.s32.totalorder %s15, 0
    %p144 = por %p142, %p143
    %p145 = scmp.ne.s32.totalorder %s131, %s132
    %p146 = scmp.eq.s32.totalorder %s16, 8
    %p147 = por %p145, %p146
    %p149 = scmp.ne.s32.totalorder %s132, %s148
    %p150 = scmp.eq.s32.totalorder %s16, 0
    %p151 = por %p149, %p150
    %p152 = scmp.le.s32.totalorder 1, %s10
    %p153 = scmp.lt.s32.totalorder %s10, 10
    %p154 = pnand %p152, %p153
    %p155 = pneg %p154
    // Predicated region
    $region9: #{forward.10} parent=5 // pred_check
      _
    $region10: #{forward.10} parent=5 // pred_check_branch
      %157 = sbr.rel (%p154) target = $region12
    $region11: #{forward.10} parent=5 // pred_region
      %s158 = ssub.s32 %s10, 1
      // Predicated region
      $region13: #{forward.10} parent=11 // pred_check
        %p159 = pneg %p97
      $region14: #{forward.10} parent=11 // pred_check_branch
        %161 = sbr.rel (%p159) target = $region16
      $region15: #{forward.10} parent=11 // pred_region
        _
      $region16: #{forward.10} parent=11 // pred_fallthru
        _
      // Predicated region
      $region17: #{forward.10} parent=11 // pred_check
        %p162 = pneg %p118
      $region18: #{forward.10} parent=11 // pred_check_branch
        %164 = sbr.rel (%p162) target = $region20
      $region19: #{forward.10} parent=11 // pred_region
        _
      $region20: #{forward.10} parent=11 // pred_fallthru
        _
    $region12: #{forward.10} parent=5 // pred_fallthru
      _
    %p165 = scmp.lt.s32.totalorder %s10, 9
    // Predicated region
    $region21: #{forward.10} parent=5 // pred_check
      %p166 = pneg %p165
    $region22: #{forward.10} parent=5 // pred_check_branch
      %168 = sbr.rel (%p166) target = $region24
    $region23: #{forward.10} parent=5 // pred_region
      // Predicated region
      $region25: #{forward.10} parent=23 // pred_check
        %p169 = pneg %p44
      $region26: #{forward.10} parent=23 // pred_check_branch
        %171 = sbr.rel (%p169) target = $region28
      $region27: #{forward.10} parent=23 // pred_region
        %s172 = smul.u32 4, %s17
        %p173 = scmp.lt.s32.totalorder %s18, 8
        %s174 = scalar_select %p173, %s18, 8
        %p175 = scmp.lt.s32.totalorder %s172, 3
        %s176 = scalar_select %p175, %s172, 3
        %s177 = smul.addr %s174, 4
        %s178 = sadd.s32 %s176, %s177
        %s179 = smul.addr %s178, 4
        %s180 = scalar_lea.vmem %s0, %s179
        %s181 = smul.u32 4, %s17
      $region28: #{forward.10} parent=23 // pred_fallthru
        _
      // Predicated region
      $region29: #{forward.10} parent=23 // pred_check
        %p182 = pneg %p70
      $region30: #{forward.10} parent=23 // pred_check_branch
        %184 = sbr.rel (%p182) target = $region32
      $region31: #{forward.10} parent=23 // pred_region
        %p185 = scmp.lt.s32.totalorder %s18, 8
        %s186 = scalar_select %p185, %s18, 8
        %s187 = smul.addr %s186, 16
        %s188 = smul.addr %s187, 4
        %s189 = scalar_lea.vmem %s1, %s188
      $region32: #{forward.10} parent=23 // pred_fallthru
        _
    $region24: #{forward.10} parent=5 // pred_fallthru
      _
    %p190 = scmp.le.s32.totalorder 1, %s10
    %p191 = scmp.lt.s32.totalorder %s10, 10
    %p192 = pnand %p190, %p191
    %p193 = pneg %p192
    // Predicated region
    $region33: #{forward.10} parent=5 // pred_check
      _
    $region34: #{forward.10} parent=5 // pred_check_branch
      %195 = sbr.rel (%p192) target = $region36
    $region35: #{forward.10} parent=5 // pred_region
      %s196 = ssub.s32 %s10, 1
      %s197 = smul.u32 4, %s19
      %p198 = scmp.lt.s32.totalorder %s20, 8
      %s199 = scalar_select %p198, %s20, 8
      %p200 = scmp.lt.s32.totalorder %s197, 3
      %s201 = scalar_select %p200, %s197, 3
      %s202 = smul.addr %s199, 4
      %s203 = sadd.s32 %s201, %s202
      %s204 = smul.addr %s203, 4
      %s205 = scalar_lea.vmem %s0, %s204
      %p206 = pneg %p50
      %p207 = pneg %p47
      %p208 = scmp.lt.s32.totalorder %s20, 8
      %s209 = scalar_select %p208, %s20, 8
      %s210 = smul.addr %s209, 16
      %s211 = smul.addr %s210, 4
      %s212 = scalar_lea.vmem %s1, %s211
      %p213 = pneg %p76
      %p214 = pneg %p73
      %p215 = pneg %p97
      %p216 = pneg %p94
      %p217 = pneg %p118
      %p218 = pneg %p115
      %p219 = pneg %p144
      %p220 = pneg %p141
      %s221 = smul.u32 4, %s19
      %p222 = scmp.lt.s32.totalorder %s221, 3
      %s223 = scalar_select %p222, %s221, 3
      %s224 = smul.addr %s223, 4
      %s225 = scalar_lea.vmem %s4, %s224
      %s226 = smul.u32 4, %s19
      %p227 = scmp.lt.s32.totalorder %s20, 8
      %s228 = scalar_select %p227, %s20, 8
      %p229 = scmp.lt.s32.totalorder %s226, 3
      %s230 = scalar_select %p229, %s226, 3
      %s231 = smul.addr %s228, 4
      %s232 = sadd.s32 %s230, %s231
      %s233 = smul.addr %s232, 4
      %s234 = scalar_lea.vmem %s0, %s233
      %s235 = smul.u32 4, %s19
      %p236 = scmp.lt.s32.totalorder %s20, 8
      %s237 = scalar_select %p236, %s20, 8
      %s238 = smul.addr %s237, 16
      %s239 = smul.addr %s238, 4
      %s240 = scalar_lea.vmem %s1, %s239
      %s241 = smul.u32 4, %s19
      %p242 = scmp.lt.s32.totalorder %s241, 3
      %s243 = scalar_select %p242, %s241, 3
      %s244 = smul.addr %s243, 4
      %s245 = scalar_lea.vmem %s4, %s244
      %s246 = smul.u32 4, %s19
      %p247 = scmp.eq.s32.totalorder %s20, 0
      // Predicated region
      $region37: #{forward.10} parent=35 // pred_check
        %p248 = pneg %p247
      $region38: #{forward.10} parent=35 // pred_check_branch
        %250 = sbr.rel (%p248) target = $region40
      $region39: #{forward.10} parent=35 // pred_region
        %251 = vst [vmem:[#allocation2] sm:$0xff] 0.0
        %252 = vst [vmem:[#allocation2 + $0x8] sm:$0xff] 0.0
        %253 = vst [vmem:[#allocation2 + $0x10] sm:$0xff] 0.0
        %254 = vst [vmem:[#allocation2 + $0x18] sm:$0xff] 0.0
      $region40: #{forward.10} parent=35 // pred_fallthru
        _
      %v255 = vld [vmem:[#allocation2] sm:$0xff]
      %v256 = vld [vmem:[#allocation2 + $0x8] sm:$0xff]
      %v257 = vld [vmem:[#allocation2 + $0x10] sm:$0xff]
      %v258 = vld [vmem:[#allocation2 + $0x18] sm:$0xff]
      %v259 = vld [vmem:[%s234] sm:$0xf]
      %v260 = vld [vmem:[%s234 + $0x4] sm:$0xf]
      %v261 = vld [vmem:[%s234 + $0x8] sm:$0xf]
      %v262 = vld [vmem:[%s234 + $0xc] sm:$0xf]
      %v263 = vld [vmem:[%s240] sm:$0xf]
      %v264 = vld [vmem:[%s240 + $0x4] sm:$0xf]
      %v265 = vld [vmem:[%s240 + $0x8] sm:$0xf]
      %v266 = vld [vmem:[%s240 + $0xc] sm:$0xf]
      %v267 = vld [vmem:[%s240 + $0x10] sm:$0xf]
      %v268 = vld [vmem:[%s240 + $0x14] sm:$0xf]
      %v269 = vld [vmem:[%s240 + $0x18] sm:$0xf]
      %v270 = vld [vmem:[%s240 + $0x1c] sm:$0xf]
      %v271 = vld [vmem:[%s240 + $0x20] sm:$0xf]
      %v272 = vld [vmem:[%s240 + $0x24] sm:$0xf]
      %v273 = vld [vmem:[%s240 + $0x28] sm:$0xf]
      %v274 = vld [vmem:[%s240 + $0x2c] sm:$0xf]
      %v275 = vld [vmem:[%s240 + $0x30] sm:$0xf]
      %v276 = vld [vmem:[%s240 + $0x34] sm:$0xf]
      %v277 = vld [vmem:[%s240 + $0x38] sm:$0xf]
      %v278 = vld [vmem:[%s240 + $0x3c] sm:$0xf]
      %v283 = vunpack.c.l.b16 %v259
      %v284 = vunpack.c.l.b16 %v260
      %v285 = vunpack.c.l.b16 %v261
      %v286 = vunpack.c.l.b16 %v262
      %v287 = vpack.c.b16 %v284, %v283
      %v288 = vpack.c.b16 %v286, %v285
      %v307 = vunpack.c.l.b16 %v263
      %v308 = vunpack.c.l.b16 %v264
      %v309 = vunpack.c.l.b16 %v265
      %v310 = vunpack.c.l.b16 %v266
      %v311 = vunpack.c.l.b16 %v267
      %v312 = vunpack.c.l.b16 %v268
      %v313 = vunpack.c.l.b16 %v269
      %v314 = vunpack.c.l.b16 %v270
      %v315 = vunpack.c.l.b16 %v271
      %v316 = vunpack.c.l.b16 %v272
      %v317 = vunpack.c.l.b16 %v273
      %v318 = vunpack.c.l.b16 %v274
      %v319 = vunpack.c.l.b16 %v275
      %v320 = vunpack.c.l.b16 %v276
      %v321 = vunpack.c.l.b16 %v277
      %v322 = vunpack.c.l.b16 %v278
      %v323 = vpack.c.b16 %v308, %v307
      %v324 = vpack.c.b16 %v310, %v309
      %v325 = vpack.c.b16 %v312, %v311
      %v326 = vpack.c.b16 %v314, %v313
      %v327 = vpack.c.b16 %v316, %v315
      %v328 = vpack.c.b16 %v318, %v317
      %v329 = vpack.c.b16 %v320, %v319
      %v330 = vpack.c.b16 %v322, %v321
      %339 = vmatpush.bf16.msra.mxu0 %v330
      %340 = vmatpush.bf16.msra.mxu0 %v329
      %341 = vmatpush.bf16.msra.mxu0 %v328
      %342 = vmatpush.bf16.msra.mxu0 %v327
      %343 = vmatpush.bf16.msra.mxu0 %v326
      %344 = vmatpush.bf16.msra.mxu0 %v325
      %345 = vmatpush.bf16.msra.mxu0 %v324
      %346 = vmatpush.bf16.msra.mxu0 %v323
      %347 = vmatmul.bf16.gmra.mxu0 %v287
      %v348 = vpop.f32.mrf.mxu0
      %v349 = vadd.f32 0.0, %v348
      %v350 = vpop.f32.mrf.mxu0
      %v351 = vadd.f32 0.0, %v350
      %352 = vmatmul.bf16.gmra.mxu0 %v288
      %v353 = vpop.f32.mrf.mxu0
      %v354 = vadd.f32 0.0, %v353
      %v355 = vpop.f32.mrf.mxu0
      %v356 = vadd.f32 0.0, %v355
      %357 = vdwg.mxu0
      %v358 = vadd.f32 %v255, %v349
      %v359 = vadd.f32 %v256, %v351
      %v360 = vadd.f32 %v257, %v354
      %v361 = vadd.f32 %v258, %v356
      %362 = vst [vmem:[#allocation2] sm:$0xff] %v358
      %363 = vst [vmem:[#allocation2 + $0x8] sm:$0xff] %v359
      %364 = vst [vmem:[#allocation2 + $0x10] sm:$0xff] %v360
      %365 = vst [vmem:[#allocation2 + $0x18] sm:$0xff] %v361
      %p366 = scmp.eq.s32.totalorder %s20, 8
      // Predicated region
      $region41: #{forward.10} parent=35 // pred_check
        %p367 = pneg %p366
      $region42: #{forward.10} parent=35 // pred_check_branch
        %369 = sbr.rel (%p367) target = $region44
      $region43: #{forward.10} parent=35 // pred_region
        %v370 = vld [vmem:[#allocation2] sm:$0xff]
        %v371 = vld [vmem:[#allocation2 + $0x8] sm:$0xff]
        %v372 = vld [vmem:[#allocation2 + $0x10] sm:$0xff]
        %v373 = vld [vmem:[#allocation2 + $0x18] sm:$0xff]
        %v374 = vld [vmem:[%s2] sm:$0x1]
        %v376 = vperm.slane %v374, 0
        %v378 = vmul.f32 %v370, %v376
        %v379 = vmul.f32 %v371, %v376
        %v380 = vmul.f32 %v372, %v376
        %v381 = vmul.f32 %v373, %v376
        %v382 = vld [vmem:[%s3] sm:$0x1]
        %v384 = vperm.slane %v382, 0
        %v386 = vadd.f32 %v378, %v384
        %v387 = vadd.f32 %v379, %v384
        %v388 = vadd.f32 %v380, %v384
        %v389 = vadd.f32 %v381, %v384
        %v390 = vmax.f32 %v386, 0.0
        %v391 = vmax.f32 %v387, 0.0
        %v392 = vmax.f32 %v388, 0.0
        %v393 = vmax.f32 %v389, 0.0
        %v394 = vpack.c.bf16 %v390, %v390
        %v395 = vpack.c.bf16 %v391, %v391
        %v396 = vpack.c.bf16 %v392, %v392
        %v397 = vpack.c.bf16 %v393, %v393
        %398 = vst [vmem:[%s245] sm:$0xf] %v394
        %399 = vst [vmem:[%s245 + $0x4] sm:$0xf] %v395
        %400 = vst [vmem:[%s245 + $0x8] sm:$0xf] %v396
        %401 = vst [vmem:[%s245 + $0xc] sm:$0xf] %v397
      $region44: #{forward.10} parent=35 // pred_fallthru
        _
      %s402 = smul.u32 4, %s19
      %p403 = scmp.lt.s32.totalorder %s402, 3
      %s404 = scalar_select %p403, %s402, 3
      %s405 = smul.addr %s404, 4
      %s406 = scalar_lea.vmem %s4, %s405
      // Predicated region
      $region45: #{forward.10} parent=35 // pred_check
        %p407 = pneg %p141
      $region46: #{forward.10} parent=35 // pred_check_branch
        %409 = sbr.rel (%p407) target = $region48
      $region47: #{forward.10} parent=35 // pred_region
        %s410 = smul.u32 4, %s19
      $region48: #{forward.10} parent=35 // pred_fallthru
        _
      // Predicated region
      $region49: #{forward.10} parent=35 // pred_check
        %p411 = pneg %p141
      $region50: #{forward.10} parent=35 // pred_check_branch
        %413 = sbr.rel (%p411) target = $region52
      $region51: #{forward.10} parent=35 // pred_region
        %s414 = smul.u32 4, %s19
        %p415 = scmp.lt.s32.totalorder %s414, 3
        %s416 = scalar_select %p415, %s414, 3
        %s417 = smul.addr %s416, 4
        %s418 = scalar_lea.vmem %s4, %s417
      $region52: #{forward.10} parent=35 // pred_fallthru
        _
    $region36: #{forward.10} parent=5 // pred_fallthru
      _
    %p419 = scmp.le.s32.totalorder 2, %s10
    // Predicated region
    $region53: #{forward.10} parent=5 // pred_check
      %p420 = pneg %p419
    $region54: #{forward.10} parent=5 // pred_check_branch
      %422 = sbr.rel (%p420) target = $region56
    $region55: #{forward.10} parent=5 // pred_region
      %s423 = ssub.s32 %s10, 2
    $region56: #{forward.10} parent=5 // pred_fallthru
      _
  $region6: #{forward.10} parent=0 // loop_footer
    %s14 = sadd.s32 1, %s10
  $region7: #{forward.10} parent=0 // loop_footer_branch
    %9 = sbr.rel target = $region3
  $region8: #{forward.10} parent=0 // loop_exit
    _

// kernel: forward.11
$region0: #{forward.11}
  #allocation0 [shape = 'u32[]', space=smem, size = 0x4, offset = 0x4, fixed_abs, tag = 'smem constant byte address 0x4 - core index']
  #allocation1 [shape = 'u32[72,128]{1,0:T(1,128)}', space=vmem, size = 0x9000, scoped, tag = 'internal scratch']
  #allocation2 [shape = 'f32[32,128]{1,0:T(8,128)}', space=vmem, size = 0x4000, scoped, tag = 'scratch operand']
  %s0 = inlined_call_operand.vmem [shape: bf16[9,32,128], index: 0, kind: input, shape index: {}]
  %s1 = inlined_call_operand.vmem [shape: bf16[9,128,128], index: 1, kind: input, shape index: {}]
  %s2 = inlined_call_operand.vmem [shape: f32[1,128], index: 2, kind: input, shape index: {}]
  %s3 = inlined_call_operand.vmem [shape: f32[1,128], index: 3, kind: input, shape index: {}]
  %s4 = inlined_call_operand.vmem [shape: bf16[32,128], index: 4, kind: input, shape index: {}]
  %s5 = inlined_call_operand.vmem [shape: bf16[32,128], index: 5, kind: output, shape index: {}]
  %s6 = sld [smem:[#allocation0]]
  $region61: #{forward.11} parent=0
    _
  %s8 = ssub.s32 1, %s6
  %s9 = scalar_select 0, %s8, %s6
  loop: start=0, step=1, limit=11
  $region2: #{forward.11} parent=0 // loop_pre_header
    _
  $region3: #{forward.11} parent=0 // loop_header
    %s11 = sphi 0, %s15
    %p12 = scmp.ge.s32.totalorder %s11, 11
    %s18 = sphi 0, %s30
    %s19 = sphi 0, %s26
    %s20 = sphi 0, %s18
    %s21 = sphi 0, %s19
    %s22 = sphi 0, %s20
    %s23 = sphi 0, %s21
    %s35 = sphi 0, %s37
    %s38 = sphi 0, %s35
    %s39 = sphi 0, %s38
    %s55 = sphi 0, %s39
    %s61 = sphi 0, %s63
    %s64 = sphi 0, %s61
    %s65 = sphi 0, %s64
    %s81 = sphi 0, %s65
    %s85 = sphi 0, %s85
    %s87 = sphi 0, %s85
    %s88 = sphi 0, %s87
    %s102 = sphi 0, %s88
    %s106 = sphi 0, %s106
    %s108 = sphi 0, %s106
    %s109 = sphi 0, %s108
    %s123 = sphi 0, %s109
    %s129 = sphi 0, %s131
    %s132 = sphi 0, %s129
    %s133 = sphi 0, %s132
    %s149 = sphi 0, %s133
    %s155 = sphi 0, %s157
    %s158 = sphi 0, %s155
    %s159 = sphi 0, %s158
    %s175 = sphi 0, %s159
  $region4: #{forward.11} parent=0 // loop_header_branch
    %14 = sbr.rel (%p12) target = $region8
  $region5: #{forward.11} parent=0 // loop_body
    %s16 = ssub.s32 %s11, 1
    %s17 = ssub.s32 %s11, 2
    %s24 = sadd.s32 1, %s19
    %p25 = scmp.ge.s32.totalorder %s24, 9
    %s26 = scalar_select %p25, 0, %s24
    %s27 = sadd.s32 1, %s18
    %s28 = scalar_select %p25, %s27, %s18
    %p29 = scmp.ge.s32.totalorder %s28, 1
    %s30 = scalar_select %p29, 0, %s28
    %s31 = ssub.s32 %s19, %s26
    %s32 = ssub.s32 %s18, %s30
    %s33 = sor.u32 %s31, %s32
    %p34 = scmp.eq.s32.totalorder %s33, 0
    %s36 = sadd.s32 %s35, 1
    %s37 = scalar_select %p34, %s35, %s36
    %p40 = pneg %p34
    %p41 = scmp.eq.s32.totalorder %s11, 8
    %p42 = por %p40, %p41
    %p43 = scmp.ne.s32.totalorder %s35, %s38
    %p44 = scmp.eq.s32.totalorder %s11, 0
    %p45 = por %p43, %p44
    %p46 = scmp.ne.s32.totalorder %s35, %s38
    %p47 = scmp.eq.s32.totalorder %s16, 8
    %p48 = por %p46, %p47
    %p49 = scmp.ne.s32.totalorder %s38, %s39
    %p50 = scmp.eq.s32.totalorder %s16, 0
    %p51 = por %p49, %p50
    %p52 = scmp.ne.s32.totalorder %s38, %s39
    %p53 = scmp.eq.s32.totalorder %s17, 8
    %p54 = por %p52, %p53
    %p56 = scmp.ne.s32.totalorder %s39, %s55
    %p57 = scmp.eq.s32.totalorder %s17, 0
    %p58 = por %p56, %p57
    %s59 = ssub.s32 %s19, %s26
    %p60 = scmp.eq.s32.totalorder %s59, 0
    %s62 = sadd.s32 %s61, 1
    %s63 = scalar_select %p60, %s61, %s62
    %p66 = pneg %p60
    %p67 = scmp.eq.s32.totalorder %s11, 8
    %p68 = por %p66, %p67
    %p69 = scmp.ne.s32.totalorder %s61, %s64
    %p70 = scmp.eq.s32.totalorder %s11, 0
    %p71 = por %p69, %p70
    %p72 = scmp.ne.s32.totalorder %s61, %s64
    %p73 = scmp.eq.s32.totalorder %s16, 8
    %p74 = por %p72, %p73
    %p75 = scmp.ne.s32.totalorder %s64, %s65
    %p76 = scmp.eq.s32.totalorder %s16, 0
    %p77 = por %p75, %p76
    %p78 = scmp.ne.s32.totalorder %s64, %s65
    %p79 = scmp.eq.s32.totalorder %s17, 8
    %p80 = por %p78, %p79
    %p82 = scmp.ne.s32.totalorder %s65, %s81
    %p83 = scmp.eq.s32.totalorder %s17, 0
    %p84 = por %p82, %p83
    %s86 = sadd.s32 %s85, 1
    %p89 = scmp.eq.s32.totalorder %s11, 8
    %p90 = scmp.ne.s32.totalorder %s85, %s87
    %p91 = scmp.eq.s32.totalorder %s11, 0
    %p92 = por %p90, %p91
    %p93 = scmp.ne.s32.totalorder %s85, %s87
    %p94 = scmp.eq.s32.totalorder %s16, 8
    %p95 = por %p93, %p94
    %p96 = scmp.ne.s32.totalorder %s87, %s88
    %p97 = scmp.eq.s32.totalorder %s16, 0
    %p98 = por %p96, %p97
    %p99 = scmp.ne.s32.totalorder %s87, %s88
    %p100 = scmp.eq.s32.totalorder %s17, 8
    %p101 = por %p99, %p100
    %p103 = scmp.ne.s32.totalorder %s88, %s102
    %p104 = scmp.eq.s32.totalorder %s17, 0
    %p105 = por %p103, %p104
    %s107 = sadd.s32 %s106, 1
    %p110 = scmp.eq.s32.totalorder %s11, 8
    %p111 = scmp.ne.s32.totalorder %s106, %s108
    %p112 = scmp.eq.s32.totalorder %s11, 0
    %p113 = por %p111, %p112
    %p114 = scmp.ne.s32.totalorder %s106, %s108
    %p115 = scmp.eq.s32.totalorder %s16, 8
    %p116 = por %p114, %p115
    %p117 = scmp.ne.s32.totalorder %s108, %s109
    %p118 = scmp.eq.s32.totalorder %s16, 0
    %p119 = por %p117, %p118
    %p120 = scmp.ne.s32.totalorder %s108, %s109
    %p121 = scmp.eq.s32.totalorder %s17, 8
    %p122 = por %p120, %p121
    %p124 = scmp.ne.s32.totalorder %s109, %s123
    %p125 = scmp.eq.s32.totalorder %s17, 0
    %p126 = por %p124, %p125
    %s127 = ssub.s32 %s18, %s30
    %p128 = scmp.eq.s32.totalorder %s127, 0
    %s130 = sadd.s32 %s129, 1
    %s131 = scalar_select %p128, %s129, %s130
    %p134 = pneg %p128
    %p135 = scmp.eq.s32.totalorder %s11, 8
    %p136 = por %p134, %p135
    %p137 = scmp.ne.s32.totalorder %s129, %s132
    %p138 = scmp.eq.s32.totalorder %s11, 0
    %p139 = por %p137, %p138
    %p140 = scmp.ne.s32.totalorder %s129, %s132
    %p141 = scmp.eq.s32.totalorder %s16, 8
    %p142 = por %p140, %p141
    %p143 = scmp.ne.s32.totalorder %s132, %s133
    %p144 = scmp.eq.s32.totalorder %s16, 0
    %p145 = por %p143, %p144
    %p146 = scmp.ne.s32.totalorder %s132, %s133
    %p147 = scmp.eq.s32.totalorder %s17, 8
    %p148 = por %p146, %p147
    %p150 = scmp.ne.s32.totalorder %s133, %s149
    %p151 = scmp.eq.s32.totalorder %s17, 0
    %p152 = por %p150, %p151
    %s153 = ssub.s32 %s18, %s30
    %p154 = scmp.eq.s32.totalorder %s153, 0
    %s156 = sadd.s32 %s155, 1
    %s157 = scalar_select %p154, %s155, %s156
    %p160 = pneg %p154
    %p161 = scmp.eq.s32.totalorder %s11, 8
    %p162 = por %p160, %p161
    %p163 = scmp.ne.s32.totalorder %s155, %s158
    %p164 = scmp.eq.s32.totalorder %s11, 0
    %p165 = por %p163, %p164
    %p166 = scmp.ne.s32.totalorder %s155, %s158
    %p167 = scmp.eq.s32.totalorder %s16, 8
    %p168 = por %p166, %p167
    %p169 = scmp.ne.s32.totalorder %s158, %s159
    %p170 = scmp.eq.s32.totalorder %s16, 0
    %p171 = por %p169, %p170
    %p172 = scmp.ne.s32.totalorder %s158, %s159
    %p173 = scmp.eq.s32.totalorder %s17, 8
    %p174 = por %p172, %p173
    %p176 = scmp.ne.s32.totalorder %s159, %s175
    %p177 = scmp.eq.s32.totalorder %s17, 0
    %p178 = por %p176, %p177
    %p179 = scmp.le.s32.totalorder 1, %s11
    %p180 = scmp.lt.s32.totalorder %s11, 10
    %p181 = pnand %p179, %p180
    %p182 = pneg %p181
    // Predicated region
    $region9: #{forward.11} parent=5 // pred_check
      _
    $region10: #{forward.11} parent=5 // pred_check_branch
      %184 = sbr.rel (%p181) target = $region12
    $region11: #{forward.11} parent=5 // pred_region
      %s185 = ssub.s32 %s11, 1
      // Predicated region
      $region13: #{forward.11} parent=11 // pred_check
        %p186 = pneg %p98
      $region14: #{forward.11} parent=11 // pred_check_branch
        %188 = sbr.rel (%p186) target = $region16
      $region15: #{forward.11} parent=11 // pred_region
        _
      $region16: #{forward.11} parent=11 // pred_fallthru
        _
      // Predicated region
      $region17: #{forward.11} parent=11 // pred_check
        %p189 = pneg %p119
      $region18: #{forward.11} parent=11 // pred_check_branch
        %191 = sbr.rel (%p189) target = $region20
      $region19: #{forward.11} parent=11 // pred_region
        _
      $region20: #{forward.11} parent=11 // pred_fallthru
        _
      // Predicated region
      $region21: #{forward.11} parent=11 // pred_check
        %p192 = pneg %p145
      $region22: #{forward.11} parent=11 // pred_check_branch
        %194 = sbr.rel (%p192) target = $region24
      $region23: #{forward.11} parent=11 // pred_region
        %s195 = smul.u32 4, %s20
        %p196 = scmp.lt.s32.totalorder %s195, 3
        %s197 = scalar_select %p196, %s195, 3
        %s198 = smul.addr %s197, 4
        %s199 = scalar_lea.vmem %s4, %s198
        %s200 = smul.u32 4, %s20
      $region24: #{forward.11} parent=11 // pred_fallthru
        _
    $region12: #{forward.11} parent=5 // pred_fallthru
      _
    %p201 = scmp.lt.s32.totalorder %s11, 9
    // Predicated region
    $region25: #{forward.11} parent=5 // pred_check
      %p202 = pneg %p201
    $region26: #{forward.11} parent=5 // pred_check_branch
      %204 = sbr.rel (%p202) target = $region28
    $region27: #{forward.11} parent=5 // pred_region
      // Predicated region
      $region29: #{forward.11} parent=27 // pred_check
        %p205 = pneg %p45
      $region30: #{forward.11} parent=27 // pred_check_branch
        %207 = sbr.rel (%p205) target = $region32
      $region31: #{forward.11} parent=27 // pred_region
        %s208 = smul.u32 4, %s18
        %p209 = scmp.lt.s32.totalorder %s19, 8
        %s210 = scalar_select %p209, %s19, 8
        %p211 = scmp.lt.s32.totalorder %s208, 3
        %s212 = scalar_select %p211, %s208, 3
        %s213 = smul.addr %s210, 4
        %s214 = sadd.s32 %s212, %s213
        %s215 = smul.addr %s214, 4
        %s216 = scalar_lea.vmem %s0, %s215
        %s217 = smul.u32 4, %s18
      $region32: #{forward.11} parent=27 // pred_fallthru
        _
      // Predicated region
      $region33: #{forward.11} parent=27 // pred_check
        %p218 = pneg %p71
      $region34: #{forward.11} parent=27 // pred_check_branch
        %220 = sbr.rel (%p218) target = $region36
      $region35: #{forward.11} parent=27 // pred_region
        %p221 = scmp.lt.s32.totalorder %s19, 8
        %s222 = scalar_select %p221, %s19, 8
        %s223 = smul.addr %s222, 16
        %s224 = smul.addr %s223, 4
        %s225 = scalar_lea.vmem %s1, %s224
      $region36: #{forward.11} parent=27 // pred_fallthru
        _
    $region28: #{forward.11} parent=5 // pred_fallthru
      _
    %p226 = scmp.le.s32.totalorder 1, %s11
    %p227 = scmp.lt.s32.totalorder %s11, 10
    %p228 = pnand %p226, %p227
    %p229 = pneg %p228
    // Predicated region
    $region37: #{forward.11} parent=5 // pred_check
      _
    $region38: #{forward.11} parent=5 // pred_check_branch
      %231 = sbr.rel (%p228) target = $region40
    $region39: #{forward.11} parent=5 // pred_region
      %s232 = ssub.s32 %s11, 1
      %s233 = smul.u32 4, %s20
      %p234 = scmp.lt.s32.totalorder %s21, 8
      %s235 = scalar_select %p234, %s21, 8
      %p236 = scmp.lt.s32.totalorder %s233, 3
      %s237 = scalar_select %p236, %s233, 3
      %s238 = smul.addr %s235, 4
      %s239 = sadd.s32 %s237, %s238
      %s240 = smul.addr %s239, 4
      %s241 = scalar_lea.vmem %s0, %s240
      %p242 = pneg %p51
      %p243 = pneg %p48
      %p244 = scmp.lt.s32.totalorder %s21, 8
      %s245 = scalar_select %p244, %s21, 8
      %s246 = smul.addr %s245, 16
      %s247 = smul.addr %s246, 4
      %s248 = scalar_lea.vmem %s1, %s247
      %p249 = pneg %p77
      %p250 = pneg %p74
      %p251 = pneg %p98
      %p252 = pneg %p95
      %p253 = pneg %p119
      %p254 = pneg %p116
      %s255 = smul.u32 4, %s20
      %p256 = scmp.lt.s32.totalorder %s255, 3
      %s257 = scalar_select %p256, %s255, 3
      %s258 = smul.addr %s257, 4
      %s259 = scalar_lea.vmem %s4, %s258
      %p260 = pneg %p145
      %p261 = pneg %p142
      %p262 = pneg %p171
      %p263 = pneg %p168
      %s264 = smul.u32 4, %s20
      %p265 = scmp.lt.s32.totalorder %s264, 3
      %s266 = scalar_select %p265, %s264, 3
      %s267 = smul.addr %s266, 4
      %s268 = scalar_lea.vmem %s5, %s267
      %s269 = smul.u32 4, %s20
      %p270 = scmp.lt.s32.totalorder %s21, 8
      %s271 = scalar_select %p270, %s21, 8
      %p272 = scmp.lt.s32.totalorder %s269, 3
      %s273 = scalar_select %p272, %s269, 3
      %s274 = smul.addr %s271, 4
      %s275 = sadd.s32 %s273, %s274
      %s276 = smul.addr %s275, 4
      %s277 = scalar_lea.vmem %s0, %s276
      %s278 = smul.u32 4, %s20
      %p279 = scmp.lt.s32.totalorder %s21, 8
      %s280 = scalar_select %p279, %s21, 8
      %s281 = smul.addr %s280, 16
      %s282 = smul.addr %s281, 4
      %s283 = scalar_lea.vmem %s1, %s282
      %s284 = smul.u32 4, %s20
      %p285 = scmp.lt.s32.totalorder %s284, 3
      %s286 = scalar_select %p285, %s284, 3
      %s287 = smul.addr %s286, 4
      %s288 = scalar_lea.vmem %s4, %s287
      %s289 = smul.u32 4, %s20
      %s290 = smul.u32 4, %s20
      %p291 = scmp.lt.s32.totalorder %s290, 3
      %s292 = scalar_select %p291, %s290, 3
      %s293 = smul.addr %s292, 4
      %s294 = scalar_lea.vmem %s5, %s293
      %s295 = smul.u32 4, %s20
      %p296 = scmp.eq.s32.totalorder %s21, 0
      // Predicated region
      $region41: #{forward.11} parent=39 // pred_check
        %p297 = pneg %p296
      $region42: #{forward.11} parent=39 // pred_check_branch
        %299 = sbr.rel (%p297) target = $region44
      $region43: #{forward.11} parent=39 // pred_region
        %300 = vst [vmem:[#allocation2] sm:$0xff] 0.0
        %301 = vst [vmem:[#allocation2 + $0x8] sm:$0xff] 0.0
        %302 = vst [vmem:[#allocation2 + $0x10] sm:$0xff] 0.0
        %303 = vst [vmem:[#allocation2 + $0x18] sm:$0xff] 0.0
      $region44: #{forward.11} parent=39 // pred_fallthru
        _
      %v304 = vld [vmem:[#allocation2] sm:$0xff]
      %v305 = vld [vmem:[#allocation2 + $0x8] sm:$0xff]
      %v306 = vld [vmem:[#allocation2 + $0x10] sm:$0xff]
      %v307 = vld [vmem:[#allocation2 + $0x18] sm:$0xff]
      %v308 = vld [vmem:[%s277] sm:$0xf]
      %v309 = vld [vmem:[%s277 + $0x4] sm:$0xf]
      %v310 = vld [vmem:[%s277 + $0x8] sm:$0xf]
      %v311 = vld [vmem:[%s277 + $0xc] sm:$0xf]
      %v312 = vld [vmem:[%s283] sm:$0xf]
      %v313 = vld [vmem:[%s283 + $0x4] sm:$0xf]
      %v314 = vld [vmem:[%s283 + $0x8] sm:$0xf]
      %v315 = vld [vmem:[%s283 + $0xc] sm:$0xf]
      %v316 = vld [vmem:[%s283 + $0x10] sm:$0xf]
      %v317 = vld [vmem:[%s283 + $0x14] sm:$0xf]
      %v318 = vld [vmem:[%s283 + $0x18] sm:$0xf]
      %v319 = vld [vmem:[%s283 + $0x1c] sm:$0xf]
      %v320 = vld [vmem:[%s283 + $0x20] sm:$0xf]
      %v321 = vld [vmem:[%s283 + $0x24] sm:$0xf]
      %v322 = vld [vmem:[%s283 + $0x28] sm:$0xf]
      %v323 = vld [vmem:[%s283 + $0x2c] sm:$0xf]
      %v324 = vld [vmem:[%s283 + $0x30] sm:$0xf]
      %v325 = vld [vmem:[%s283 + $0x34] sm:$0xf]
      %v326 = vld [vmem:[%s283 + $0x38] sm:$0xf]
      %v327 = vld [vmem:[%s283 + $0x3c] sm:$0xf]
      %v332 = vunpack.c.l.b16 %v308
      %v333 = vunpack.c.l.b16 %v309
      %v334 = vunpack.c.l.b16 %v310
      %v335 = vunpack.c.l.b16 %v311
      %v336 = vpack.c.b16 %v333, %v332
      %v337 = vpack.c.b16 %v335, %v334
      %v356 = vunpack.c.l.b16 %v312
      %v357 = vunpack.c.l.b16 %v313
      %v358 = vunpack.c.l.b16 %v314
      %v359 = vunpack.c.l.b16 %v315
      %v360 = vunpack.c.l.b16 %v316
      %v361 = vunpack.c.l.b16 %v317
      %v362 = vunpack.c.l.b16 %v318
      %v363 = vunpack.c.l.b16 %v319
      %v364 = vunpack.c.l.b16 %v320
      %v365 = vunpack.c.l.b16 %v321
      %v366 = vunpack.c.l.b16 %v322
      %v367 = vunpack.c.l.b16 %v323
      %v368 = vunpack.c.l.b16 %v324
      %v369 = vunpack.c.l.b16 %v325
      %v370 = vunpack.c.l.b16 %v326
      %v371 = vunpack.c.l.b16 %v327
      %v372 = vpack.c.b16 %v357, %v356
      %v373 = vpack.c.b16 %v359, %v358
      %v374 = vpack.c.b16 %v361, %v360
      %v375 = vpack.c.b16 %v363, %v362
      %v376 = vpack.c.b16 %v365, %v364
      %v377 = vpack.c.b16 %v367, %v366
      %v378 = vpack.c.b16 %v369, %v368
      %v379 = vpack.c.b16 %v371, %v370
      %388 = vmatpush.bf16.msra.mxu0 %v379
      %389 = vmatpush.bf16.msra.mxu0 %v378
      %390 = vmatpush.bf16.msra.mxu0 %v377
      %391 = vmatpush.bf16.msra.mxu0 %v376
      %392 = vmatpush.bf16.msra.mxu0 %v375
      %393 = vmatpush.bf16.msra.mxu0 %v374
      %394 = vmatpush.bf16.msra.mxu0 %v373
      %395 = vmatpush.bf16.msra.mxu0 %v372
      %396 = vmatmul.bf16.gmra.mxu0 %v336
      %v397 = vpop.f32.mrf.mxu0
      %v398 = vadd.f32 0.0, %v397
      %v399 = vpop.f32.mrf.mxu0
      %v400 = vadd.f32 0.0, %v399
      %401 = vmatmul.bf16.gmra.mxu0 %v337
      %v402 = vpop.f32.mrf.mxu0
      %v403 = vadd.f32 0.0, %v402
      %v404 = vpop.f32.mrf.mxu0
      %v405 = vadd.f32 0.0, %v404
      %406 = vdwg.mxu0
      %v407 = vadd.f32 %v304, %v398
      %v408 = vadd.f32 %v305, %v400
      %v409 = vadd.f32 %v306, %v403
      %v410 = vadd.f32 %v307, %v405
      %411 = vst [vmem:[#allocation2] sm:$0xff] %v407
      %412 = vst [vmem:[#allocation2 + $0x8] sm:$0xff] %v408
      %413 = vst [vmem:[#allocation2 + $0x10] sm:$0xff] %v409
      %414 = vst [vmem:[#allocation2 + $0x18] sm:$0xff] %v410
      %p415 = scmp.eq.s32.totalorder %s21, 8
      // Predicated region
      $region45: #{forward.11} parent=39 // pred_check
        %p416 = pneg %p415
      $region46: #{forward.11} parent=39 // pred_check_branch
        %418 = sbr.rel (%p416) target = $region48
      $region47: #{forward.11} parent=39 // pred_region
        %v419 = vld [vmem:[#allocation2] sm:$0xff]
        %v420 = vld [vmem:[#allocation2 + $0x8] sm:$0xff]
        %v421 = vld [vmem:[#allocation2 + $0x10] sm:$0xff]
        %v422 = vld [vmem:[#allocation2 + $0x18] sm:$0xff]
        %v423 = vld [vmem:[%s2] sm:$0x1]
        %v425 = vperm.slane %v423, 0
        %v427 = vmul.f32 %v419, %v425
        %v428 = vmul.f32 %v420, %v425
        %v429 = vmul.f32 %v421, %v425
        %v430 = vmul.f32 %v422, %v425
        %v431 = vld [vmem:[%s3] sm:$0x1]
        %v433 = vperm.slane %v431, 0
        %v435 = vadd.f32 %v427, %v433
        %v436 = vadd.f32 %v428, %v433
        %v437 = vadd.f32 %v429, %v433
        %v438 = vadd.f32 %v430, %v433
        %v439 = vld [vmem:[%s288] sm:$0xf]
        %v440 = vld [vmem:[%s288 + $0x4] sm:$0xf]
        %v441 = vld [vmem:[%s288 + $0x8] sm:$0xf]
        %v442 = vld [vmem:[%s288 + $0xc] sm:$0xf]
        %v443 = vunpack.c.l.bf16 %v439
        %v444 = vunpack.c.l.bf16 %v440
        %v445 = vunpack.c.l.bf16 %v441
        %v446 = vunpack.c.l.bf16 %v442
        %v447 = vadd.f32 %v435, %v443
        %v448 = vadd.f32 %v436, %v444
        %v449 = vadd.f32 %v437, %v445
        %v450 = vadd.f32 %v438, %v446
        %v451 = vmax.f32 %v447, 0.0
        %v452 = vmax.f32 %v448, 0.0
        %v453 = vmax.f32 %v449, 0.0
        %v454 = vmax.f32 %v450, 0.0
        %v455 = vpack.c.bf16 %v451, %v451
        %v456 = vpack.c.bf16 %v452, %v452
        %v457 = vpack.c.bf16 %v453, %v453
        %v458 = vpack.c.bf16 %v454, %v454
        %459 = vst [vmem:[%s294] sm:$0xf] %v455
        %460 = vst [vmem:[%s294 + $0x4] sm:$0xf] %v456
        %461 = vst [vmem:[%s294 + $0x8] sm:$0xf] %v457
        %462 = vst [vmem:[%s294 + $0xc] sm:$0xf] %v458
      $region48: #{forward.11} parent=39 // pred_fallthru
        _
      %s463 = smul.u32 4, %s20
      %p464 = scmp.lt.s32.totalorder %s463, 3
      %s465 = scalar_select %p464, %s463, 3
      %s466 = smul.addr %s465, 4
      %s467 = scalar_lea.vmem %s5, %s466
      // Predicated region
      $region49: #{forward.11} parent=39 // pred_check
        %p468 = pneg %p168
      $region50: #{forward.11} parent=39 // pred_check_branch
        %470 = sbr.rel (%p468) target = $region52
      $region51: #{forward.11} parent=39 // pred_region
        %s471 = smul.u32 4, %s20
      $region52: #{forward.11} parent=39 // pred_fallthru
        _
      // Predicated region
      $region53: #{forward.11} parent=39 // pred_check
        %p472 = pneg %p168
      $region54: #{forward.11} parent=39 // pred_check_branch
        %474 = sbr.rel (%p472) target = $region56
      $region55: #{forward.11} parent=39 // pred_region
        %s475 = smul.u32 4, %s20
        %p476 = scmp.lt.s32.totalorder %s475, 3
        %s477 = scalar_select %p476, %s475, 3
        %s478 = smul.addr %s477, 4
        %s479 = scalar_lea.vmem %s5, %s478
      $region56: #{forward.11} parent=39 // pred_fallthru
        _
    $region40: #{forward.11} parent=5 // pred_fallthru
      _
    %p480 = scmp.le.s32.totalorder 2, %s11
    // Predicated region
    $region57: #{forward.11} parent=5 // pred_check
      %p481 = pneg %p480
    $region58: #{forward.11} parent=5 // pred_check_branch
      %483 = sbr.rel (%p481) target = $region60
    $region59: #{forward.11} parent=5 // pred_region
      %s484 = ssub.s32 %s11, 2
    $region60: #{forward.11} parent=5 // pred_fallthru
      _
  $region6: #{forward.11} parent=0 // loop_footer
    %s15 = sadd.s32 1, %s11
  $region7: #{forward.11} parent=0 // loop_footer_branch
    %10 = sbr.rel target = $region3
  $region8: #{forward.11} parent=0 // loop_exit
    _

// kernel: forward.13
$region0: #{forward.13}
  #allocation0 [shape = 'u32[]', space=smem, size = 0x4, offset = 0x4, fixed_abs, tag = 'smem constant byte address 0x4 - core index']
  #allocation1 [shape = 'u32[72,128]{1,0:T(1,128)}', space=vmem, size = 0x9000, scoped, tag = 'internal scratch']
  #allocation2 [shape = 'f32[8,128]{1,0:T(8,128)}', space=vmem, size = 0x1000, scoped, tag = 'scratch operand']
  %s0 = inlined_call_operand.vmem [shape: bf16[1,8,128], index: 0, kind: input, shape index: {}]
  %s1 = inlined_call_operand.vmem [shape: bf16[1,128,128], index: 1, kind: input, shape index: {}]
  %s2 = inlined_call_operand.vmem [shape: f32[1,128], index: 2, kind: input, shape index: {}]
  %s3 = inlined_call_operand.vmem [shape: f32[1,128], index: 3, kind: input, shape index: {}]
  %s4 = inlined_call_operand.vmem [shape: bf16[8,128], index: 4, kind: output, shape index: {}]
  %s5 = sld [smem:[#allocation0]]
  $region34: #{forward.13} parent=0
    _
  %s7 = ssub.s32 1, %s5
  %s8 = scalar_select 0, %s7, %s5
  // Predicated region
  $region2: #{forward.13} parent=0 // pred_check
    _
  $region3: #{forward.13} parent=0 // pred_check_branch
    %10 = sbr.rel (0) target = $region5
  $region4: #{forward.13} parent=0 // pred_region
    _
  $region5: #{forward.13} parent=0 // pred_fallthru
    _
  // Predicated region
  $region6: #{forward.13} parent=0 // pred_check
    _
  $region7: #{forward.13} parent=0 // pred_check_branch
    %12 = sbr.rel (0) target = $region9
  $region8: #{forward.13} parent=0 // pred_region
    _
  $region9: #{forward.13} parent=0 // pred_fallthru
    _
  // Predicated region
  $region10: #{forward.13} parent=0 // pred_check
    _
  $region11: #{forward.13} parent=0 // pred_check_branch
    %14 = sbr.rel (0) target = $region13
  $region12: #{forward.13} parent=0 // pred_region
    _
  $region13: #{forward.13} parent=0 // pred_fallthru
    _
  // Predicated region
  $region14: #{forward.13} parent=0 // pred_check
    _
  $region15: #{forward.13} parent=0 // pred_check_branch
    %16 = sbr.rel (0) target = $region17
  $region16: #{forward.13} parent=0 // pred_region
    _
  $region17: #{forward.13} parent=0 // pred_fallthru
    _
  %p17 = scmp.eq.s32.totalorder 0, 0
  // Predicated region
  $region18: #{forward.13} parent=0 // pred_check
    %p18 = pneg %p17
  $region19: #{forward.13} parent=0 // pred_check_branch
    %20 = sbr.rel (%p18) target = $region21
  $region20: #{forward.13} parent=0 // pred_region
    %21 = vst [vmem:[#allocation2] sm:$0xff] 0.0
  $region21: #{forward.13} parent=0 // pred_fallthru
    _
  %v22 = vld [vmem:[#allocation2] sm:$0xff]
  %v23 = vld [vmem:[%s0] sm:$0xf]
  %v24 = vld [vmem:[%s1] sm:$0xf]
  %v25 = vld [vmem:[%s1 + $0x4] sm:$0xf]
  %v26 = vld [vmem:[%s1 + $0x8] sm:$0xf]
  %v27 = vld [vmem:[%s1 + $0xc] sm:$0xf]
  %v28 = vld [vmem:[%s1 + $0x10] sm:$0xf]
  %v29 = vld [vmem:[%s1 + $0x14] sm:$0xf]
  %v30 = vld [vmem:[%s1 + $0x18] sm:$0xf]
  %v31 = vld [vmem:[%s1 + $0x1c] sm:$0xf]
  %v32 = vld [vmem:[%s1 + $0x20] sm:$0xf]
  %v33 = vld [vmem:[%s1 + $0x24] sm:$0xf]
  %v34 = vld [vmem:[%s1 + $0x28] sm:$0xf]
  %v35 = vld [vmem:[%s1 + $0x2c] sm:$0xf]
  %v36 = vld [vmem:[%s1 + $0x30] sm:$0xf]
  %v37 = vld [vmem:[%s1 + $0x34] sm:$0xf]
  %v38 = vld [vmem:[%s1 + $0x38] sm:$0xf]
  %v39 = vld [vmem:[%s1 + $0x3c] sm:$0xf]
  %v56 = vunpack.c.l.b16 %v24
  %v57 = vunpack.c.l.b16 %v25
  %v58 = vunpack.c.l.b16 %v26
  %v59 = vunpack.c.l.b16 %v27
  %v60 = vunpack.c.l.b16 %v28
  %v61 = vunpack.c.l.b16 %v29
  %v62 = vunpack.c.l.b16 %v30
  %v63 = vunpack.c.l.b16 %v31
  %v64 = vunpack.c.l.b16 %v32
  %v65 = vunpack.c.l.b16 %v33
  %v66 = vunpack.c.l.b16 %v34
  %v67 = vunpack.c.l.b16 %v35
  %v68 = vunpack.c.l.b16 %v36
  %v69 = vunpack.c.l.b16 %v37
  %v70 = vunpack.c.l.b16 %v38
  %v71 = vunpack.c.l.b16 %v39
  %v72 = vpack.c.b16 %v57, %v56
  %v73 = vpack.c.b16 %v59, %v58
  %v74 = vpack.c.b16 %v61, %v60
  %v75 = vpack.c.b16 %v63, %v62
  %v76 = vpack.c.b16 %v65, %v64
  %v77 = vpack.c.b16 %v67, %v66
  %v78 = vpack.c.b16 %v69, %v68
  %v79 = vpack.c.b16 %v71, %v70
  %88 = vmatpush.bf16.msra.mxu0 %v79
  %89 = vmatpush.bf16.msra.mxu0 %v78
  %90 = vmatpush.bf16.msra.mxu0 %v77
  %91 = vmatpush.bf16.msra.mxu0 %v76
  %92 = vmatpush.bf16.msra.mxu0 %v75
  %93 = vmatpush.bf16.msra.mxu0 %v74
  %94 = vmatpush.bf16.msra.mxu0 %v73
  %95 = vmatpush.bf16.msra.mxu0 %v72
  %96 = vmatmul.bf16.gmra.mxu0 %v23
  %v97 = vpop.f32.mrf.mxu0
  %v98 = vadd.f32 0.0, %v97
  %v99 = vpop.f32.mrf.mxu0
  %100 = vdwg.mxu0
  %v101 = vadd.f32 %v22, %v98
  %102 = vst [vmem:[#allocation2] sm:$0xff] %v101
  // Predicated region
  $region22: #{forward.13} parent=0 // pred_check
    %p103 = pneg %p17
  $region23: #{forward.13} parent=0 // pred_check_branch
    %105 = sbr.rel (%p103) target = $region25
  $region24: #{forward.13} parent=0 // pred_region
    %v106 = vld [vmem:[#allocation2] sm:$0xff]
    %v107 = vld [vmem:[%s2] sm:$0x1]
    %v109 = vperm.slane %v107, 0
    %v111 = vmul.f32 %v106, %v109
    %v112 = vld [vmem:[%s3] sm:$0x1]
    %v114 = vperm.slane %v112, 0
    %v116 = vadd.f32 %v111, %v114
    %v117 = vpack.c.bf16 %v116, %v116
    %118 = vst [vmem:[%s4] sm:$0xf] %v117
  $region25: #{forward.13} parent=0 // pred_fallthru
    _
  // Predicated region
  $region26: #{forward.13} parent=0 // pred_check
    _
  $region27: #{forward.13} parent=0 // pred_check_branch
    %120 = sbr.rel (0) target = $region29
  $region28: #{forward.13} parent=0 // pred_region
    _
  $region29: #{forward.13} parent=0 // pred_fallthru
    _
  // Predicated region
  $region30: #{forward.13} parent=0 // pred_check
    _
  $region31: #{forward.13} parent=0 // pred_check_branch
    %122 = sbr.rel (0) target = $region33
  $region32: #{forward.13} parent=0 // pred_region
    _
  $region33: #{forward.13} parent=0 // pred_fallthru
    _

// kernel: forward.12
$region0: #{forward.12}
  #allocation0 [shape = 'u32[]', space=smem, size = 0x4, offset = 0x4, fixed_abs, tag = 'smem constant byte address 0x4 - core index']
  #allocation1 [shape = 'u32[72,128]{1,0:T(1,128)}', space=vmem, size = 0x9000, scoped, tag = 'internal scratch']
  #allocation2 [shape = 'f32[8,128]{1,0:T(8,128)}', space=vmem, size = 0x1000, scoped, tag = 'scratch operand']
  %s0 = inlined_call_operand.vmem [shape: bf16[9,8,128], index: 0, kind: input, shape index: {}]
  %s1 = inlined_call_operand.vmem [shape: bf16[9,128,128], index: 1, kind: input, shape index: {}]
  %s2 = inlined_call_operand.vmem [shape: f32[1,128], index: 2, kind: input, shape index: {}]
  %s3 = inlined_call_operand.vmem [shape: f32[1,128], index: 3, kind: input, shape index: {}]
  %s4 = inlined_call_operand.vmem [shape: bf16[8,128], index: 4, kind: output, shape index: {}]
  %s5 = sld [smem:[#allocation0]]
  $region57: #{forward.12} parent=0
    _
  %s7 = ssub.s32 1, %s5
  %s8 = scalar_select 0, %s7, %s5
  loop: start=0, step=1, limit=11
  $region2: #{forward.12} parent=0 // loop_pre_header
    _
  $region3: #{forward.12} parent=0 // loop_header
    %s10 = sphi 0, %s14
    %p11 = scmp.ge.s32.totalorder %s10, 11
    %s17 = sphi 0, %s29
    %s18 = sphi 0, %s25
    %s19 = sphi 0, %s17
    %s20 = sphi 0, %s18
    %s21 = sphi 0, %s19
    %s22 = sphi 0, %s20
    %s34 = sphi 0, %s36
    %s37 = sphi 0, %s34
    %s38 = sphi 0, %s37
    %s54 = sphi 0, %s38
    %s60 = sphi 0, %s62
    %s63 = sphi 0, %s60
    %s64 = sphi 0, %s63
    %s80 = sphi 0, %s64
    %s84 = sphi 0, %s84
    %s86 = sphi 0, %s84
    %s87 = sphi 0, %s86
    %s101 = sphi 0, %s87
    %s105 = sphi 0, %s105
    %s107 = sphi 0, %s105
    %s108 = sphi 0, %s107
    %s122 = sphi 0, %s108
    %s128 = sphi 0, %s130
    %s131 = sphi 0, %s128
    %s132 = sphi 0, %s131
    %s148 = sphi 0, %s132
  $region4: #{forward.12} parent=0 // loop_header_branch
    %13 = sbr.rel (%p11) target = $region8
  $region5: #{forward.12} parent=0 // loop_body
    %s15 = ssub.s32 %s10, 1
    %s16 = ssub.s32 %s10, 2
    %s23 = sadd.s32 1, %s18
    %p24 = scmp.ge.s32.totalorder %s23, 9
    %s25 = scalar_select %p24, 0, %s23
    %s26 = sadd.s32 1, %s17
    %s27 = scalar_select %p24, %s26, %s17
    %p28 = scmp.ge.s32.totalorder %s27, 1
    %s29 = scalar_select %p28, 0, %s27
    %s30 = ssub.s32 %s18, %s25
    %s31 = ssub.s32 %s17, %s29
    %s32 = sor.u32 %s30, %s31
    %p33 = scmp.eq.s32.totalorder %s32, 0
    %s35 = sadd.s32 %s34, 1
    %s36 = scalar_select %p33, %s34, %s35
    %p39 = pneg %p33
    %p40 = scmp.eq.s32.totalorder %s10, 8
    %p41 = por %p39, %p40
    %p42 = scmp.ne.s32.totalorder %s34, %s37
    %p43 = scmp.eq.s32.totalorder %s10, 0
    %p44 = por %p42, %p43
    %p45 = scmp.ne.s32.totalorder %s34, %s37
    %p46 = scmp.eq.s32.totalorder %s15, 8
    %p47 = por %p45, %p46
    %p48 = scmp.ne.s32.totalorder %s37, %s38
    %p49 = scmp.eq.s32.totalorder %s15, 0
    %p50 = por %p48, %p49
    %p51 = scmp.ne.s32.totalorder %s37, %s38
    %p52 = scmp.eq.s32.totalorder %s16, 8
    %p53 = por %p51, %p52
    %p55 = scmp.ne.s32.totalorder %s38, %s54
    %p56 = scmp.eq.s32.totalorder %s16, 0
    %p57 = por %p55, %p56
    %s58 = ssub.s32 %s18, %s25
    %p59 = scmp.eq.s32.totalorder %s58, 0
    %s61 = sadd.s32 %s60, 1
    %s62 = scalar_select %p59, %s60, %s61
    %p65 = pneg %p59
    %p66 = scmp.eq.s32.totalorder %s10, 8
    %p67 = por %p65, %p66
    %p68 = scmp.ne.s32.totalorder %s60, %s63
    %p69 = scmp.eq.s32.totalorder %s10, 0
    %p70 = por %p68, %p69
    %p71 = scmp.ne.s32.totalorder %s60, %s63
    %p72 = scmp.eq.s32.totalorder %s15, 8
    %p73 = por %p71, %p72
    %p74 = scmp.ne.s32.totalorder %s63, %s64
    %p75 = scmp.eq.s32.totalorder %s15, 0
    %p76 = por %p74, %p75
    %p77 = scmp.ne.s32.totalorder %s63, %s64
    %p78 = scmp.eq.s32.totalorder %s16, 8
    %p79 = por %p77, %p78
    %p81 = scmp.ne.s32.totalorder %s64, %s80
    %p82 = scmp.eq.s32.totalorder %s16, 0
    %p83 = por %p81, %p82
    %s85 = sadd.s32 %s84, 1
    %p88 = scmp.eq.s32.totalorder %s10, 8
    %p89 = scmp.ne.s32.totalorder %s84, %s86
    %p90 = scmp.eq.s32.totalorder %s10, 0
    %p91 = por %p89, %p90
    %p92 = scmp.ne.s32.totalorder %s84, %s86
    %p93 = scmp.eq.s32.totalorder %s15, 8
    %p94 = por %p92, %p93
    %p95 = scmp.ne.s32.totalorder %s86, %s87
    %p96 = scmp.eq.s32.totalorder %s15, 0
    %p97 = por %p95, %p96
    %p98 = scmp.ne.s32.totalorder %s86, %s87
    %p99 = scmp.eq.s32.totalorder %s16, 8
    %p100 = por %p98, %p99
    %p102 = scmp.ne.s32.totalorder %s87, %s101
    %p103 = scmp.eq.s32.totalorder %s16, 0
    %p104 = por %p102, %p103
    %s106 = sadd.s32 %s105, 1
    %p109 = scmp.eq.s32.totalorder %s10, 8
    %p110 = scmp.ne.s32.totalorder %s105, %s107
    %p111 = scmp.eq.s32.totalorder %s10, 0
    %p112 = por %p110, %p111
    %p113 = scmp.ne.s32.totalorder %s105, %s107
    %p114 = scmp.eq.s32.totalorder %s15, 8
    %p115 = por %p113, %p114
    %p116 = scmp.ne.s32.totalorder %s107, %s108
    %p117 = scmp.eq.s32.totalorder %s15, 0
    %p118 = por %p116, %p117
    %p119 = scmp.ne.s32.totalorder %s107, %s108
    %p120 = scmp.eq.s32.totalorder %s16, 8
    %p121 = por %p119, %p120
    %p123 = scmp.ne.s32.totalorder %s108, %s122
    %p124 = scmp.eq.s32.totalorder %s16, 0
    %p125 = por %p123, %p124
    %s126 = ssub.s32 %s17, %s29
    %p127 = scmp.eq.s32.totalorder %s126, 0
    %s129 = sadd.s32 %s128, 1
    %s130 = scalar_select %p127, %s128, %s129
    %p133 = pneg %p127
    %p134 = scmp.eq.s32.totalorder %s10, 8
    %p135 = por %p133, %p134
    %p136 = scmp.ne.s32.totalorder %s128, %s131
    %p137 = scmp.eq.s32.totalorder %s10, 0
    %p138 = por %p136, %p137
    %p139 = scmp.ne.s32.totalorder %s128, %s131
    %p140 = scmp.eq.s32.totalorder %s15, 8
    %p141 = por %p139, %p140
    %p142 = scmp.ne.s32.totalorder %s131, %s132
    %p143 = scmp.eq.s32.totalorder %s15, 0
    %p144 = por %p142, %p143
    %p145 = scmp.ne.s32.totalorder %s131, %s132
    %p146 = scmp.eq.s32.totalorder %s16, 8
    %p147 = por %p145, %p146
    %p149 = scmp.ne.s32.totalorder %s132, %s148
    %p150 = scmp.eq.s32.totalorder %s16, 0
    %p151 = por %p149, %p150
    %p152 = scmp.le.s32.totalorder 1, %s10
    %p153 = scmp.lt.s32.totalorder %s10, 10
    %p154 = pnand %p152, %p153
    %p155 = pneg %p154
    // Predicated region
    $region9: #{forward.12} parent=5 // pred_check
      _
    $region10: #{forward.12} parent=5 // pred_check_branch
      %157 = sbr.rel (%p154) target = $region12
    $region11: #{forward.12} parent=5 // pred_region
      %s158 = ssub.s32 %s10, 1
      // Predicated region
      $region13: #{forward.12} parent=11 // pred_check
        %p159 = pneg %p97
      $region14: #{forward.12} parent=11 // pred_check_branch
        %161 = sbr.rel (%p159) target = $region16
      $region15: #{forward.12} parent=11 // pred_region
        _
      $region16: #{forward.12} parent=11 // pred_fallthru
        _
      // Predicated region
      $region17: #{forward.12} parent=11 // pred_check
        %p162 = pneg %p118
      $region18: #{forward.12} parent=11 // pred_check_branch
        %164 = sbr.rel (%p162) target = $region20
      $region19: #{forward.12} parent=11 // pred_region
        _
      $region20: #{forward.12} parent=11 // pred_fallthru
        _
    $region12: #{forward.12} parent=5 // pred_fallthru
      _
    %p165 = scmp.lt.s32.totalorder %s10, 9
    // Predicated region
    $region21: #{forward.12} parent=5 // pred_check
      %p166 = pneg %p165
    $region22: #{forward.12} parent=5 // pred_check_branch
      %168 = sbr.rel (%p166) target = $region24
    $region23: #{forward.12} parent=5 // pred_region
      // Predicated region
      $region25: #{forward.12} parent=23 // pred_check
        %p169 = pneg %p44
      $region26: #{forward.12} parent=23 // pred_check_branch
        %171 = sbr.rel (%p169) target = $region28
      $region27: #{forward.12} parent=23 // pred_region
        %p172 = scmp.lt.s32.totalorder %s18, 8
        %s173 = scalar_select %p172, %s18, 8
        %p174 = scmp.lt.s32.totalorder %s17, 0
        %s175 = scalar_select %p174, %s17, 0
        %s176 = sadd.s32 %s175, %s173
        %s177 = smul.addr %s176, 4
        %s178 = scalar_lea.vmem %s0, %s177
      $region28: #{forward.12} parent=23 // pred_fallthru
        _
      // Predicated region
      $region29: #{forward.12} parent=23 // pred_check
        %p179 = pneg %p70
      $region30: #{forward.12} parent=23 // pred_check_branch
        %181 = sbr.rel (%p179) target = $region32
      $region31: #{forward.12} parent=23 // pred_region
        %p182 = scmp.lt.s32.totalorder %s18, 8
        %s183 = scalar_select %p182, %s18, 8
        %s184 = smul.addr %s183, 16
        %s185 = smul.addr %s184, 4
        %s186 = scalar_lea.vmem %s1, %s185
      $region32: #{forward.12} parent=23 // pred_fallthru
        _
    $region24: #{forward.12} parent=5 // pred_fallthru
      _
    %p187 = scmp.le.s32.totalorder 1, %s10
    %p188 = scmp.lt.s32.totalorder %s10, 10
    %p189 = pnand %p187, %p188
    %p190 = pneg %p189
    // Predicated region
    $region33: #{forward.12} parent=5 // pred_check
      _
    $region34: #{forward.12} parent=5 // pred_check_branch
      %192 = sbr.rel (%p189) target = $region36
    $region35: #{forward.12} parent=5 // pred_region
      %s193 = ssub.s32 %s10, 1
      %p194 = scmp.lt.s32.totalorder %s20, 8
      %s195 = scalar_select %p194, %s20, 8
      %p196 = scmp.lt.s32.totalorder %s19, 0
      %s197 = scalar_select %p196, %s19, 0
      %s198 = sadd.s32 %s197, %s195
      %s199 = smul.addr %s198, 4
      %s200 = scalar_lea.vmem %s0, %s199
      %p201 = pneg %p50
      %p202 = pneg %p47
      %p203 = scmp.lt.s32.totalorder %s20, 8
      %s204 = scalar_select %p203, %s20, 8
      %s205 = smul.addr %s204, 16
      %s206 = smul.addr %s205, 4
      %s207 = scalar_lea.vmem %s1, %s206
      %p208 = pneg %p76
      %p209 = pneg %p73
      %p210 = pneg %p97
      %p211 = pneg %p94
      %p212 = pneg %p118
      %p213 = pneg %p115
      %p214 = pneg %p144
      %p215 = pneg %p141
      %p216 = scmp.lt.s32.totalorder %s19, 0
      %s217 = scalar_select %p216, %s19, 0
      %s218 = smul.addr %s217, 4
      %s219 = scalar_lea.vmem %s4, %s218
      %p220 = scmp.lt.s32.totalorder %s20, 8
      %s221 = scalar_select %p220, %s20, 8
      %p222 = scmp.lt.s32.totalorder %s19, 0
      %s223 = scalar_select %p222, %s19, 0
      %s224 = sadd.s32 %s223, %s221
      %s225 = smul.addr %s224, 4
      %s226 = scalar_lea.vmem %s0, %s225
      %p227 = scmp.lt.s32.totalorder %s20, 8
      %s228 = scalar_select %p227, %s20, 8
      %s229 = smul.addr %s228, 16
      %s230 = smul.addr %s229, 4
      %s231 = scalar_lea.vmem %s1, %s230
      %p232 = scmp.lt.s32.totalorder %s19, 0
      %s233 = scalar_select %p232, %s19, 0
      %s234 = smul.addr %s233, 4
      %s235 = scalar_lea.vmem %s4, %s234
      %p236 = scmp.eq.s32.totalorder %s20, 0
      // Predicated region
      $region37: #{forward.12} parent=35 // pred_check
        %p237 = pneg %p236
      $region38: #{forward.12} parent=35 // pred_check_branch
        %239 = sbr.rel (%p237) target = $region40
      $region39: #{forward.12} parent=35 // pred_region
        %240 = vst [vmem:[#allocation2] sm:$0xff] 0.0
      $region40: #{forward.12} parent=35 // pred_fallthru
        _
      %v241 = vld [vmem:[#allocation2] sm:$0xff]
      %v242 = vld [vmem:[%s226] sm:$0xf]
      %v243 = vld [vmem:[%s231] sm:$0xf]
      %v244 = vld [vmem:[%s231 + $0x4] sm:$0xf]
      %v245 = vld [vmem:[%s231 + $0x8] sm:$0xf]
      %v246 = vld [vmem:[%s231 + $0xc] sm:$0xf]
      %v247 = vld [vmem:[%s231 + $0x10] sm:$0xf]
      %v248 = vld [vmem:[%s231 + $0x14] sm:$0xf]
      %v249 = vld [vmem:[%s231 + $0x18] sm:$0xf]
      %v250 = vld [vmem:[%s231 + $0x1c] sm:$0xf]
      %v251 = vld [vmem:[%s231 + $0x20] sm:$0xf]
      %v252 = vld [vmem:[%s231 + $0x24] sm:$0xf]
      %v253 = vld [vmem:[%s231 + $0x28] sm:$0xf]
      %v254 = vld [vmem:[%s231 + $0x2c] sm:$0xf]
      %v255 = vld [vmem:[%s231 + $0x30] sm:$0xf]
      %v256 = vld [vmem:[%s231 + $0x34] sm:$0xf]
      %v257 = vld [vmem:[%s231 + $0x38] sm:$0xf]
      %v258 = vld [vmem:[%s231 + $0x3c] sm:$0xf]
      %v275 = vunpack.c.l.b16 %v243
      %v276 = vunpack.c.l.b16 %v244
      %v277 = vunpack.c.l.b16 %v245
      %v278 = vunpack.c.l.b16 %v246
      %v279 = vunpack.c.l.b16 %v247
      %v280 = vunpack.c.l.b16 %v248
      %v281 = vunpack.c.l.b16 %v249
      %v282 = vunpack.c.l.b16 %v250
      %v283 = vunpack.c.l.b16 %v251
      %v284 = vunpack.c.l.b16 %v252
      %v285 = vunpack.c.l.b16 %v253
      %v286 = vunpack.c.l.b16 %v254
      %v287 = vunpack.c.l.b16 %v255
      %v288 = vunpack.c.l.b16 %v256
      %v289 = vunpack.c.l.b16 %v257
      %v290 = vunpack.c.l.b16 %v258
      %v291 = vpack.c.b16 %v276, %v275
      %v292 = vpack.c.b16 %v278, %v277
      %v293 = vpack.c.b16 %v280, %v279
      %v294 = vpack.c.b16 %v282, %v281
      %v295 = vpack.c.b16 %v284, %v283
      %v296 = vpack.c.b16 %v286, %v285
      %v297 = vpack.c.b16 %v288, %v287
      %v298 = vpack.c.b16 %v290, %v289
      %307 = vmatpush.bf16.msra.mxu0 %v298
      %308 = vmatpush.bf16.msra.mxu0 %v297
      %309 = vmatpush.bf16.msra.mxu0 %v296
      %310 = vmatpush.bf16.msra.mxu0 %v295
      %311 = vmatpush.bf16.msra.mxu0 %v294
      %312 = vmatpush.bf16.msra.mxu0 %v293
      %313 = vmatpush.bf16.msra.mxu0 %v292
      %314 = vmatpush.bf16.msra.mxu0 %v291
      %315 = vmatmul.bf16.gmra.mxu0 %v242
      %v316 = vpop.f32.mrf.mxu0
      %v317 = vadd.f32 0.0, %v316
      %v318 = vpop.f32.mrf.mxu0
      %319 = vdwg.mxu0
      %v320 = vadd.f32 %v241, %v317
      %321 = vst [vmem:[#allocation2] sm:$0xff] %v320
      %p322 = scmp.eq.s32.totalorder %s20, 8
      // Predicated region
      $region41: #{forward.12} parent=35 // pred_check
        %p323 = pneg %p322
      $region42: #{forward.12} parent=35 // pred_check_branch
        %325 = sbr.rel (%p323) target = $region44
      $region43: #{forward.12} parent=35 // pred_region
        %v326 = vld [vmem:[#allocation2] sm:$0xff]
        %v327 = vld [vmem:[%s2] sm:$0x1]
        %v329 = vperm.slane %v327, 0
        %v331 = vmul.f32 %v326, %v329
        %v332 = vld [vmem:[%s3] sm:$0x1]
        %v334 = vperm.slane %v332, 0
        %v336 = vadd.f32 %v331, %v334
        %v337 = vmax.f32 %v336, 0.0
        %v338 = vpack.c.bf16 %v337, %v337
        %339 = vst [vmem:[%s235] sm:$0xf] %v338
      $region44: #{forward.12} parent=35 // pred_fallthru
        _
      %p340 = scmp.lt.s32.totalorder %s19, 0
      %s341 = scalar_select %p340, %s19, 0
      %s342 = smul.addr %s341, 4
      %s343 = scalar_lea.vmem %s4, %s342
      // Predicated region
      $region45: #{forward.12} parent=35 // pred_check
        %p344 = pneg %p141
      $region46: #{forward.12} parent=35 // pred_check_branch
        %346 = sbr.rel (%p344) target = $region48
      $region47: #{forward.12} parent=35 // pred_region
        _
      $region48: #{forward.12} parent=35 // pred_fallthru
        _
      // Predicated region
      $region49: #{forward.12} parent=35 // pred_check
        %p347 = pneg %p141
      $region50: #{forward.12} parent=35 // pred_check_branch
        %349 = sbr.rel (%p347) target = $region52
      $region51: #{forward.12} parent=35 // pred_region
        %p350 = scmp.lt.s32.totalorder %s19, 0
        %s351 = scalar_select %p350, %s19, 0
        %s352 = smul.addr %s351, 4
        %s353 = scalar_lea.vmem %s4, %s352
      $region52: #{forward.12} parent=35 // pred_fallthru
        _
    $region36: #{forward.12} parent=5 // pred_fallthru
      _
    %p354 = scmp.le.s32.totalorder 2, %s10
    // Predicated region
    $region53: #{forward.12} parent=5 // pred_check
      %p355 = pneg %p354
    $region54: #{forward.12} parent=5 // pred_check_branch
      %357 = sbr.rel (%p355) target = $region56
    $region55: #{forward.12} parent=5 // pred_region
      %s358 = ssub.s32 %s10, 2
    $region56: #{forward.12} parent=5 // pred_fallthru
      _
  $region6: #{forward.12} parent=0 // loop_footer
    %s14 = sadd.s32 1, %s10
  $region7: #{forward.12} parent=0 // loop_footer_branch
    %9 = sbr.rel target = $region3
  $region8: #{forward.12} parent=0 // loop_exit
    _

// kernel: forward.14
$region0: #{forward.14}
  #allocation0 [shape = 'u32[]', space=smem, size = 0x4, offset = 0x4, fixed_abs, tag = 'smem constant byte address 0x4 - core index']
  #allocation1 [shape = 'u32[72,128]{1,0:T(1,128)}', space=vmem, size = 0x9000, scoped, tag = 'internal scratch']
  #allocation2 [shape = 'f32[8,128]{1,0:T(8,128)}', space=vmem, size = 0x1000, scoped, tag = 'scratch operand']
  %s0 = inlined_call_operand.vmem [shape: bf16[9,8,128], index: 0, kind: input, shape index: {}]
  %s1 = inlined_call_operand.vmem [shape: bf16[9,128,128], index: 1, kind: input, shape index: {}]
  %s2 = inlined_call_operand.vmem [shape: f32[1,128], index: 2, kind: input, shape index: {}]
  %s3 = inlined_call_operand.vmem [shape: f32[1,128], index: 3, kind: input, shape index: {}]
  %s4 = inlined_call_operand.vmem [shape: bf16[8,128], index: 4, kind: input, shape index: {}]
  %s5 = inlined_call_operand.vmem [shape: bf16[8,128], index: 5, kind: output, shape index: {}]
  %s6 = sld [smem:[#allocation0]]
  $region61: #{forward.14} parent=0
    _
  %s8 = ssub.s32 1, %s6
  %s9 = scalar_select 0, %s8, %s6
  loop: start=0, step=1, limit=11
  $region2: #{forward.14} parent=0 // loop_pre_header
    _
  $region3: #{forward.14} parent=0 // loop_header
    %s11 = sphi 0, %s15
    %p12 = scmp.ge.s32.totalorder %s11, 11
    %s18 = sphi 0, %s30
    %s19 = sphi 0, %s26
    %s20 = sphi 0, %s18
    %s21 = sphi 0, %s19
    %s22 = sphi 0, %s20
    %s23 = sphi 0, %s21
    %s35 = sphi 0, %s37
    %s38 = sphi 0, %s35
    %s39 = sphi 0, %s38
    %s55 = sphi 0, %s39
    %s61 = sphi 0, %s63
    %s64 = sphi 0, %s61
    %s65 = sphi 0, %s64
    %s81 = sphi 0, %s65
    %s85 = sphi 0, %s85
    %s87 = sphi 0, %s85
    %s88 = sphi 0, %s87
    %s102 = sphi 0, %s88
    %s106 = sphi 0, %s106
    %s108 = sphi 0, %s106
    %s109 = sphi 0, %s108
    %s123 = sphi 0, %s109
    %s129 = sphi 0, %s131
    %s132 = sphi 0, %s129
    %s133 = sphi 0, %s132
    %s149 = sphi 0, %s133
    %s155 = sphi 0, %s157
    %s158 = sphi 0, %s155
    %s159 = sphi 0, %s158
    %s175 = sphi 0, %s159
  $region4: #{forward.14} parent=0 // loop_header_branch
    %14 = sbr.rel (%p12) target = $region8
  $region5: #{forward.14} parent=0 // loop_body
    %s16 = ssub.s32 %s11, 1
    %s17 = ssub.s32 %s11, 2
    %s24 = sadd.s32 1, %s19
    %p25 = scmp.ge.s32.totalorder %s24, 9
    %s26 = scalar_select %p25, 0, %s24
    %s27 = sadd.s32 1, %s18
    %s28 = scalar_select %p25, %s27, %s18
    %p29 = scmp.ge.s32.totalorder %s28, 1
    %s30 = scalar_select %p29, 0, %s28
    %s31 = ssub.s32 %s19, %s26
    %s32 = ssub.s32 %s18, %s30
    %s33 = sor.u32 %s31, %s32
    %p34 = scmp.eq.s32.totalorder %s33, 0
    %s36 = sadd.s32 %s35, 1
    %s37 = scalar_select %p34, %s35, %s36
    %p40 = pneg %p34
    %p41 = scmp.eq.s32.totalorder %s11, 8
    %p42 = por %p40, %p41
    %p43 = scmp.ne.s32.totalorder %s35, %s38
    %p44 = scmp.eq.s32.totalorder %s11, 0
    %p45 = por %p43, %p44
    %p46 = scmp.ne.s32.totalorder %s35, %s38
    %p47 = scmp.eq.s32.totalorder %s16, 8
    %p48 = por %p46, %p47
    %p49 = scmp.ne.s32.totalorder %s38, %s39
    %p50 = scmp.eq.s32.totalorder %s16, 0
    %p51 = por %p49, %p50
    %p52 = scmp.ne.s32.totalorder %s38, %s39
    %p53 = scmp.eq.s32.totalorder %s17, 8
    %p54 = por %p52, %p53
    %p56 = scmp.ne.s32.totalorder %s39, %s55
    %p57 = scmp.eq.s32.totalorder %s17, 0
    %p58 = por %p56, %p57
    %s59 = ssub.s32 %s19, %s26
    %p60 = scmp.eq.s32.totalorder %s59, 0
    %s62 = sadd.s32 %s61, 1
    %s63 = scalar_select %p60, %s61, %s62
    %p66 = pneg %p60
    %p67 = scmp.eq.s32.totalorder %s11, 8
    %p68 = por %p66, %p67
    %p69 = scmp.ne.s32.totalorder %s61, %s64
    %p70 = scmp.eq.s32.totalorder %s11, 0
    %p71 = por %p69, %p70
    %p72 = scmp.ne.s32.totalorder %s61, %s64
    %p73 = scmp.eq.s32.totalorder %s16, 8
    %p74 = por %p72, %p73
    %p75 = scmp.ne.s32.totalorder %s64, %s65
    %p76 = scmp.eq.s32.totalorder %s16, 0
    %p77 = por %p75, %p76
    %p78 = scmp.ne.s32.totalorder %s64, %s65
    %p79 = scmp.eq.s32.totalorder %s17, 8
    %p80 = por %p78, %p79
    %p82 = scmp.ne.s32.totalorder %s65, %s81
    %p83 = scmp.eq.s32.totalorder %s17, 0
    %p84 = por %p82, %p83
    %s86 = sadd.s32 %s85, 1
    %p89 = scmp.eq.s32.totalorder %s11, 8
    %p90 = scmp.ne.s32.totalorder %s85, %s87
    %p91 = scmp.eq.s32.totalorder %s11, 0
    %p92 = por %p90, %p91
    %p93 = scmp.ne.s32.totalorder %s85, %s87
    %p94 = scmp.eq.s32.totalorder %s16, 8
    %p95 = por %p93, %p94
    %p96 = scmp.ne.s32.totalorder %s87, %s88
    %p97 = scmp.eq.s32.totalorder %s16, 0
    %p98 = por %p96, %p97
    %p99 = scmp.ne.s32.totalorder %s87, %s88
    %p100 = scmp.eq.s32.totalorder %s17, 8
    %p101 = por %p99, %p100
    %p103 = scmp.ne.s32.totalorder %s88, %s102
    %p104 = scmp.eq.s32.totalorder %s17, 0
    %p105 = por %p103, %p104
    %s107 = sadd.s32 %s106, 1
    %p110 = scmp.eq.s32.totalorder %s11, 8
    %p111 = scmp.ne.s32.totalorder %s106, %s108
    %p112 = scmp.eq.s32.totalorder %s11, 0
    %p113 = por %p111, %p112
    %p114 = scmp.ne.s32.totalorder %s106, %s108
    %p115 = scmp.eq.s32.totalorder %s16, 8
    %p116 = por %p114, %p115
    %p117 = scmp.ne.s32.totalorder %s108, %s109
    %p118 = scmp.eq.s32.totalorder %s16, 0
    %p119 = por %p117, %p118
    %p120 = scmp.ne.s32.totalorder %s108, %s109
    %p121 = scmp.eq.s32.totalorder %s17, 8
    %p122 = por %p120, %p121
    %p124 = scmp.ne.s32.totalorder %s109, %s123
    %p125 = scmp.eq.s32.totalorder %s17, 0
    %p126 = por %p124, %p125
    %s127 = ssub.s32 %s18, %s30
    %p128 = scmp.eq.s32.totalorder %s127, 0
    %s130 = sadd.s32 %s129, 1
    %s131 = scalar_select %p128, %s129, %s130
    %p134 = pneg %p128
    %p135 = scmp.eq.s32.totalorder %s11, 8
    %p136 = por %p134, %p135
    %p137 = scmp.ne.s32.totalorder %s129, %s132
    %p138 = scmp.eq.s32.totalorder %s11, 0
    %p139 = por %p137, %p138
    %p140 = scmp.ne.s32.totalorder %s129, %s132
    %p141 = scmp.eq.s32.totalorder %s16, 8
    %p142 = por %p140, %p141
    %p143 = scmp.ne.s32.totalorder %s132, %s133
    %p144 = scmp.eq.s32.totalorder %s16, 0
    %p145 = por %p143, %p144
    %p146 = scmp.ne.s32.totalorder %s132, %s133
    %p147 = scmp.eq.s32.totalorder %s17, 8
    %p148 = por %p146, %p147
    %p150 = scmp.ne.s32.totalorder %s133, %s149
    %p151 = scmp.eq.s32.totalorder %s17, 0
    %p152 = por %p150, %p151
    %s153 = ssub.s32 %s18, %s30
    %p154 = scmp.eq.s32.totalorder %s153, 0
    %s156 = sadd.s32 %s155, 1
    %s157 = scalar_select %p154, %s155, %s156
    %p160 = pneg %p154
    %p161 = scmp.eq.s32.totalorder %s11, 8
    %p162 = por %p160, %p161
    %p163 = scmp.ne.s32.totalorder %s155, %s158
    %p164 = scmp.eq.s32.totalorder %s11, 0
    %p165 = por %p163, %p164
    %p166 = scmp.ne.s32.totalorder %s155, %s158
    %p167 = scmp.eq.s32.totalorder %s16, 8
    %p168 = por %p166, %p167
    %p169 = scmp.ne.s32.totalorder %s158, %s159
    %p170 = scmp.eq.s32.totalorder %s16, 0
    %p171 = por %p169, %p170
    %p172 = scmp.ne.s32.totalorder %s158, %s159
    %p173 = scmp.eq.s32.totalorder %s17, 8
    %p174 = por %p172, %p173
    %p176 = scmp.ne.s32.totalorder %s159, %s175
    %p177 = scmp.eq.s32.totalorder %s17, 0
    %p178 = por %p176, %p177
    %p179 = scmp.le.s32.totalorder 1, %s11
    %p180 = scmp.lt.s32.totalorder %s11, 10
    %p181 = pnand %p179, %p180
    %p182 = pneg %p181
    // Predicated region
    $region9: #{forward.14} parent=5 // pred_check
      _
    $region10: #{forward.14} parent=5 // pred_check_branch
      %184 = sbr.rel (%p181) target = $region12
    $region11: #{forward.14} parent=5 // pred_region
      %s185 = ssub.s32 %s11, 1
      // Predicated region
      $region13: #{forward.14} parent=11 // pred_check
        %p186 = pneg %p98
      $region14: #{forward.14} parent=11 // pred_check_branch
        %188 = sbr.rel (%p186) target = $region16
      $region15: #{forward.14} parent=11 // pred_region
        _
      $region16: #{forward.14} parent=11 // pred_fallthru
        _
      // Predicated region
      $region17: #{forward.14} parent=11 // pred_check
        %p189 = pneg %p119
      $region18: #{forward.14} parent=11 // pred_check_branch
        %191 = sbr.rel (%p189) target = $region20
      $region19: #{forward.14} parent=11 // pred_region
        _
      $region20: #{forward.14} parent=11 // pred_fallthru
        _
      // Predicated region
      $region21: #{forward.14} parent=11 // pred_check
        %p192 = pneg %p145
      $region22: #{forward.14} parent=11 // pred_check_branch
        %194 = sbr.rel (%p192) target = $region24
      $region23: #{forward.14} parent=11 // pred_region
        %p195 = scmp.lt.s32.totalorder %s20, 0
        %s196 = scalar_select %p195, %s20, 0
        %s197 = smul.addr %s196, 4
        %s198 = scalar_lea.vmem %s4, %s197
      $region24: #{forward.14} parent=11 // pred_fallthru
        _
    $region12: #{forward.14} parent=5 // pred_fallthru
      _
    %p199 = scmp.lt.s32.totalorder %s11, 9
    // Predicated region
    $region25: #{forward.14} parent=5 // pred_check
      %p200 = pneg %p199
    $region26: #{forward.14} parent=5 // pred_check_branch
      %202 = sbr.rel (%p200) target = $region28
    $region27: #{forward.14} parent=5 // pred_region
      // Predicated region
      $region29: #{forward.14} parent=27 // pred_check
        %p203 = pneg %p45
      $region30: #{forward.14} parent=27 // pred_check_branch
        %205 = sbr.rel (%p203) target = $region32
      $region31: #{forward.14} parent=27 // pred_region
        %p206 = scmp.lt.s32.totalorder %s19, 8
        %s207 = scalar_select %p206, %s19, 8
        %p208 = scmp.lt.s32.totalorder %s18, 0
        %s209 = scalar_select %p208, %s18, 0
        %s210 = sadd.s32 %s209, %s207
        %s211 = smul.addr %s210, 4
        %s212 = scalar_lea.vmem %s0, %s211
      $region32: #{forward.14} parent=27 // pred_fallthru
        _
      // Predicated region
      $region33: #{forward.14} parent=27 // pred_check
        %p213 = pneg %p71
      $region34: #{forward.14} parent=27 // pred_check_branch
        %215 = sbr.rel (%p213) target = $region36
      $region35: #{forward.14} parent=27 // pred_region
        %p216 = scmp.lt.s32.totalorder %s19, 8
        %s217 = scalar_select %p216, %s19, 8
        %s218 = smul.addr %s217, 16
        %s219 = smul.addr %s218, 4
        %s220 = scalar_lea.vmem %s1, %s219
      $region36: #{forward.14} parent=27 // pred_fallthru
        _
    $region28: #{forward.14} parent=5 // pred_fallthru
      _
    %p221 = scmp.le.s32.totalorder 1, %s11
    %p222 = scmp.lt.s32.totalorder %s11, 10
    %p223 = pnand %p221, %p222
    %p224 = pneg %p223
    // Predicated region
    $region37: #{forward.14} parent=5 // pred_check
      _
    $region38: #{forward.14} parent=5 // pred_check_branch
      %226 = sbr.rel (%p223) target = $region40
    $region39: #{forward.14} parent=5 // pred_region
      %s227 = ssub.s32 %s11, 1
      %p228 = scmp.lt.s32.totalorder %s21, 8
      %s229 = scalar_select %p228, %s21, 8
      %p230 = scmp.lt.s32.totalorder %s20, 0
      %s231 = scalar_select %p230, %s20, 0
      %s232 = sadd.s32 %s231, %s229
      %s233 = smul.addr %s232, 4
      %s234 = scalar_lea.vmem %s0, %s233
      %p235 = pneg %p51
      %p236 = pneg %p48
      %p237 = scmp.lt.s32.totalorder %s21, 8
      %s238 = scalar_select %p237, %s21, 8
      %s239 = smul.addr %s238, 16
      %s240 = smul.addr %s239, 4
      %s241 = scalar_lea.vmem %s1, %s240
      %p242 = pneg %p77
      %p243 = pneg %p74
      %p244 = pneg %p98
      %p245 = pneg %p95
      %p246 = pneg %p119
      %p247 = pneg %p116
      %p248 = scmp.lt.s32.totalorder %s20, 0
      %s249 = scalar_select %p248, %s20, 0
      %s250 = smul.addr %s249, 4
      %s251 = scalar_lea.vmem %s4, %s250
      %p252 = pneg %p145
      %p253 = pneg %p142
      %p254 = pneg %p171
      %p255 = pneg %p168
      %p256 = scmp.lt.s32.totalorder %s20, 0
      %s257 = scalar_select %p256, %s20, 0
      %s258 = smul.addr %s257, 4
      %s259 = scalar_lea.vmem %s5, %s258
      %p260 = scmp.lt.s32.totalorder %s21, 8
      %s261 = scalar_select %p260, %s21, 8
      %p262 = scmp.lt.s32.totalorder %s20, 0
      %s263 = scalar_select %p262, %s20, 0
      %s264 = sadd.s32 %s263, %s261
      %s265 = smul.addr %s264, 4
      %s266 = scalar_lea.vmem %s0, %s265
      %p267 = scmp.lt.s32.totalorder %s21, 8
      %s268 = scalar_select %p267, %s21, 8
      %s269 = smul.addr %s268, 16
      %s270 = smul.addr %s269, 4
      %s271 = scalar_lea.vmem %s1, %s270
      %p272 = scmp.lt.s32.totalorder %s20, 0
      %s273 = scalar_select %p272, %s20, 0
      %s274 = smul.addr %s273, 4
      %s275 = scalar_lea.vmem %s4, %s274
      %p276 = scmp.lt.s32.totalorder %s20, 0
      %s277 = scalar_select %p276, %s20, 0
      %s278 = smul.addr %s277, 4
      %s279 = scalar_lea.vmem %s5, %s278
      %p280 = scmp.eq.s32.totalorder %s21, 0
      // Predicated region
      $region41: #{forward.14} parent=39 // pred_check
        %p281 = pneg %p280
      $region42: #{forward.14} parent=39 // pred_check_branch
        %283 = sbr.rel (%p281) target = $region44
      $region43: #{forward.14} parent=39 // pred_region
        %284 = vst [vmem:[#allocation2] sm:$0xff] 0.0
      $region44: #{forward.14} parent=39 // pred_fallthru
        _
      %v285 = vld [vmem:[#allocation2] sm:$0xff]
      %v286 = vld [vmem:[%s266] sm:$0xf]
      %v287 = vld [vmem:[%s271] sm:$0xf]
      %v288 = vld [vmem:[%s271 + $0x4] sm:$0xf]
      %v289 = vld [vmem:[%s271 + $0x8] sm:$0xf]
      %v290 = vld [vmem:[%s271 + $0xc] sm:$0xf]
      %v291 = vld [vmem:[%s271 + $0x10] sm:$0xf]
      %v292 = vld [vmem:[%s271 + $0x14] sm:$0xf]
      %v293 = vld [vmem:[%s271 + $0x18] sm:$0xf]
      %v294 = vld [vmem:[%s271 + $0x1c] sm:$0xf]
      %v295 = vld [vmem:[%s271 + $0x20] sm:$0xf]
      %v296 = vld [vmem:[%s271 + $0x24] sm:$0xf]
      %v297 = vld [vmem:[%s271 + $0x28] sm:$0xf]
      %v298 = vld [vmem:[%s271 + $0x2c] sm:$0xf]
      %v299 = vld [vmem:[%s271 + $0x30] sm:$0xf]
      %v300 = vld [vmem:[%s271 + $0x34] sm:$0xf]
      %v301 = vld [vmem:[%s271 + $0x38] sm:$0xf]
      %v302 = vld [vmem:[%s271 + $0x3c] sm:$0xf]
      %v319 = vunpack.c.l.b16 %v287
      %v320 = vunpack.c.l.b16 %v288
      %v321 = vunpack.c.l.b16 %v289
      %v322 = vunpack.c.l.b16 %v290
      %v323 = vunpack.c.l.b16 %v291
      %v324 = vunpack.c.l.b16 %v292
      %v325 = vunpack.c.l.b16 %v293
      %v326 = vunpack.c.l.b16 %v294
      %v327 = vunpack.c.l.b16 %v295
      %v328 = vunpack.c.l.b16 %v296
      %v329 = vunpack.c.l.b16 %v297
      %v330 = vunpack.c.l.b16 %v298
      %v331 = vunpack.c.l.b16 %v299
      %v332 = vunpack.c.l.b16 %v300
      %v333 = vunpack.c.l.b16 %v301
      %v334 = vunpack.c.l.b16 %v302
      %v335 = vpack.c.b16 %v320, %v319
      %v336 = vpack.c.b16 %v322, %v321
      %v337 = vpack.c.b16 %v324, %v323
      %v338 = vpack.c.b16 %v326, %v325
      %v339 = vpack.c.b16 %v328, %v327
      %v340 = vpack.c.b16 %v330, %v329
      %v341 = vpack.c.b16 %v332, %v331
      %v342 = vpack.c.b16 %v334, %v333
      %351 = vmatpush.bf16.msra.mxu0 %v342
      %352 = vmatpush.bf16.msra.mxu0 %v341
      %353 = vmatpush.bf16.msra.mxu0 %v340
      %354 = vmatpush.bf16.msra.mxu0 %v339
      %355 = vmatpush.bf16.msra.mxu0 %v338
      %356 = vmatpush.bf16.msra.mxu0 %v337
      %357 = vmatpush.bf16.msra.mxu0 %v336
      %358 = vmatpush.bf16.msra.mxu0 %v335
      %359 = vmatmul.bf16.gmra.mxu0 %v286
      %v360 = vpop.f32.mrf.mxu0
      %v361 = vadd.f32 0.0, %v360
      %v362 = vpop.f32.mrf.mxu0
      %363 = vdwg.mxu0
      %v364 = vadd.f32 %v285, %v361
      %365 = vst [vmem:[#allocation2] sm:$0xff] %v364
      %p366 = scmp.eq.s32.totalorder %s21, 8
      // Predicated region
      $region45: #{forward.14} parent=39 // pred_check
        %p367 = pneg %p366
      $region46: #{forward.14} parent=39 // pred_check_branch
        %369 = sbr.rel (%p367) target = $region48
      $region47: #{forward.14} parent=39 // pred_region
        %v370 = vld [vmem:[#allocation2] sm:$0xff]
        %v371 = vld [vmem:[%s2] sm:$0x1]
        %v373 = vperm.slane %v371, 0
        %v375 = vmul.f32 %v370, %v373
        %v376 = vld [vmem:[%s3] sm:$0x1]
        %v378 = vperm.slane %v376, 0
        %v380 = vadd.f32 %v375, %v378
        %v381 = vld [vmem:[%s275] sm:$0xf]
        %v382 = vunpack.c.l.bf16 %v381
        %v383 = vadd.f32 %v380, %v382
        %v384 = vmax.f32 %v383, 0.0
        %v385 = vpack.c.bf16 %v384, %v384
        %386 = vst [vmem:[%s279] sm:$0xf] %v385
      $region48: #{forward.14} parent=39 // pred_fallthru
        _
      %p387 = scmp.lt.s32.totalorder %s20, 0
      %s388 = scalar_select %p387, %s20, 0
      %s389 = smul.addr %s388, 4
      %s390 = scalar_lea.vmem %s5, %s389
      // Predicated region
      $region49: #{forward.14} parent=39 // pred_check
        %p391 = pneg %p168
      $region50: #{forward.14} parent=39 // pred_check_branch
        %393 = sbr.rel (%p391) target = $region52
      $region51: #{forward.14} parent=39 // pred_region
        _
      $region52: #{forward.14} parent=39 // pred_fallthru
        _
      // Predicated region
      $region53: #{forward.14} parent=39 // pred_check
        %p394 = pneg %p168
      $region54: #{forward.14} parent=39 // pred_check_branch
        %396 = sbr.rel (%p394) target = $region56
      $region55: #{forward.14} parent=39 // pred_region
        %p397 = scmp.lt.s32.totalorder %s20, 0
        %s398 = scalar_select %p397, %s20, 0
        %s399 = smul.addr %s398, 4
        %s400 = scalar_lea.vmem %s5, %s399
      $region56: #{forward.14} parent=39 // pred_fallthru
        _
    $region40: #{forward.14} parent=5 // pred_fallthru
      _
    %p401 = scmp.le.s32.totalorder 2, %s11
    // Predicated region
    $region57: #{forward.14} parent=5 // pred_check
      %p402 = pneg %p401
    $region58: #{forward.14} parent=5 // pred_check_branch
      %404 = sbr.rel (%p402) target = $region60
    $region59: #{forward.14} parent=5 // pred_region
      %s405 = ssub.s32 %s11, 2
    $region60: #{forward.14} parent=5 // pred_fallthru
      _
  $region6: #{forward.14} parent=0 // loop_footer
    %s15 = sadd.s32 1, %s11
  $region7: #{forward.14} parent=0 // loop_footer_branch
    %10 = sbr.rel target = $region3
  $region8: #{forward.14} parent=0 // loop_exit
    _

// kernel: forward.15
$region0: #{forward.15}
  #allocation0 [shape = 'u32[]', space=smem, size = 0x4, offset = 0x4, fixed_abs, tag = 'smem constant byte address 0x4 - core index']
  #allocation1 [shape = 'u32[72,128]{1,0:T(1,128)}', space=vmem, size = 0x9000, scoped, tag = 'internal scratch']
  %s0 = inlined_call_operand.vmem [shape: bf16[2,4,128], index: 0, kind: input, shape index: {}]
  %s1 = inlined_call_operand.vmem [shape: bf16[128,128], index: 1, kind: input, shape index: {}]
  %s2 = inlined_call_operand.vmem [shape: f32[1,128], index: 2, kind: input, shape index: {}]
  %s3 = inlined_call_operand.hbm [shape: f32[2,128], index: 3, kind: output, shape index: {}]
  %s4 = sld [smem:[#allocation0]]
  $region22: #{forward.15} parent=0
    _
  %s6 = ssub.s32 1, %s4
  %s7 = scalar_select 0, %s6, %s4
  $region1: #{forward.15} parent=0
    #allocation2 [shape = 'u8[1024]{0}', space=vmem, size = 0x400, scoped, tag = 'output window, operand 0, single buffered']
    #allocation3 [shape = 's32[1]{0}', space=sflag, size = 0x4, scoped, tag = 'scoped memory for forward.15']
    %8 = vsyncpa [#allocation3], 0
    // Predicated region
    $region2: #{forward.15} parent=1 // pred_check
      _
    $region3: #{forward.15} parent=1 // pred_check_branch
      %10 = sbr.rel (0) target = $region5
    $region4: #{forward.15} parent=1 // pred_region
      _
    $region5: #{forward.15} parent=1 // pred_fallthru
      _
    // Predicated region
    $region6: #{forward.15} parent=1 // pred_check
      _
    $region7: #{forward.15} parent=1 // pred_check_branch
      %12 = sbr.rel (0) target = $region9
    $region8: #{forward.15} parent=1 // pred_region
      _
    $region9: #{forward.15} parent=1 // pred_fallthru
      _
    // Predicated region
    $region10: #{forward.15} parent=1 // pred_check
      _
    $region11: #{forward.15} parent=1 // pred_check_branch
      %14 = sbr.rel (0) target = $region13
    $region12: #{forward.15} parent=1 // pred_region
      _
    $region13: #{forward.15} parent=1 // pred_fallthru
      _
    %v15 = vld [vmem:[%s0] sm:$0x3]
    %v16 = vld [vmem:[%s0 + $0x2] sm:$0x3]
    %v17 = vunpack.c.l.bf16 %v15
    %v18 = vunpack.c.l.bf16 %v16
    %vm19 = vcmask 1043456
    %v20 = vsel %vm19, %v17, 0.0
    %v21 = vrot.slane %v20, 4
    %v22 = vadd.f32 %v20, %v21
    %v23 = vrot.slane %v22, 2
    %v24 = vadd.f32 %v22, %v23
    %v25 = vrot.slane %v24, 1
    %v26 = vadd.f32 %v24, %v25
    %v27 = vsel %vm19, %v18, 0.0
    %v28 = vrot.slane %v27, 4
    %v29 = vadd.f32 %v27, %v28
    %v30 = vrot.slane %v29, 2
    %v31 = vadd.f32 %v29, %v30
    %v32 = vrot.slane %v31, 1
    %v33 = vadd.f32 %v31, %v32
    %v34 = vmul.f32 %v26, 0.25
    %v35 = vmul.f32 %v33, 0.25
    %v36 = vpack.c.bf16 %v34, %v34
    %v37 = vpack.c.bf16 %v35, %v35
    %v38 = vld [vmem:[%s1] sm:$0xf]
    %v39 = vld [vmem:[%s1 + $0x4] sm:$0xf]
    %v40 = vld [vmem:[%s1 + $0x8] sm:$0xf]
    %v41 = vld [vmem:[%s1 + $0xc] sm:$0xf]
    %v42 = vld [vmem:[%s1 + $0x10] sm:$0xf]
    %v43 = vld [vmem:[%s1 + $0x14] sm:$0xf]
    %v44 = vld [vmem:[%s1 + $0x18] sm:$0xf]
    %v45 = vld [vmem:[%s1 + $0x1c] sm:$0xf]
    %v46 = vld [vmem:[%s1 + $0x20] sm:$0xf]
    %v47 = vld [vmem:[%s1 + $0x24] sm:$0xf]
    %v48 = vld [vmem:[%s1 + $0x28] sm:$0xf]
    %v49 = vld [vmem:[%s1 + $0x2c] sm:$0xf]
    %v50 = vld [vmem:[%s1 + $0x30] sm:$0xf]
    %v51 = vld [vmem:[%s1 + $0x34] sm:$0xf]
    %v52 = vld [vmem:[%s1 + $0x38] sm:$0xf]
    %v53 = vld [vmem:[%s1 + $0x3c] sm:$0xf]
    %v54 = vld [vmem:[%s2] sm:$0x1]
    %v56 = vperm.slane %v54, 0
    %v60 = vunpack.c.l.b16 %v36
    %v61 = vunpack.c.l.b16 %v37
    %vm62 = vcmask 1041409
    %v63 = vsel %vm62, %v61, %v60
    %v64 = vpack.c.b16 %v63, %v63
    %v82 = vunpack.c.l.b16 %v38
    %v83 = vunpack.c.l.b16 %v39
    %v84 = vunpack.c.l.b16 %v40
    %v85 = vunpack.c.l.b16 %v41
    %v86 = vunpack.c.l.b16 %v42
    %v87 = vunpack.c.l.b16 %v43
    %v88 = vunpack.c.l.b16 %v44
    %v89 = vunpack.c.l.b16 %v45
    %v90 = vunpack.c.l.b16 %v46
    %v91 = vunpack.c.l.b16 %v47
    %v92 = vunpack.c.l.b16 %v48
    %v93 = vunpack.c.l.b16 %v49
    %v94 = vunpack.c.l.b16 %v50
    %v95 = vunpack.c.l.b16 %v51
    %v96 = vunpack.c.l.b16 %v52
    %v97 = vunpack.c.l.b16 %v53
    %v98 = vpack.c.b16 %v83, %v82
    %v99 = vpack.c.b16 %v85, %v84
    %v100 = vpack.c.b16 %v87, %v86
    %v101 = vpack.c.b16 %v89, %v88
    %v102 = vpack.c.b16 %v91, %v90
    %v103 = vpack.c.b16 %v93, %v92
    %v104 = vpack.c.b16 %v95, %v94
    %v105 = vpack.c.b16 %v97, %v96
    %114 = vmatpush.bf16.msra.mxu0 %v105
    %115 = vmatpush.bf16.msra.mxu0 %v104
    %116 = vmatpush.bf16.msra.mxu0 %v103
    %117 = vmatpush.bf16.msra.mxu0 %v102
    %118 = vmatpush.bf16.msra.mxu0 %v101
    %119 = vmatpush.bf16.msra.mxu0 %v100
    %120 = vmatpush.bf16.msra.mxu0 %v99
    %121 = vmatpush.bf16.msra.mxu0 %v98
    %122 = vmatmul.bf16.gmra.mxu0 %v64
    %v123 = vpop.f32.mrf.mxu0
    %v124 = vadd.f32 %v56, %v123
    %v125 = vpop.f32.mrf.mxu0
    %126 = vdwg.mxu0
    %127 = vst [vmem:[#allocation2] sm:$0x3] %v124
    // Predicated region
    $region14: #{forward.15} parent=1 // pred_check
      _
    $region15: #{forward.15} parent=1 // pred_check_branch
      %129 = sbr.rel (0) target = $region17
    $region16: #{forward.15} parent=1 // pred_region
      %131 = vsyncadd [#allocation3], 0
      %s133 = sshll.u32 [#allocation2], 4
      %s134 = int_to_ptr.vmem [resolvable:$true] %s133
      %s135 = sshll.u32 %s3, 4
      %s136 = int_to_ptr.hbm [resolvable:$true] %s135
      %138 = dma.vmem_to_hbm [thread:$0]  %s134, 32, %s136, [#allocation3]
    $region17: #{forward.15} parent=1 // pred_fallthru
      _
    // Predicated region
    $region18: #{forward.15} parent=1 // pred_check
      _
    $region19: #{forward.15} parent=1 // pred_check_branch
      %140 = sbr.rel (0) target = $region21
    $region20: #{forward.15} parent=1 // pred_region
      %142 = dma.done [#allocation3], 32
    $region21: #{forward.15} parent=1 // pred_fallthru
      _
    %143 = vsyncpa [#allocation3], 1

</llo_original>
